<compile_context>
chip_gen: v6e
topology: v6e:2x2x1
jax: 0.10.0
libtpu: 0.0.40
codegen_flags: <defaults>
</compile_context>

<pallas_src>
import jax
import jax.numpy as jnp
from jax import lax
from jax.experimental import pallas as pl
from jax.experimental.pallas import tpu as pltpu


def _make_attention_kernel(seq_len, s_tile, needs_mask):
    """Builds the kernel with the (static) true sequence length baked in."""

    def attention_kernel(x_ref, w_ref, b_ref, o_ref, m_scr, l_scr, acc_scr):
        # x_ref  : (BT, ST, H) VMEM (native dtype)   w_ref : (1, H) VMEM
        # b_ref  : (1, 1) SMEM scalar bias
        # o_ref  : (BT, H) VMEM output (written on the last sequence step)
        # m_scr  : (BT, 1) running max      l_scr : (BT, 1) running denominator
        # acc_scr: (BT, H) running UNnormalized weighted sum
        s_idx = pl.program_id(1)

        @pl.when(s_idx == 0)
        def _init():
            m_scr[...] = jnp.full(m_scr.shape, -jnp.inf, dtype=m_scr.dtype)
            l_scr[...] = jnp.zeros(l_scr.shape, dtype=l_scr.dtype)
            acc_scr[...] = jnp.zeros(acc_scr.shape, dtype=acc_scr.dtype)

        xv = x_ref[...]                                   # (BT, ST, H), native dtype
        w_row = w_ref[...].astype(jnp.float32)            # (1, H)
        bias = b_ref[0, 0]                                # scalar from SMEM

        # energy[b, s] = <x[b, s, :], w> + bias.
        # VPU multiply + lane reduce; the f32 cast is fused into this expression
        # (no standalone full-tile f32 copy of x is kept live).
        energy = jnp.sum(xv.astype(jnp.float32) * w_row[None, :, :], axis=-1) + bias

        if needs_mask:
            # Mask padded sequence positions (only the last S tile is ragged).
            pos = s_idx * s_tile + lax.broadcasted_iota(jnp.int32, energy.shape, 1)
            energy = jnp.where(pos < seq_len, energy, -jnp.inf)

        # ---- online softmax over the streaming sequence axis (grid axis 1) ----
        m_prev = m_scr[...]                                          # (BT, 1)
        m_new = jnp.maximum(m_prev, jnp.max(energy, axis=-1, keepdims=True))
        alpha = jnp.exp(m_prev - m_new)                              # rescale factor
        p = jnp.exp(energy - m_new)                                  # (BT, ST) f32

        l_scr[...] = alpha * l_scr[...] + jnp.sum(p, axis=-1, keepdims=True)

        # Weighted sum on the (otherwise idle) MXU: (BT,1,ST) @ (BT,ST,H) -> (BT,1,H).
        # This replaces a VPU mul + XLU cross-sublane reduce and its (BT,ST,H)
        # f32 temporary; f32 inputs use HIGHEST precision to hold the 1e-5 check.
        if xv.dtype == jnp.float32:
            contrib = jnp.einsum(
                "bqs,bsh->bqh", p[:, None, :], xv,
                preferred_element_type=jnp.float32,
                precision=lax.Precision.HIGHEST,
            )
        else:
            contrib = jnp.einsum(
                "bqs,bsh->bqh", p[:, None, :].astype(xv.dtype), xv,
                preferred_element_type=jnp.float32,
            )
        acc_scr[...] = alpha * acc_scr[...] + contrib[:, 0, :]
        m_scr[...] = m_new

        @pl.when(s_idx == pl.num_programs(1) - 1)
        def _finalize():
            # One reciprocal per output tile, outside the streaming loop.
            inv_l = pl.reciprocal(l_scr[...], approx=False)          # (BT, 1)
            o_ref[...] = (acc_scr[...] * inv_l).astype(o_ref.dtype)

    return attention_kernel


def _round_up(v, m):
    return -(-v // m) * m


def attention_forward(x, w, b):
    """x: (B, S, H), w: (H, 1), b: (1,).  Returns (B, H) softmax-pooled features."""
    B, S, H = x.shape
    itemsize = jnp.dtype(x.dtype).itemsize
    sub = 16 if itemsize < 4 else 8            # sublane granularity (bf16 packs 16)
    H_pad = _round_up(H, 128)                  # lane padding of the VMEM last dim

    # ---- per-generation VMEM budget ----------------------------------------
    try:
        vmem_cap = int(pltpu.get_tpu_info().vmem_capacity_bytes)
    except Exception:
        vmem_cap = 64 * 1024 * 1024            # conservative (v7x-sized) default
    # v5e/v6e (128 MiB) -> 96 MiB scoped limit; v7x (64 MiB) -> 48 MiB.
    vmem_limit = min(vmem_cap * 3 // 4, 96 * 1024 * 1024)

    # Live VMEM per step ~= 2 * x-block (double-buffered) + ~2 block-equivalents
    # of f32 temporaries (energy product / probs / MXU operands) + small scratch;
    # keep 20% headroom.
    per_elem_bytes = 2 * itemsize + 2 * 4
    block_elem_budget = (8 * vmem_limit // 10) // per_elem_bytes

    # ---- batch tile ----------------------------------------------------------
    B_pad = _round_up(B, sub)
    max_b_tile = min(128, B_pad)
    if B_pad >= 2 * sub:
        # Keep >= 2 batch grid steps so the "parallel" axis splits across v7x's
        # two TensorCores.
        max_b_tile = min(max_b_tile, B_pad // 2)
    b_tile = sub
    for cand in range(sub, max_b_tile + 1, sub):
        if B_pad % cand == 0:
            b_tile = cand

    # ---- sequence tile (streaming online-softmax axis) -----------------------
    s_budget = max(sub, (block_elem_budget // (b_tile * H_pad)) // sub * sub)
    s_tile = int(min(s_budget, _round_up(S, sub)))
    num_s_tiles = -(-S // s_tile)
    S_pad = num_s_tiles * s_tile
    needs_mask = S_pad != S

    if B_pad != B or S_pad != S:
        # Zero padding: padded batch rows give finite (discarded) outputs; padded
        # sequence positions are masked to -inf inside the kernel.
        x = jnp.pad(x, ((0, B_pad - B), (0, S_pad - S), (0, 0)))

    w_row = w.reshape(1, H).astype(jnp.float32)   # lane-dense weight row
    b_smem = b.reshape(1, 1).astype(jnp.float32)  # scalar bias -> SMEM

    kernel = _make_attention_kernel(S, s_tile, needs_mask)

    out = pl.pallas_call(
        kernel,
        out_shape=jax.ShapeDtypeStruct((B_pad, H), x.dtype),
        grid_spec=pltpu.PrefetchScalarGridSpec(
            num_scalar_prefetch=0,
            grid=(B_pad // b_tile, num_s_tiles),
            in_specs=[
                # For H < 128 the lane axis is under-occupied; we accept that and
                # compensate with a larger b_tile (a wrapper-side repack of B*H
                # onto the lane axis is not worth the transpose for this module).
                pl.BlockSpec((b_tile, s_tile, H), lambda i, s: (i, s, 0)),
                pl.BlockSpec((1, H), lambda i, s: (0, 0)),
                pl.BlockSpec((1, 1), lambda i, s: (0, 0),
                             memory_space=pltpu.MemorySpace.SMEM),
            ],
            out_specs=pl.BlockSpec((b_tile, H), lambda i, s: (i, 0)),
            scratch_shapes=[
                pltpu.VMEM((b_tile, 1), jnp.float32),   # running max
                pltpu.VMEM((b_tile, 1), jnp.float32),   # running denominator
                pltpu.VMEM((b_tile, H), jnp.float32),   # running weighted sum
            ],
        ),
        compiler_params=pltpu.CompilerParams(
            # Batch axis parallel (shards across v7x's 2 TCs); the sequence axis
            # carries the online-softmax state so it stays "arbitrary" (and last).
            dimension_semantics=("parallel", "arbitrary"),
            vmem_limit_bytes=int(vmem_limit),
        ),
    )(x, w_row, b_smem)

    return out[:B] if B_pad != B else out


def attention_reference(x, w, b):
    energy = jnp.einsum("bsh,ho->bso", x, w) + b            # (B, S, 1)
    weights = jax.nn.softmax(energy, axis=1)                # softmax over seq
    return jnp.sum(weights * x, axis=1)                     # (B, H)


if __name__ == "__main__":
    B, S, H = 2, 8, 32

    key = jax.random.PRNGKey(0)
    kx, kw, kb = jax.random.split(key, 3)

    # Mimic nn.Linear's uniform(-1/sqrt(H), 1/sqrt(H)) init.
    bound = 1.0 / jnp.sqrt(jnp.float32(H))
    w = jax.random.uniform(kw, (H, 1), jnp.float32, -bound, bound)
    b = jax.random.uniform(kb, (1,), jnp.float32, -bound, bound)
    x = jax.random.normal(kx, (B, S, H), jnp.float32)

    out = attention_forward(x, w, b)
    out = jax.block_until_ready(out)

    ref = attention_reference(x, w, b)
    assert out.shape == (B, H)
    assert jnp.allclose(out, ref, atol=1e-5, rtol=1e-5), "mismatch vs reference"

    print("KERNEL_OK")
</pallas_src>

<mosaic_0001>
module attributes {stable_mosaic.version = 11 : i64} {
  func.func @attention_kernel(%arg0: i32, %arg1: i32, %arg2: memref<8x8x32xf32, #tpu.memory_space<vmem>>, %arg3: memref<1x32xf32, #tpu.memory_space<vmem>>, %arg4: memref<1x1xf32, #tpu.memory_space<smem>>, %arg5: memref<8x32xf32, #tpu.memory_space<vmem>>, %arg6: memref<8x1xf32, #tpu.memory_space<vmem>>, %arg7: memref<8x1xf32, #tpu.memory_space<vmem>>, %arg8: memref<8x32xf32, #tpu.memory_space<vmem>>) attributes {dimension_semantics = [#tpu.dimension_semantics<parallel>, #tpu.dimension_semantics<arbitrary>], iteration_bounds = array<i64: 1, 1>, scalar_prefetch = 0 : i64, scratch_operands = 3 : i64, tpu.core_type = #tpu.core_type<tc>, window_params = [{transform_indices = @transform_0, window_bounds = array<i64: 8, 8, 32>}, {pipeline_mode = #tpu.pipeline_mode<synchronous>, transform_indices = @transform_1, window_bounds = array<i64: 1, 32>}, {transform_indices = @transform_2, window_bounds = array<i64: 1, 1>}, {transform_indices = @transform_3, window_bounds = array<i64: 8, 32>}]} {
    %c0_i32 = arith.constant 0 : i32
    %0 = arith.cmpi eq, %arg1, %c0_i32 : i32
    %1 = arith.extui %0 : i1 to i32
    %c0_i32_0 = arith.constant 0 : i32
    %2 = arith.cmpi ne, %1, %c0_i32_0 : i32
    scf.if %2 {
      %cst_24 = arith.constant 0xFF800000 : f32
      %39 = vector.broadcast %cst_24 : f32 to vector<8x1xf32>
      %c0_25 = arith.constant 0 : index
      %c0_26 = arith.constant 0 : index
      %40 = vector.load %arg6[%c0_25, %c0_26] : memref<8x1xf32, #tpu.memory_space<vmem>>, vector<8x1xf32>
      tpu.vector_store %arg6[%c0_25, %c0_26], %39 {strides = array<i32>} : memref<8x1xf32, #tpu.memory_space<vmem>>, vector<8x1xf32>,
      %cst_27 = arith.constant 0.000000e+00 : f32
      %41 = vector.broadcast %cst_27 : f32 to vector<8x1xf32>
      %c0_28 = arith.constant 0 : index
      %c0_29 = arith.constant 0 : index
      %42 = vector.load %arg7[%c0_28, %c0_29] : memref<8x1xf32, #tpu.memory_space<vmem>>, vector<8x1xf32>
      tpu.vector_store %arg7[%c0_28, %c0_29], %41 {strides = array<i32>} : memref<8x1xf32, #tpu.memory_space<vmem>>, vector<8x1xf32>,
      %cst_30 = arith.constant 0.000000e+00 : f32
      %43 = vector.broadcast %cst_30 : f32 to vector<8x32xf32>
      %c0_31 = arith.constant 0 : index
      %c0_32 = arith.constant 0 : index
      %44 = vector.load %arg8[%c0_31, %c0_32] : memref<8x32xf32, #tpu.memory_space<vmem>>, vector<8x32xf32>
      tpu.vector_store %arg8[%c0_31, %c0_32], %43 {strides = array<i32>} : memref<8x32xf32, #tpu.memory_space<vmem>>, vector<8x32xf32>,
    } else {
    }
    %c0 = arith.constant 0 : index
    %c0_1 = arith.constant 0 : index
    %c0_2 = arith.constant 0 : index
    %3 = vector.load %arg2[%c0, %c0_1, %c0_2] : memref<8x8x32xf32, #tpu.memory_space<vmem>>, vector<8x8x32xf32>
    %c0_3 = arith.constant 0 : index
    %c0_4 = arith.constant 0 : index
    %4 = vector.load %arg3[%c0_3, %c0_4] : memref<1x32xf32, #tpu.memory_space<vmem>>, vector<1x32xf32>
    %c0_5 = arith.constant 0 : index
    %c0_6 = arith.constant 0 : index
    %5 = memref.load %arg4[%c0_5, %c0_6] : memref<1x1xf32, #tpu.memory_space<smem>>
    %6 = vector.shape_cast %4 : vector<1x32xf32> to vector<1x1x32xf32>
    %7 = vector.broadcast %6 : vector<1x1x32xf32> to vector<8x8x32xf32>
    %8 = arith.mulf %3, %7 : vector<8x8x32xf32>
    %cst = arith.constant dense<0.000000e+00> : vector<8x8xf32>
    %9 = vector.multi_reduction <add>, %8, %cst [2] : vector<8x8x32xf32> to vector<8x8xf32>
    %10 = vector.broadcast %5 : f32 to vector<8x8xf32>
    %11 = arith.addf %9, %10 : vector<8x8xf32>
    %c0_7 = arith.constant 0 : index
    %c0_8 = arith.constant 0 : index
    %12 = vector.load %arg6[%c0_7, %c0_8] : memref<8x1xf32, #tpu.memory_space<vmem>>, vector<8x1xf32>
    %cst_9 = arith.constant dense<0xFF800000> : vector<8xf32>
    %13 = vector.multi_reduction <maximumf>, %11, %cst_9 [1] : vector<8x8xf32> to vector<8xf32>
    %14 = vector.shape_cast %13 : vector<8xf32> to vector<8x1xf32>
    %15 = arith.maximumf %12, %14 : vector<8x1xf32>
    %16 = arith.subf %12, %15 : vector<8x1xf32>
    %17 = math.exp %16 : vector<8x1xf32>
    %18 = vector.broadcast %15 : vector<8x1xf32> to vector<8x8xf32>
    %19 = arith.subf %11, %18 : vector<8x8xf32>
    %20 = math.exp %19 : vector<8x8xf32>
    %c0_10 = arith.constant 0 : index
    %c0_11 = arith.constant 0 : index
    %21 = vector.load %arg7[%c0_10, %c0_11] : memref<8x1xf32, #tpu.memory_space<vmem>>, vector<8x1xf32>
    %22 = arith.mulf %17, %21 : vector<8x1xf32>
    %cst_12 = arith.constant dense<0.000000e+00> : vector<8xf32>
    %23 = vector.multi_reduction <add>, %20, %cst_12 [1] : vector<8x8xf32> to vector<8xf32>
    %24 = vector.shape_cast %23 : vector<8xf32> to vector<8x1xf32>
    %25 = arith.addf %22, %24 : vector<8x1xf32>
    %c0_13 = arith.constant 0 : index
    %c0_14 = arith.constant 0 : index
    %26 = vector.load %arg7[%c0_13, %c0_14] : memref<8x1xf32, #tpu.memory_space<vmem>>, vector<8x1xf32>
    tpu.vector_store %arg7[%c0_13, %c0_14], %25 {strides = array<i32>} : memref<8x1xf32, #tpu.memory_space<vmem>>, vector<8x1xf32>,
    %27 = vector.shape_cast %20 : vector<8x8xf32> to vector<8x1x8xf32>
    "tpu.trace_start"() <{level = 10 : i32, message = "bqs,bsh->bqh"}> : () -> ()
    %cst_15 = arith.constant dense<0.000000e+00> : vector<8x1x32xf32>
    %28 = tpu.matmul %27, %3, %cst_15 {dimension_numbers = #tpu.dot_dimension_numbers<[2], [1], [1], [2], [0, 0, 0, 1, 1, 2], [0], [0]>, precision = #tpu.contract_precision<fp32>} : vector<8x1x8xf32>, vector<8x8x32xf32>, vector<8x1x32xf32> -> vector<8x1x32xf32>
    "tpu.trace_stop"() : () -> ()
    %c0_16 = arith.constant 0 : index
    %c0_17 = arith.constant 0 : index
    %29 = vector.load %arg8[%c0_16, %c0_17] : memref<8x32xf32, #tpu.memory_space<vmem>>, vector<8x32xf32>
    %30 = vector.broadcast %17 : vector<8x1xf32> to vector<8x32xf32>
    %31 = arith.mulf %30, %29 : vector<8x32xf32>
    %32 = vector.shape_cast %28 : vector<8x1x32xf32> to vector<8x32xf32>
    %33 = arith.addf %31, %32 : vector<8x32xf32>
    %c0_18 = arith.constant 0 : index
    %c0_19 = arith.constant 0 : index
    %34 = vector.load %arg8[%c0_18, %c0_19] : memref<8x32xf32, #tpu.memory_space<vmem>>, vector<8x32xf32>
    tpu.vector_store %arg8[%c0_18, %c0_19], %33 {strides = array<i32>} : memref<8x32xf32, #tpu.memory_space<vmem>>, vector<8x32xf32>,
    %c0_20 = arith.constant 0 : index
    %c0_21 = arith.constant 0 : index
    %35 = vector.load %arg6[%c0_20, %c0_21] : memref<8x1xf32, #tpu.memory_space<vmem>>, vector<8x1xf32>
    tpu.vector_store %arg6[%c0_20, %c0_21], %15 {strides = array<i32>} : memref<8x1xf32, #tpu.memory_space<vmem>>, vector<8x1xf32>,
    %c0_i32_22 = arith.constant 0 : i32
    %36 = arith.cmpi eq, %arg1, %c0_i32_22 : i32
    %37 = arith.extui %36 : i1 to i32
    %c0_i32_23 = arith.constant 0 : i32
    %38 = arith.cmpi ne, %37, %c0_i32_23 : i32
    scf.if %38 {
      %c0_24 = arith.constant 0 : index
      %c0_25 = arith.constant 0 : index
      %39 = vector.load %arg7[%c0_24, %c0_25] : memref<8x1xf32, #tpu.memory_space<vmem>>, vector<8x1xf32>
      %40 = tpu.reciprocal %39 : vector<8x1xf32> -> vector<8x1xf32>
      %c0_26 = arith.constant 0 : index
      %c0_27 = arith.constant 0 : index
      %41 = vector.load %arg8[%c0_26, %c0_27] : memref<8x32xf32, #tpu.memory_space<vmem>>, vector<8x32xf32>
      %42 = vector.broadcast %40 : vector<8x1xf32> to vector<8x32xf32>
      %43 = arith.mulf %41, %42 : vector<8x32xf32>
      %c0_28 = arith.constant 0 : index
      %c0_29 = arith.constant 0 : index
      %44 = vector.load %arg5[%c0_28, %c0_29] : memref<8x32xf32, #tpu.memory_space<vmem>>, vector<8x32xf32>
      tpu.vector_store %arg5[%c0_28, %c0_29], %43 {strides = array<i32>} : memref<8x32xf32, #tpu.memory_space<vmem>>, vector<8x32xf32>,
    } else {
    }
    return
  }
  func.func @transform_0(%arg0: i32, %arg1: i32) -> (i32, i32, i32) {
    %c0_i32 = arith.constant 0 : i32
    %c0_i32_0 = arith.constant 0 : i32
    return %arg0, %arg1, %c0_i32 : i32, i32, i32
  }
  func.func @transform_1(%arg0: i32, %arg1: i32) -> (i32, i32) {
    %c0_i32 = arith.constant 0 : i32
    %c0_i32_0 = arith.constant 0 : i32
    %c0_i32_1 = arith.constant 0 : i32
    return %c0_i32, %c0_i32_0 : i32, i32
  }
  func.func @transform_2(%arg0: i32, %arg1: i32) -> (i32, i32) {
    %c0_i32 = arith.constant 0 : i32
    %c0_i32_0 = arith.constant 0 : i32
    %c0_i32_1 = arith.constant 0 : i32
    return %c0_i32, %c0_i32_0 : i32, i32
  }
  func.func @transform_3(%arg0: i32, %arg1: i32) -> (i32, i32) {
    %c0_i32 = arith.constant 0 : i32
    %c0_i32_0 = arith.constant 0 : i32
    return %arg0, %c0_i32 : i32, i32
  }
}

</mosaic_0001>

<llo_original>
// kernel: tpu_custom_call.1
$region0: #{tpu_custom_call.1}
  #allocation0 [shape = 'u32[]', space=smem, size = 0x4, offset = 0x4, fixed_abs, tag = 'smem constant byte address 0x4 - core index']
  #allocation1 [shape = 'u32[144,128]{1,0:T(1,128)}', space=vmem, size = 0x12000, scoped, tag = 'internal scratch']
  #allocation2 [shape = 'f32[8,1]{1,0:T(8,128)}', space=vmem, size = 0x1000, scoped, tag = 'scratch operand']
  #allocation3 [shape = 'f32[8,1]{1,0:T(8,128)}', space=vmem, size = 0x1000, scoped, tag = 'scratch operand']
  #allocation4 [shape = 'f32[8,32]{1,0:T(8,128)}', space=vmem, size = 0x1000, scoped, tag = 'scratch operand']
  #allocation5 [shape = 'f32[1,1]{1,0:T(1,128)S(6)}', space=smem, size = 0x200, scoped, tag = 'scoped memory for tpu_custom_call.1']
  %s0 = inlined_call_operand.hbm [shape: f32[8,8,32], index: 0, kind: input, shape index: {}]
  %s1 = inlined_call_operand.vmem [shape: f32[1,32], index: 1, kind: input, shape index: {}]
  %s2 = inlined_call_operand.<no memory space> [shape: f32[1,1], index: 2, kind: input, shape index: {}]
  %s3 = inlined_call_operand.hbm [shape: f32[8,32], index: 3, kind: output, shape index: {}]
  %s4 = sld [smem:[#allocation0]]
  $region34: #{tpu_custom_call.1} parent=0
    _
  %s6 = ssub.s32 1, %s4
  %s7 = scalar_select 0, %s6, %s4
  %8 = sst [smem:[#allocation5]] %s2
  $region1: #{tpu_custom_call.1} parent=0
    #allocation6 [shape = 'u8[32768]{0}', space=vmem, size = 0x8000, scoped, tag = 'input window, operand 0, single buffered']
    #allocation7 [shape = 's32[1]{0}', space=sflag, size = 0x4, scoped, tag = 'scoped memory for tpu_custom_call.1']
    #allocation8 [shape = 's32[1]{0}', space=sflag, size = 0x4, scoped, tag = 'scoped memory for tpu_custom_call.1']
    #allocation9 [shape = 'u8[4096]{0}', space=vmem, size = 0x1000, scoped, tag = 'output window, operand 0, single buffered']
    %9 = vsyncpa [#allocation7], 0
    %10 = vsyncpa [#allocation8], 0
    // Predicated region
    $region2: #{tpu_custom_call.1} parent=1 // pred_check
      _
    $region3: #{tpu_custom_call.1} parent=1 // pred_check_branch
      %12 = sbr.rel (0) target = $region5
    $region4: #{tpu_custom_call.1} parent=1 // pred_region
      %s14 = ssub.s32 1024, 1024
      %15 = vsyncadd [#allocation7], %s14
      %s16 = sshll.u32 [#allocation6], 4
      %s17 = int_to_ptr.vmem [resolvable:$true] %s16
      %22 = dma.hbm_to_vmem [thread:$0]  %s0, 1024, %s17, [#allocation7], 128, 128, 8
    $region5: #{tpu_custom_call.1} parent=1 // pred_fallthru
      _
    // Predicated region
    $region6: #{tpu_custom_call.1} parent=1 // pred_check
      _
    $region7: #{tpu_custom_call.1} parent=1 // pred_check_branch
      %24 = sbr.rel (0) target = $region9
    $region8: #{tpu_custom_call.1} parent=1 // pred_region
      _
    $region9: #{tpu_custom_call.1} parent=1 // pred_fallthru
      _
    // Predicated region
    $region10: #{tpu_custom_call.1} parent=1 // pred_check
      _
    $region11: #{tpu_custom_call.1} parent=1 // pred_check_branch
      %26 = sbr.rel (0) target = $region13
    $region12: #{tpu_custom_call.1} parent=1 // pred_region
      _
    $region13: #{tpu_custom_call.1} parent=1 // pred_fallthru
      _
    // Predicated region
    $region14: #{tpu_custom_call.1} parent=1 // pred_check
      _
    $region15: #{tpu_custom_call.1} parent=1 // pred_check_branch
      %28 = sbr.rel (0) target = $region17
    $region16: #{tpu_custom_call.1} parent=1 // pred_region
      %29 = dma.done [#allocation7], 1024
    $region17: #{tpu_custom_call.1} parent=1 // pred_fallthru
      _
    %p30 = scmp.eq.s32.totalorder 0, 0
    // Predicated region
    $region18: #{tpu_custom_call.1} parent=1 // pred_check
      %p31 = pneg %p30
    $region19: #{tpu_custom_call.1} parent=1 // pred_check_branch
      %33 = sbr.rel (%p31) target = $region21
    $region20: #{tpu_custom_call.1} parent=1 // pred_region
      %vm34 = vcmask 7168
      %35 = vst.msk [vmem:[#allocation2] sm:$0xff] %vm34, -inf
      %36 = vst.msk [vmem:[#allocation3] sm:$0xff] %vm34, 0.0
      %vm37 = vcmask 261120
      %38 = vst.msk [vmem:[#allocation4] sm:$0xff] %vm37, 0.0
    $region21: #{tpu_custom_call.1} parent=1 // pred_fallthru
      _
    %v39 = vld [vmem:[#allocation6] sm:$0xff]
    %v40 = vld [vmem:[#allocation6 + $0x8] sm:$0xff]
    %v41 = vld [vmem:[#allocation6 + $0x10] sm:$0xff]
    %v42 = vld [vmem:[#allocation6 + $0x18] sm:$0xff]
    %v43 = vld [vmem:[#allocation6 + $0x20] sm:$0xff]
    %v44 = vld [vmem:[#allocation6 + $0x28] sm:$0xff]
    %v45 = vld [vmem:[#allocation6 + $0x30] sm:$0xff]
    %v46 = vld [vmem:[#allocation6 + $0x38] sm:$0xff]
    %v47 = vld [vmem:[%s1] sm:$0x1]
    %s48 = sld [smem:[#allocation5]]
    %v50 = vlaneseq
    %v51 = vshrl.u32 %v50, 7
    %v52 = vsub.s32 0, %v51
    %v53 = vrot.slane %v47, %v52
    %v55 = vmul.f32 %v39, %v53
    %v56 = vmul.f32 %v40, %v53
    %v57 = vmul.f32 %v41, %v53
    %v58 = vmul.f32 %v42, %v53
    %v59 = vmul.f32 %v43, %v53
    %v60 = vmul.f32 %v44, %v53
    %v61 = vmul.f32 %v45, %v53
    %v62 = vmul.f32 %v46, %v53
    %vm63 = vcmask 261120
    %v64 = vsel %vm63, %v55, 0.0
    %65 = vadd.xlane.f32.xlu0 %v64
    %v66 = vpop.xlane.xlu0 %65
    %v67 = vsel %vm63, %v56, 0.0
    %68 = vadd.xlane.f32.xlu0 %v67
    %v69 = vpop.xlane.xlu0 %68
    %v70 = vsel %vm63, %v57, 0.0
    %71 = vadd.xlane.f32.xlu0 %v70
    %v72 = vpop.xlane.xlu0 %71
    %v73 = vsel %vm63, %v58, 0.0
    %74 = vadd.xlane.f32.xlu0 %v73
    %v75 = vpop.xlane.xlu0 %74
    %v76 = vsel %vm63, %v59, 0.0
    %77 = vadd.xlane.f32.xlu0 %v76
    %v78 = vpop.xlane.xlu0 %77
    %v79 = vsel %vm63, %v60, 0.0
    %80 = vadd.xlane.f32.xlu0 %v79
    %v81 = vpop.xlane.xlu0 %80
    %v82 = vsel %vm63, %v61, 0.0
    %83 = vadd.xlane.f32.xlu0 %v82
    %v84 = vpop.xlane.xlu0 %83
    %v85 = vsel %vm63, %v62, 0.0
    %86 = vadd.xlane.f32.xlu0 %v85
    %v87 = vpop.xlane.xlu0 %86
    %v88 = vstv %s48
    %v89 = vadd.f32 %v66, %v88
    %v90 = vadd.f32 %v69, %v88
    %v91 = vadd.f32 %v72, %v88
    %v92 = vadd.f32 %v75, %v88
    %v93 = vadd.f32 %v78, %v88
    %v94 = vadd.f32 %v81, %v88
    %v95 = vadd.f32 %v84, %v88
    %v96 = vadd.f32 %v87, %v88
    %v97 = vld [vmem:[#allocation2] sm:$0xff]
    %v106 = vlaneseq
    %v107 = vand.u32 %v106, 127
    %v108 = vlaneseq
    %v109 = vshrl.u32 %v108, 7
    %v110 = vsub.s32 %v107, %v109
    %v111 = vrot.slane %v89, %v110
    %v112 = vlaneseq
    %v113 = vshrl.u32 %v112, 7
    %v114 = vsub.s32 %v107, %v113
    %v115 = vrot.slane %v90, %v114
    %v116 = vlaneseq
    %v117 = vshrl.u32 %v116, 7
    %v118 = vsub.s32 %v107, %v117
    %v119 = vrot.slane %v91, %v118
    %v120 = vlaneseq
    %v121 = vshrl.u32 %v120, 7
    %v122 = vsub.s32 %v107, %v121
    %v123 = vrot.slane %v92, %v122
    %v124 = vlaneseq
    %v125 = vshrl.u32 %v124, 7
    %v126 = vsub.s32 %v107, %v125
    %v127 = vrot.slane %v93, %v126
    %v128 = vlaneseq
    %v129 = vshrl.u32 %v128, 7
    %v130 = vsub.s32 %v107, %v129
    %v131 = vrot.slane %v94, %v130
    %v132 = vlaneseq
    %v133 = vshrl.u32 %v132, 7
    %v134 = vsub.s32 %v107, %v133
    %v135 = vrot.slane %v95, %v134
    %v136 = vlaneseq
    %v137 = vshrl.u32 %v136, 7
    %v138 = vsub.s32 %v107, %v137
    %v139 = vrot.slane %v96, %v138
    %vm140 = vcmask 1041409
    %v141 = vsel %vm140, %v115, %v111
    %vm142 = vcmask 1042434
    %v143 = vsel %vm142, %v119, %v141
    %vm144 = vcmask 1043459
    %v145 = vsel %vm144, %v123, %v143
    %vm146 = vcmask 1044484
    %v147 = vsel %vm146, %v127, %v145
    %vm148 = vcmask 1045509
    %v149 = vsel %vm148, %v131, %v147
    %vm150 = vcmask 1046534
    %v151 = vsel %vm150, %v135, %v149
    %vm152 = vcmask 1047559
    %v153 = vsel %vm152, %v139, %v151
    %vm155 = vcmask 64512
    %v156 = vsel %vm155, %v153, -inf
    %157 = vmax.xlane.f32.xlu0 %v156
    %v158 = vpop.xlane.xlu0 %157
    %v159 = vmax.f32 %v97, %v158
    %v160 = vsub.f32 %v97, %v159
    %v161 = vmul.f32 %v160, 1.442695
    %v162 = vpow.pop %v161
    %164 = vset.pattern.permute.xlu0 0
    %165 = vperm.xlu0 %164, %v159
    %v166 = vpop.permute.xlu0 %165
    %v167 = vlaneseq
    %v168 = vshrl.u32 %v167, 7
    %v169 = vsub.s32 0, %v168
    %v170 = vrot.slane %v166, %v169
    %v171 = vlaneseq
    %v172 = vshrl.u32 %v171, 7
    %v173 = vsub.s32 1, %v172
    %v174 = vrot.slane %v166, %v173
    %v175 = vlaneseq
    %v176 = vshrl.u32 %v175, 7
    %v177 = vsub.s32 2, %v176
    %v178 = vrot.slane %v166, %v177
    %v179 = vlaneseq
    %v180 = vshrl.u32 %v179, 7
    %v181 = vsub.s32 3, %v180
    %v182 = vrot.slane %v166, %v181
    %v183 = vlaneseq
    %v184 = vshrl.u32 %v183, 7
    %v185 = vsub.s32 4, %v184
    %v186 = vrot.slane %v166, %v185
    %v187 = vlaneseq
    %v188 = vshrl.u32 %v187, 7
    %v189 = vsub.s32 5, %v188
    %v190 = vrot.slane %v166, %v189
    %v191 = vlaneseq
    %v192 = vshrl.u32 %v191, 7
    %v193 = vsub.s32 6, %v192
    %v194 = vrot.slane %v166, %v193
    %v195 = vlaneseq
    %v196 = vshrl.u32 %v195, 7
    %v197 = vsub.s32 7, %v196
    %v198 = vrot.slane %v166, %v197
    %v207 = vsub.f32 %v89, %v170
    %v208 = vsub.f32 %v90, %v174
    %v209 = vsub.f32 %v91, %v178
    %v210 = vsub.f32 %v92, %v182
    %v211 = vsub.f32 %v93, %v186
    %v212 = vsub.f32 %v94, %v190
    %v213 = vsub.f32 %v95, %v194
    %v214 = vsub.f32 %v96, %v198
    %v215 = vmul.f32 %v207, 1.442695
    %v216 = vpow.pop %v215
    %v217 = vmul.f32 %v208, 1.442695
    %v218 = vpow.pop %v217
    %v219 = vmul.f32 %v209, 1.442695
    %v220 = vpow.pop %v219
    %v221 = vmul.f32 %v210, 1.442695
    %v222 = vpow.pop %v221
    %v223 = vmul.f32 %v211, 1.442695
    %v224 = vpow.pop %v223
    %v225 = vmul.f32 %v212, 1.442695
    %v226 = vpow.pop %v225
    %v227 = vmul.f32 %v213, 1.442695
    %v228 = vpow.pop %v227
    %v229 = vmul.f32 %v214, 1.442695
    %v230 = vpow.pop %v229
    %v231 = vld [vmem:[#allocation3] sm:$0xff]
    %v232 = vmul.f32 %v162, %v231
    %241 = vset.pattern.permute.xlu0 0
    %242 = vperm.xlu0 %241, %v216
    %v243 = vpop.permute.xlu0 %242
    %244 = vset.pattern.permute.xlu0 0
    %245 = vperm.xlu0 %244, %v218
    %v246 = vpop.permute.xlu0 %245
    %247 = vset.pattern.permute.xlu0 0
    %248 = vperm.xlu0 %247, %v220
    %v249 = vpop.permute.xlu0 %248
    %250 = vset.pattern.permute.xlu0 0
    %251 = vperm.xlu0 %250, %v222
    %v252 = vpop.permute.xlu0 %251
    %253 = vset.pattern.permute.xlu0 0
    %254 = vperm.xlu0 %253, %v224
    %v255 = vpop.permute.xlu0 %254
    %256 = vset.pattern.permute.xlu0 0
    %257 = vperm.xlu0 %256, %v226
    %v258 = vpop.permute.xlu0 %257
    %259 = vset.pattern.permute.xlu0 0
    %260 = vperm.xlu0 %259, %v228
    %v261 = vpop.permute.xlu0 %260
    %262 = vset.pattern.permute.xlu0 0
    %263 = vperm.xlu0 %262, %v230
    %v264 = vpop.permute.xlu0 %263
    %v265 = vlaneseq
    %v266 = vshrl.u32 %v265, 7
    %v267 = vsub.s32 %v107, %v266
    %v268 = vrot.slane %v243, %v267
    %v269 = vlaneseq
    %v270 = vshrl.u32 %v269, 7
    %v271 = vsub.s32 %v107, %v270
    %v272 = vrot.slane %v246, %v271
    %v273 = vlaneseq
    %v274 = vshrl.u32 %v273, 7
    %v275 = vsub.s32 %v107, %v274
    %v276 = vrot.slane %v249, %v275
    %v277 = vlaneseq
    %v278 = vshrl.u32 %v277, 7
    %v279 = vsub.s32 %v107, %v278
    %v280 = vrot.slane %v252, %v279
    %v281 = vlaneseq
    %v282 = vshrl.u32 %v281, 7
    %v283 = vsub.s32 %v107, %v282
    %v284 = vrot.slane %v255, %v283
    %v285 = vlaneseq
    %v286 = vshrl.u32 %v285, 7
    %v287 = vsub.s32 %v107, %v286
    %v288 = vrot.slane %v258, %v287
    %v289 = vlaneseq
    %v290 = vshrl.u32 %v289, 7
    %v291 = vsub.s32 %v107, %v290
    %v292 = vrot.slane %v261, %v291
    %v293 = vlaneseq
    %v294 = vshrl.u32 %v293, 7
    %v295 = vsub.s32 %v107, %v294
    %v296 = vrot.slane %v264, %v295
    %v297 = vsel %vm140, %v272, %v268
    %v298 = vsel %vm142, %v276, %v297
    %v299 = vsel %vm144, %v280, %v298
    %v300 = vsel %vm146, %v284, %v299
    %v301 = vsel %vm148, %v288, %v300
    %v302 = vsel %vm150, %v292, %v301
    %v303 = vsel %vm152, %v296, %v302
    %v305 = vsel %vm155, %v303, 0.0
    %306 = vadd.xlane.f32.xlu0 %v305
    %v307 = vpop.xlane.xlu0 %306
    %v308 = vadd.f32 %v232, %v307
    %vm309 = vcmask 7168
    %310 = vst.msk [vmem:[#allocation3] sm:$0xff] %vm309, %v308
    %v311 = vsel %vm155, %v268, 0
    %313 = vmatprep.subr.mxu0 0.0
    %314 = vmatpush1.msra.mxu0 0.0
    %315 = vmatprep.subr.mxu0 0.0
    %316 = vmatpush1.msra.mxu0 0.0
    %317 = vmatprep.subr.mxu0 0.0
    %318 = vmatpush1.msra.mxu0 0.0
    %319 = vmatprep.subr.mxu0 0.0
    %320 = vmatpush1.msra.mxu0 0.0
    %321 = vmatprep.subr.mxu0 0.0
    %322 = vmatpush1.msra.mxu0 0.0
    %323 = vmatprep.subr.mxu0 0.0
    %324 = vmatpush1.msra.mxu0 0.0
    %325 = vmatprep.subr.mxu0 0.0
    %326 = vmatpush1.msra.mxu0 0.0
    %327 = vmatprep.subr.mxu0 0.0
    %328 = vmatpush1.msra.mxu0 0.0
    %329 = vmatprep.subr.mxu0 0.0
    %330 = vmatpush1.msra.mxu0 0.0
    %331 = vmatprep.subr.mxu0 0.0
    %332 = vmatpush1.msra.mxu0 0.0
    %333 = vmatprep.subr.mxu0 0.0
    %334 = vmatpush1.msra.mxu0 0.0
    %335 = vmatprep.subr.mxu0 0.0
    %336 = vmatpush1.msra.mxu0 0.0
    %337 = vmatprep.subr.mxu0 0.0
    %338 = vmatpush1.msra.mxu0 0.0
    %339 = vmatprep.subr.mxu0 0.0
    %340 = vmatpush1.msra.mxu0 0.0
    %341 = vmatprep.subr.mxu0 0.0
    %342 = vmatpush1.msra.mxu0 0.0
    %343 = vmatprep.subr.mxu0 0.0
    %v344 = vand.u32 %v39, 4294901760
    %345 = vmatpush1.msra.mxu0 %v344
    %346 = vmatprep.subr.mxu0 0.0
    %347 = vmatpush2.msra.mxu0 0.0
    %348 = vmatprep.subr.mxu0 0.0
    %349 = vmatpush2.msra.mxu0 0.0
    %350 = vmatprep.subr.mxu0 0.0
    %351 = vmatpush2.msra.mxu0 0.0
    %352 = vmatprep.subr.mxu0 0.0
    %353 = vmatpush2.msra.mxu0 0.0
    %354 = vmatprep.subr.mxu0 0.0
    %355 = vmatpush2.msra.mxu0 0.0
    %356 = vmatprep.subr.mxu0 0.0
    %357 = vmatpush2.msra.mxu0 0.0
    %358 = vmatprep.subr.mxu0 0.0
    %359 = vmatpush2.msra.mxu0 0.0
    %360 = vmatprep.subr.mxu0 0.0
    %361 = vmatpush2.msra.mxu0 0.0
    %362 = vmatprep.subr.mxu0 0.0
    %363 = vmatpush2.msra.mxu0 0.0
    %364 = vmatprep.subr.mxu0 0.0
    %365 = vmatpush2.msra.mxu0 0.0
    %366 = vmatprep.subr.mxu0 0.0
    %367 = vmatpush2.msra.mxu0 0.0
    %368 = vmatprep.subr.mxu0 0.0
    %369 = vmatpush2.msra.mxu0 0.0
    %370 = vmatprep.subr.mxu0 0.0
    %371 = vmatpush2.msra.mxu0 0.0
    %372 = vmatprep.subr.mxu0 0.0
    %373 = vmatpush2.msra.mxu0 0.0
    %374 = vmatprep.subr.mxu0 0.0
    %375 = vmatpush2.msra.mxu0 0.0
    %376 = vmatprep.subr.mxu0 0.0
    %377 = vmatpush2.msra.mxu0 0.0
    %378 = vmatprep.mubr.f32.mxu0 0.0
    %v379 = vand.u32 %v311, 4294901760
    %v380 = vsub.f32 %v311, %v379
    %v381 = vand.u32 %v380, 4294901760
    %v382 = vsub.f32 %v380, %v381
    %v383 = vand.u32 %v382, 4294901760
    %384 = vmatmul.mubr.f32.gmra.mxu0 %v383
    %v385 = vpop.f32.mrf.mxu0
    %v386 = vadd.f32 0.0, %v385
    %v387 = vpop.f32.mrf.mxu0
    %388 = vdwg.mxu0
    %389 = vmatprep.subr.mxu0 0.0
    %390 = vmatpush1.msra.mxu0 0.0
    %391 = vmatprep.subr.mxu0 0.0
    %392 = vmatpush1.msra.mxu0 0.0
    %393 = vmatprep.subr.mxu0 0.0
    %394 = vmatpush1.msra.mxu0 0.0
    %395 = vmatprep.subr.mxu0 0.0
    %396 = vmatpush1.msra.mxu0 0.0
    %397 = vmatprep.subr.mxu0 0.0
    %398 = vmatpush1.msra.mxu0 0.0
    %399 = vmatprep.subr.mxu0 0.0
    %400 = vmatpush1.msra.mxu0 0.0
    %401 = vmatprep.subr.mxu0 0.0
    %402 = vmatpush1.msra.mxu0 0.0
    %403 = vmatprep.subr.mxu0 0.0
    %404 = vmatpush1.msra.mxu0 0.0
    %405 = vmatprep.subr.mxu0 0.0
    %406 = vmatpush1.msra.mxu0 0.0
    %407 = vmatprep.subr.mxu0 0.0
    %408 = vmatpush1.msra.mxu0 0.0
    %409 = vmatprep.subr.mxu0 0.0
    %410 = vmatpush1.msra.mxu0 0.0
    %411 = vmatprep.subr.mxu0 0.0
    %412 = vmatpush1.msra.mxu0 0.0
    %413 = vmatprep.subr.mxu0 0.0
    %414 = vmatpush1.msra.mxu0 0.0
    %415 = vmatprep.subr.mxu0 0.0
    %416 = vmatpush1.msra.mxu0 0.0
    %417 = vmatprep.subr.mxu0 0.0
    %418 = vmatpush1.msra.mxu0 0.0
    %419 = vmatprep.subr.mxu0 0.0
    %v420 = vand.u32 %v39, 4294901760
    %v421 = vsub.f32 %v39, %v420
    %v422 = vand.u32 %v421, 4294901760
    %v423 = vsub.f32 %v421, %v422
    %v424 = vand.u32 %v423, 4294901760
    %425 = vmatpush1.msra.mxu0 %v424
    %426 = vmatprep.subr.mxu0 0.0
    %427 = vmatpush2.msra.mxu0 0.0
    %428 = vmatprep.subr.mxu0 0.0
    %429 = vmatpush2.msra.mxu0 0.0
    %430 = vmatprep.subr.mxu0 0.0
    %431 = vmatpush2.msra.mxu0 0.0
    %432 = vmatprep.subr.mxu0 0.0
    %433 = vmatpush2.msra.mxu0 0.0
    %434 = vmatprep.subr.mxu0 0.0
    %435 = vmatpush2.msra.mxu0 0.0
    %436 = vmatprep.subr.mxu0 0.0
    %437 = vmatpush2.msra.mxu0 0.0
    %438 = vmatprep.subr.mxu0 0.0
    %439 = vmatpush2.msra.mxu0 0.0
    %440 = vmatprep.subr.mxu0 0.0
    %441 = vmatpush2.msra.mxu0 0.0
    %442 = vmatprep.subr.mxu0 0.0
    %443 = vmatpush2.msra.mxu0 0.0
    %444 = vmatprep.subr.mxu0 0.0
    %445 = vmatpush2.msra.mxu0 0.0
    %446 = vmatprep.subr.mxu0 0.0
    %447 = vmatpush2.msra.mxu0 0.0
    %448 = vmatprep.subr.mxu0 0.0
    %449 = vmatpush2.msra.mxu0 0.0
    %450 = vmatprep.subr.mxu0 0.0
    %451 = vmatpush2.msra.mxu0 0.0
    %452 = vmatprep.subr.mxu0 0.0
    %453 = vmatpush2.msra.mxu0 0.0
    %454 = vmatprep.subr.mxu0 0.0
    %455 = vmatpush2.msra.mxu0 0.0
    %456 = vmatprep.subr.mxu0 0.0
    %457 = vmatpush2.msra.mxu0 0.0
    %458 = vmatprep.mubr.f32.mxu0 0.0
    %v459 = vand.u32 %v311, 4294901760
    %460 = vmatmul.mubr.f32.gmra.mxu0 %v459
    %v461 = vpop.f32.mrf.mxu0
    %v462 = vadd.f32 %v386, %v461
    %v463 = vpop.f32.mrf.mxu0
    %464 = vdwg.mxu0
    %465 = vmatprep.subr.mxu0 0.0
    %466 = vmatpush1.msra.mxu0 0.0
    %467 = vmatprep.subr.mxu0 0.0
    %468 = vmatpush1.msra.mxu0 0.0
    %469 = vmatprep.subr.mxu0 0.0
    %470 = vmatpush1.msra.mxu0 0.0
    %471 = vmatprep.subr.mxu0 0.0
    %472 = vmatpush1.msra.mxu0 0.0
    %473 = vmatprep.subr.mxu0 0.0
    %474 = vmatpush1.msra.mxu0 0.0
    %475 = vmatprep.subr.mxu0 0.0
    %476 = vmatpush1.msra.mxu0 0.0
    %477 = vmatprep.subr.mxu0 0.0
    %478 = vmatpush1.msra.mxu0 0.0
    %479 = vmatprep.subr.mxu0 0.0
    %480 = vmatpush1.msra.mxu0 0.0
    %481 = vmatprep.subr.mxu0 0.0
    %482 = vmatpush1.msra.mxu0 0.0
    %483 = vmatprep.subr.mxu0 0.0
    %484 = vmatpush1.msra.mxu0 0.0
    %485 = vmatprep.subr.mxu0 0.0
    %486 = vmatpush1.msra.mxu0 0.0
    %487 = vmatprep.subr.mxu0 0.0
    %488 = vmatpush1.msra.mxu0 0.0
    %489 = vmatprep.subr.mxu0 0.0
    %490 = vmatpush1.msra.mxu0 0.0
    %491 = vmatprep.subr.mxu0 0.0
    %492 = vmatpush1.msra.mxu0 0.0
    %493 = vmatprep.subr.mxu0 0.0
    %494 = vmatpush1.msra.mxu0 0.0
    %495 = vmatprep.subr.mxu0 0.0
    %v496 = vand.u32 %v39, 4294901760
    %v497 = vsub.f32 %v39, %v496
    %498 = vmatpush1.msra.mxu0 %v497
    %499 = vmatprep.subr.mxu0 0.0
    %500 = vmatpush2.msra.mxu0 0.0
    %501 = vmatprep.subr.mxu0 0.0
    %502 = vmatpush2.msra.mxu0 0.0
    %503 = vmatprep.subr.mxu0 0.0
    %504 = vmatpush2.msra.mxu0 0.0
    %505 = vmatprep.subr.mxu0 0.0
    %506 = vmatpush2.msra.mxu0 0.0
    %507 = vmatprep.subr.mxu0 0.0
    %508 = vmatpush2.msra.mxu0 0.0
    %509 = vmatprep.subr.mxu0 0.0
    %510 = vmatpush2.msra.mxu0 0.0
    %511 = vmatprep.subr.mxu0 0.0
    %512 = vmatpush2.msra.mxu0 0.0
    %513 = vmatprep.subr.mxu0 0.0
    %514 = vmatpush2.msra.mxu0 0.0
    %515 = vmatprep.subr.mxu0 0.0
    %516 = vmatpush2.msra.mxu0 0.0
    %517 = vmatprep.subr.mxu0 0.0
    %518 = vmatpush2.msra.mxu0 0.0
    %519 = vmatprep.subr.mxu0 0.0
    %520 = vmatpush2.msra.mxu0 0.0
    %521 = vmatprep.subr.mxu0 0.0
    %522 = vmatpush2.msra.mxu0 0.0
    %523 = vmatprep.subr.mxu0 0.0
    %524 = vmatpush2.msra.mxu0 0.0
    %525 = vmatprep.subr.mxu0 0.0
    %526 = vmatpush2.msra.mxu0 0.0
    %527 = vmatprep.subr.mxu0 0.0
    %528 = vmatpush2.msra.mxu0 0.0
    %529 = vmatprep.subr.mxu0 0.0
    %530 = vmatpush2.msra.mxu0 0.0
    %531 = vmatprep.mubr.f32.mxu0 0.0
    %v532 = vand.u32 %v311, 4294901760
    %v533 = vsub.f32 %v311, %v532
    %534 = vmatmul.mubr.f32.gmra.mxu0 %v533
    %v535 = vpop.f32.mrf.mxu0
    %v536 = vadd.f32 %v462, %v535
    %v537 = vpop.f32.mrf.mxu0
    %538 = vdwg.mxu0
    %539 = vmatprep.subr.mxu0 0.0
    %540 = vmatpush1.msra.mxu0 0.0
    %541 = vmatprep.subr.mxu0 0.0
    %542 = vmatpush1.msra.mxu0 0.0
    %543 = vmatprep.subr.mxu0 0.0
    %544 = vmatpush1.msra.mxu0 0.0
    %545 = vmatprep.subr.mxu0 0.0
    %546 = vmatpush1.msra.mxu0 0.0
    %547 = vmatprep.subr.mxu0 0.0
    %548 = vmatpush1.msra.mxu0 0.0
    %549 = vmatprep.subr.mxu0 0.0
    %550 = vmatpush1.msra.mxu0 0.0
    %551 = vmatprep.subr.mxu0 0.0
    %552 = vmatpush1.msra.mxu0 0.0
    %553 = vmatprep.subr.mxu0 0.0
    %554 = vmatpush1.msra.mxu0 0.0
    %555 = vmatprep.subr.mxu0 0.0
    %556 = vmatpush1.msra.mxu0 0.0
    %557 = vmatprep.subr.mxu0 0.0
    %558 = vmatpush1.msra.mxu0 0.0
    %559 = vmatprep.subr.mxu0 0.0
    %560 = vmatpush1.msra.mxu0 0.0
    %561 = vmatprep.subr.mxu0 0.0
    %562 = vmatpush1.msra.mxu0 0.0
    %563 = vmatprep.subr.mxu0 0.0
    %564 = vmatpush1.msra.mxu0 0.0
    %565 = vmatprep.subr.mxu0 0.0
    %566 = vmatpush1.msra.mxu0 0.0
    %567 = vmatprep.subr.mxu0 0.0
    %568 = vmatpush1.msra.mxu0 0.0
    %569 = vmatprep.subr.mxu0 0.0
    %v570 = vand.u32 %v39, 4294901760
    %571 = vmatpush1.msra.mxu0 %v570
    %572 = vmatprep.subr.mxu0 0.0
    %573 = vmatpush2.msra.mxu0 0.0
    %574 = vmatprep.subr.mxu0 0.0
    %575 = vmatpush2.msra.mxu0 0.0
    %576 = vmatprep.subr.mxu0 0.0
    %577 = vmatpush2.msra.mxu0 0.0
    %578 = vmatprep.subr.mxu0 0.0
    %579 = vmatpush2.msra.mxu0 0.0
    %580 = vmatprep.subr.mxu0 0.0
    %581 = vmatpush2.msra.mxu0 0.0
    %582 = vmatprep.subr.mxu0 0.0
    %583 = vmatpush2.msra.mxu0 0.0
    %584 = vmatprep.subr.mxu0 0.0
    %585 = vmatpush2.msra.mxu0 0.0
    %586 = vmatprep.subr.mxu0 0.0
    %587 = vmatpush2.msra.mxu0 0.0
    %588 = vmatprep.subr.mxu0 0.0
    %589 = vmatpush2.msra.mxu0 0.0
    %590 = vmatprep.subr.mxu0 0.0
    %591 = vmatpush2.msra.mxu0 0.0
    %592 = vmatprep.subr.mxu0 0.0
    %593 = vmatpush2.msra.mxu0 0.0
    %594 = vmatprep.subr.mxu0 0.0
    %595 = vmatpush2.msra.mxu0 0.0
    %596 = vmatprep.subr.mxu0 0.0
    %597 = vmatpush2.msra.mxu0 0.0
    %598 = vmatprep.subr.mxu0 0.0
    %599 = vmatpush2.msra.mxu0 0.0
    %600 = vmatprep.subr.mxu0 0.0
    %601 = vmatpush2.msra.mxu0 0.0
    %602 = vmatprep.subr.mxu0 0.0
    %603 = vmatpush2.msra.mxu0 0.0
    %604 = vmatprep.mubr.f32.mxu0 0.0
    %v605 = vand.u32 %v311, 4294901760
    %v606 = vsub.f32 %v311, %v605
    %v607 = vand.u32 %v606, 4294901760
    %608 = vmatmul.mubr.f32.gmra.mxu0 %v607
    %v609 = vpop.f32.mrf.mxu0
    %v610 = vadd.f32 %v536, %v609
    %v611 = vpop.f32.mrf.mxu0
    %612 = vdwg.mxu0
    %613 = vmatprep.subr.mxu0 0.0
    %614 = vmatpush1.msra.mxu0 0.0
    %615 = vmatprep.subr.mxu0 0.0
    %616 = vmatpush1.msra.mxu0 0.0
    %617 = vmatprep.subr.mxu0 0.0
    %618 = vmatpush1.msra.mxu0 0.0
    %619 = vmatprep.subr.mxu0 0.0
    %620 = vmatpush1.msra.mxu0 0.0
    %621 = vmatprep.subr.mxu0 0.0
    %622 = vmatpush1.msra.mxu0 0.0
    %623 = vmatprep.subr.mxu0 0.0
    %624 = vmatpush1.msra.mxu0 0.0
    %625 = vmatprep.subr.mxu0 0.0
    %626 = vmatpush1.msra.mxu0 0.0
    %627 = vmatprep.subr.mxu0 0.0
    %628 = vmatpush1.msra.mxu0 0.0
    %629 = vmatprep.subr.mxu0 0.0
    %630 = vmatpush1.msra.mxu0 0.0
    %631 = vmatprep.subr.mxu0 0.0
    %632 = vmatpush1.msra.mxu0 0.0
    %633 = vmatprep.subr.mxu0 0.0
    %634 = vmatpush1.msra.mxu0 0.0
    %635 = vmatprep.subr.mxu0 0.0
    %636 = vmatpush1.msra.mxu0 0.0
    %637 = vmatprep.subr.mxu0 0.0
    %638 = vmatpush1.msra.mxu0 0.0
    %639 = vmatprep.subr.mxu0 0.0
    %640 = vmatpush1.msra.mxu0 0.0
    %641 = vmatprep.subr.mxu0 0.0
    %642 = vmatpush1.msra.mxu0 0.0
    %643 = vmatprep.subr.mxu0 0.0
    %v644 = vand.u32 %v39, 4294901760
    %v645 = vsub.f32 %v39, %v644
    %v646 = vand.u32 %v645, 4294901760
    %647 = vmatpush1.msra.mxu0 %v646
    %648 = vmatprep.subr.mxu0 0.0
    %649 = vmatpush2.msra.mxu0 0.0
    %650 = vmatprep.subr.mxu0 0.0
    %651 = vmatpush2.msra.mxu0 0.0
    %652 = vmatprep.subr.mxu0 0.0
    %653 = vmatpush2.msra.mxu0 0.0
    %654 = vmatprep.subr.mxu0 0.0
    %655 = vmatpush2.msra.mxu0 0.0
    %656 = vmatprep.subr.mxu0 0.0
    %657 = vmatpush2.msra.mxu0 0.0
    %658 = vmatprep.subr.mxu0 0.0
    %659 = vmatpush2.msra.mxu0 0.0
    %660 = vmatprep.subr.mxu0 0.0
    %661 = vmatpush2.msra.mxu0 0.0
    %662 = vmatprep.subr.mxu0 0.0
    %663 = vmatpush2.msra.mxu0 0.0
    %664 = vmatprep.subr.mxu0 0.0
    %665 = vmatpush2.msra.mxu0 0.0
    %666 = vmatprep.subr.mxu0 0.0
    %667 = vmatpush2.msra.mxu0 0.0
    %668 = vmatprep.subr.mxu0 0.0
    %669 = vmatpush2.msra.mxu0 0.0
    %670 = vmatprep.subr.mxu0 0.0
    %671 = vmatpush2.msra.mxu0 0.0
    %672 = vmatprep.subr.mxu0 0.0
    %673 = vmatpush2.msra.mxu0 0.0
    %674 = vmatprep.subr.mxu0 0.0
    %675 = vmatpush2.msra.mxu0 0.0
    %676 = vmatprep.subr.mxu0 0.0
    %677 = vmatpush2.msra.mxu0 0.0
    %678 = vmatprep.subr.mxu0 0.0
    %679 = vmatpush2.msra.mxu0 0.0
    %680 = vmatprep.mubr.f32.mxu0 0.0
    %v681 = vand.u32 %v311, 4294901760
    %682 = vmatmul.mubr.f32.gmra.mxu0 %v681
    %v683 = vpop.f32.mrf.mxu0
    %v684 = vadd.f32 %v610, %v683
    %v685 = vpop.f32.mrf.mxu0
    %686 = vdwg.mxu0
    %687 = vmatprep.subr.mxu0 0.0
    %688 = vmatpush1.msra.mxu0 0.0
    %689 = vmatprep.subr.mxu0 0.0
    %690 = vmatpush1.msra.mxu0 0.0
    %691 = vmatprep.subr.mxu0 0.0
    %692 = vmatpush1.msra.mxu0 0.0
    %693 = vmatprep.subr.mxu0 0.0
    %694 = vmatpush1.msra.mxu0 0.0
    %695 = vmatprep.subr.mxu0 0.0
    %696 = vmatpush1.msra.mxu0 0.0
    %697 = vmatprep.subr.mxu0 0.0
    %698 = vmatpush1.msra.mxu0 0.0
    %699 = vmatprep.subr.mxu0 0.0
    %700 = vmatpush1.msra.mxu0 0.0
    %701 = vmatprep.subr.mxu0 0.0
    %702 = vmatpush1.msra.mxu0 0.0
    %703 = vmatprep.subr.mxu0 0.0
    %704 = vmatpush1.msra.mxu0 0.0
    %705 = vmatprep.subr.mxu0 0.0
    %706 = vmatpush1.msra.mxu0 0.0
    %707 = vmatprep.subr.mxu0 0.0
    %708 = vmatpush1.msra.mxu0 0.0
    %709 = vmatprep.subr.mxu0 0.0
    %710 = vmatpush1.msra.mxu0 0.0
    %711 = vmatprep.subr.mxu0 0.0
    %712 = vmatpush1.msra.mxu0 0.0
    %713 = vmatprep.subr.mxu0 0.0
    %714 = vmatpush1.msra.mxu0 0.0
    %715 = vmatprep.subr.mxu0 0.0
    %716 = vmatpush1.msra.mxu0 0.0
    %717 = vmatprep.subr.mxu0 0.0
    %v718 = vand.u32 %v39, 4294901760
    %719 = vmatpush1.msra.mxu0 %v718
    %720 = vmatprep.subr.mxu0 0.0
    %721 = vmatpush2.msra.mxu0 0.0
    %722 = vmatprep.subr.mxu0 0.0
    %723 = vmatpush2.msra.mxu0 0.0
    %724 = vmatprep.subr.mxu0 0.0
    %725 = vmatpush2.msra.mxu0 0.0
    %726 = vmatprep.subr.mxu0 0.0
    %727 = vmatpush2.msra.mxu0 0.0
    %728 = vmatprep.subr.mxu0 0.0
    %729 = vmatpush2.msra.mxu0 0.0
    %730 = vmatprep.subr.mxu0 0.0
    %731 = vmatpush2.msra.mxu0 0.0
    %732 = vmatprep.subr.mxu0 0.0
    %733 = vmatpush2.msra.mxu0 0.0
    %734 = vmatprep.subr.mxu0 0.0
    %735 = vmatpush2.msra.mxu0 0.0
    %736 = vmatprep.subr.mxu0 0.0
    %737 = vmatpush2.msra.mxu0 0.0
    %738 = vmatprep.subr.mxu0 0.0
    %739 = vmatpush2.msra.mxu0 0.0
    %740 = vmatprep.subr.mxu0 0.0
    %741 = vmatpush2.msra.mxu0 0.0
    %742 = vmatprep.subr.mxu0 0.0
    %743 = vmatpush2.msra.mxu0 0.0
    %744 = vmatprep.subr.mxu0 0.0
    %745 = vmatpush2.msra.mxu0 0.0
    %746 = vmatprep.subr.mxu0 0.0
    %747 = vmatpush2.msra.mxu0 0.0
    %748 = vmatprep.subr.mxu0 0.0
    %749 = vmatpush2.msra.mxu0 0.0
    %750 = vmatprep.subr.mxu0 0.0
    %751 = vmatpush2.msra.mxu0 0.0
    %752 = vmatprep.mubr.f32.mxu0 0.0
    %v753 = vand.u32 %v311, 4294901760
    %754 = vmatmul.mubr.f32.gmra.mxu0 %v753
    %v755 = vpop.f32.mrf.mxu0
    %v756 = vadd.f32 %v684, %v755
    %v757 = vpop.f32.mrf.mxu0
    %758 = vdwg.mxu0
    %v759 = vsel %vm155, %v272, 0
    %761 = vmatprep.subr.mxu0 0.0
    %762 = vmatpush1.msra.mxu0 0.0
    %763 = vmatprep.subr.mxu0 0.0
    %764 = vmatpush1.msra.mxu0 0.0
    %765 = vmatprep.subr.mxu0 0.0
    %766 = vmatpush1.msra.mxu0 0.0
    %767 = vmatprep.subr.mxu0 0.0
    %768 = vmatpush1.msra.mxu0 0.0
    %769 = vmatprep.subr.mxu0 0.0
    %770 = vmatpush1.msra.mxu0 0.0
    %771 = vmatprep.subr.mxu0 0.0
    %772 = vmatpush1.msra.mxu0 0.0
    %773 = vmatprep.subr.mxu0 0.0
    %774 = vmatpush1.msra.mxu0 0.0
    %775 = vmatprep.subr.mxu0 0.0
    %776 = vmatpush1.msra.mxu0 0.0
    %777 = vmatprep.subr.mxu0 0.0
    %778 = vmatpush1.msra.mxu0 0.0
    %779 = vmatprep.subr.mxu0 0.0
    %780 = vmatpush1.msra.mxu0 0.0
    %781 = vmatprep.subr.mxu0 0.0
    %782 = vmatpush1.msra.mxu0 0.0
    %783 = vmatprep.subr.mxu0 0.0
    %784 = vmatpush1.msra.mxu0 0.0
    %785 = vmatprep.subr.mxu0 0.0
    %786 = vmatpush1.msra.mxu0 0.0
    %787 = vmatprep.subr.mxu0 0.0
    %788 = vmatpush1.msra.mxu0 0.0
    %789 = vmatprep.subr.mxu0 0.0
    %790 = vmatpush1.msra.mxu0 0.0
    %791 = vmatprep.subr.mxu0 0.0
    %v792 = vand.u32 %v40, 4294901760
    %793 = vmatpush1.msra.mxu0 %v792
    %794 = vmatprep.subr.mxu0 0.0
    %795 = vmatpush2.msra.mxu0 0.0
    %796 = vmatprep.subr.mxu0 0.0
    %797 = vmatpush2.msra.mxu0 0.0
    %798 = vmatprep.subr.mxu0 0.0
    %799 = vmatpush2.msra.mxu0 0.0
    %800 = vmatprep.subr.mxu0 0.0
    %801 = vmatpush2.msra.mxu0 0.0
    %802 = vmatprep.subr.mxu0 0.0
    %803 = vmatpush2.msra.mxu0 0.0
    %804 = vmatprep.subr.mxu0 0.0
    %805 = vmatpush2.msra.mxu0 0.0
    %806 = vmatprep.subr.mxu0 0.0
    %807 = vmatpush2.msra.mxu0 0.0
    %808 = vmatprep.subr.mxu0 0.0
    %809 = vmatpush2.msra.mxu0 0.0
    %810 = vmatprep.subr.mxu0 0.0
    %811 = vmatpush2.msra.mxu0 0.0
    %812 = vmatprep.subr.mxu0 0.0
    %813 = vmatpush2.msra.mxu0 0.0
    %814 = vmatprep.subr.mxu0 0.0
    %815 = vmatpush2.msra.mxu0 0.0
    %816 = vmatprep.subr.mxu0 0.0
    %817 = vmatpush2.msra.mxu0 0.0
    %818 = vmatprep.subr.mxu0 0.0
    %819 = vmatpush2.msra.mxu0 0.0
    %820 = vmatprep.subr.mxu0 0.0
    %821 = vmatpush2.msra.mxu0 0.0
    %822 = vmatprep.subr.mxu0 0.0
    %823 = vmatpush2.msra.mxu0 0.0
    %824 = vmatprep.subr.mxu0 0.0
    %825 = vmatpush2.msra.mxu0 0.0
    %826 = vmatprep.mubr.f32.mxu0 0.0
    %v827 = vand.u32 %v759, 4294901760
    %v828 = vsub.f32 %v759, %v827
    %v829 = vand.u32 %v828, 4294901760
    %v830 = vsub.f32 %v828, %v829
    %v831 = vand.u32 %v830, 4294901760
    %832 = vmatmul.mubr.f32.gmra.mxu0 %v831
    %v833 = vpop.f32.mrf.mxu0
    %v834 = vadd.f32 0.0, %v833
    %v835 = vpop.f32.mrf.mxu0
    %836 = vdwg.mxu0
    %837 = vmatprep.subr.mxu0 0.0
    %838 = vmatpush1.msra.mxu0 0.0
    %839 = vmatprep.subr.mxu0 0.0
    %840 = vmatpush1.msra.mxu0 0.0
    %841 = vmatprep.subr.mxu0 0.0
    %842 = vmatpush1.msra.mxu0 0.0
    %843 = vmatprep.subr.mxu0 0.0
    %844 = vmatpush1.msra.mxu0 0.0
    %845 = vmatprep.subr.mxu0 0.0
    %846 = vmatpush1.msra.mxu0 0.0
    %847 = vmatprep.subr.mxu0 0.0
    %848 = vmatpush1.msra.mxu0 0.0
    %849 = vmatprep.subr.mxu0 0.0
    %850 = vmatpush1.msra.mxu0 0.0
    %851 = vmatprep.subr.mxu0 0.0
    %852 = vmatpush1.msra.mxu0 0.0
    %853 = vmatprep.subr.mxu0 0.0
    %854 = vmatpush1.msra.mxu0 0.0
    %855 = vmatprep.subr.mxu0 0.0
    %856 = vmatpush1.msra.mxu0 0.0
    %857 = vmatprep.subr.mxu0 0.0
    %858 = vmatpush1.msra.mxu0 0.0
    %859 = vmatprep.subr.mxu0 0.0
    %860 = vmatpush1.msra.mxu0 0.0
    %861 = vmatprep.subr.mxu0 0.0
    %862 = vmatpush1.msra.mxu0 0.0
    %863 = vmatprep.subr.mxu0 0.0
    %864 = vmatpush1.msra.mxu0 0.0
    %865 = vmatprep.subr.mxu0 0.0
    %866 = vmatpush1.msra.mxu0 0.0
    %867 = vmatprep.subr.mxu0 0.0
    %v868 = vand.u32 %v40, 4294901760
    %v869 = vsub.f32 %v40, %v868
    %v870 = vand.u32 %v869, 4294901760
    %v871 = vsub.f32 %v869, %v870
    %v872 = vand.u32 %v871, 4294901760
    %873 = vmatpush1.msra.mxu0 %v872
    %874 = vmatprep.subr.mxu0 0.0
    %875 = vmatpush2.msra.mxu0 0.0
    %876 = vmatprep.subr.mxu0 0.0
    %877 = vmatpush2.msra.mxu0 0.0
    %878 = vmatprep.subr.mxu0 0.0
    %879 = vmatpush2.msra.mxu0 0.0
    %880 = vmatprep.subr.mxu0 0.0
    %881 = vmatpush2.msra.mxu0 0.0
    %882 = vmatprep.subr.mxu0 0.0
    %883 = vmatpush2.msra.mxu0 0.0
    %884 = vmatprep.subr.mxu0 0.0
    %885 = vmatpush2.msra.mxu0 0.0
    %886 = vmatprep.subr.mxu0 0.0
    %887 = vmatpush2.msra.mxu0 0.0
    %888 = vmatprep.subr.mxu0 0.0
    %889 = vmatpush2.msra.mxu0 0.0
    %890 = vmatprep.subr.mxu0 0.0
    %891 = vmatpush2.msra.mxu0 0.0
    %892 = vmatprep.subr.mxu0 0.0
    %893 = vmatpush2.msra.mxu0 0.0
    %894 = vmatprep.subr.mxu0 0.0
    %895 = vmatpush2.msra.mxu0 0.0
    %896 = vmatprep.subr.mxu0 0.0
    %897 = vmatpush2.msra.mxu0 0.0
    %898 = vmatprep.subr.mxu0 0.0
    %899 = vmatpush2.msra.mxu0 0.0
    %900 = vmatprep.subr.mxu0 0.0
    %901 = vmatpush2.msra.mxu0 0.0
    %902 = vmatprep.subr.mxu0 0.0
    %903 = vmatpush2.msra.mxu0 0.0
    %904 = vmatprep.subr.mxu0 0.0
    %905 = vmatpush2.msra.mxu0 0.0
    %906 = vmatprep.mubr.f32.mxu0 0.0
    %v907 = vand.u32 %v759, 4294901760
    %908 = vmatmul.mubr.f32.gmra.mxu0 %v907
    %v909 = vpop.f32.mrf.mxu0
    %v910 = vadd.f32 %v834, %v909
    %v911 = vpop.f32.mrf.mxu0
    %912 = vdwg.mxu0
    %913 = vmatprep.subr.mxu0 0.0
    %914 = vmatpush1.msra.mxu0 0.0
    %915 = vmatprep.subr.mxu0 0.0
    %916 = vmatpush1.msra.mxu0 0.0
    %917 = vmatprep.subr.mxu0 0.0
    %918 = vmatpush1.msra.mxu0 0.0
    %919 = vmatprep.subr.mxu0 0.0
    %920 = vmatpush1.msra.mxu0 0.0
    %921 = vmatprep.subr.mxu0 0.0
    %922 = vmatpush1.msra.mxu0 0.0
    %923 = vmatprep.subr.mxu0 0.0
    %924 = vmatpush1.msra.mxu0 0.0
    %925 = vmatprep.subr.mxu0 0.0
    %926 = vmatpush1.msra.mxu0 0.0
    %927 = vmatprep.subr.mxu0 0.0
    %928 = vmatpush1.msra.mxu0 0.0
    %929 = vmatprep.subr.mxu0 0.0
    %930 = vmatpush1.msra.mxu0 0.0
    %931 = vmatprep.subr.mxu0 0.0
    %932 = vmatpush1.msra.mxu0 0.0
    %933 = vmatprep.subr.mxu0 0.0
    %934 = vmatpush1.msra.mxu0 0.0
    %935 = vmatprep.subr.mxu0 0.0
    %936 = vmatpush1.msra.mxu0 0.0
    %937 = vmatprep.subr.mxu0 0.0
    %938 = vmatpush1.msra.mxu0 0.0
    %939 = vmatprep.subr.mxu0 0.0
    %940 = vmatpush1.msra.mxu0 0.0
    %941 = vmatprep.subr.mxu0 0.0
    %942 = vmatpush1.msra.mxu0 0.0
    %943 = vmatprep.subr.mxu0 0.0
    %v944 = vand.u32 %v40, 4294901760
    %v945 = vsub.f32 %v40, %v944
    %946 = vmatpush1.msra.mxu0 %v945
    %947 = vmatprep.subr.mxu0 0.0
    %948 = vmatpush2.msra.mxu0 0.0
    %949 = vmatprep.subr.mxu0 0.0
    %950 = vmatpush2.msra.mxu0 0.0
    %951 = vmatprep.subr.mxu0 0.0
    %952 = vmatpush2.msra.mxu0 0.0
    %953 = vmatprep.subr.mxu0 0.0
    %954 = vmatpush2.msra.mxu0 0.0
    %955 = vmatprep.subr.mxu0 0.0
    %956 = vmatpush2.msra.mxu0 0.0
    %957 = vmatprep.subr.mxu0 0.0
    %958 = vmatpush2.msra.mxu0 0.0
    %959 = vmatprep.subr.mxu0 0.0
    %960 = vmatpush2.msra.mxu0 0.0
    %961 = vmatprep.subr.mxu0 0.0
    %962 = vmatpush2.msra.mxu0 0.0
    %963 = vmatprep.subr.mxu0 0.0
    %964 = vmatpush2.msra.mxu0 0.0
    %965 = vmatprep.subr.mxu0 0.0
    %966 = vmatpush2.msra.mxu0 0.0
    %967 = vmatprep.subr.mxu0 0.0
    %968 = vmatpush2.msra.mxu0 0.0
    %969 = vmatprep.subr.mxu0 0.0
    %970 = vmatpush2.msra.mxu0 0.0
    %971 = vmatprep.subr.mxu0 0.0
    %972 = vmatpush2.msra.mxu0 0.0
    %973 = vmatprep.subr.mxu0 0.0
    %974 = vmatpush2.msra.mxu0 0.0
    %975 = vmatprep.subr.mxu0 0.0
    %976 = vmatpush2.msra.mxu0 0.0
    %977 = vmatprep.subr.mxu0 0.0
    %978 = vmatpush2.msra.mxu0 0.0
    %979 = vmatprep.mubr.f32.mxu0 0.0
    %v980 = vand.u32 %v759, 4294901760
    %v981 = vsub.f32 %v759, %v980
    %982 = vmatmul.mubr.f32.gmra.mxu0 %v981
    %v983 = vpop.f32.mrf.mxu0
    %v984 = vadd.f32 %v910, %v983
    %v985 = vpop.f32.mrf.mxu0
    %986 = vdwg.mxu0
    %987 = vmatprep.subr.mxu0 0.0
    %988 = vmatpush1.msra.mxu0 0.0
    %989 = vmatprep.subr.mxu0 0.0
    %990 = vmatpush1.msra.mxu0 0.0
    %991 = vmatprep.subr.mxu0 0.0
    %992 = vmatpush1.msra.mxu0 0.0
    %993 = vmatprep.subr.mxu0 0.0
    %994 = vmatpush1.msra.mxu0 0.0
    %995 = vmatprep.subr.mxu0 0.0
    %996 = vmatpush1.msra.mxu0 0.0
    %997 = vmatprep.subr.mxu0 0.0
    %998 = vmatpush1.msra.mxu0 0.0
    %999 = vmatprep.subr.mxu0 0.0
    %1000 = vmatpush1.msra.mxu0 0.0
    %1001 = vmatprep.subr.mxu0 0.0
    %1002 = vmatpush1.msra.mxu0 0.0
    %1003 = vmatprep.subr.mxu0 0.0
    %1004 = vmatpush1.msra.mxu0 0.0
    %1005 = vmatprep.subr.mxu0 0.0
    %1006 = vmatpush1.msra.mxu0 0.0
    %1007 = vmatprep.subr.mxu0 0.0
    %1008 = vmatpush1.msra.mxu0 0.0
    %1009 = vmatprep.subr.mxu0 0.0
    %1010 = vmatpush1.msra.mxu0 0.0
    %1011 = vmatprep.subr.mxu0 0.0
    %1012 = vmatpush1.msra.mxu0 0.0
    %1013 = vmatprep.subr.mxu0 0.0
    %1014 = vmatpush1.msra.mxu0 0.0
    %1015 = vmatprep.subr.mxu0 0.0
    %1016 = vmatpush1.msra.mxu0 0.0
    %1017 = vmatprep.subr.mxu0 0.0
    %v1018 = vand.u32 %v40, 4294901760
    %1019 = vmatpush1.msra.mxu0 %v1018
    %1020 = vmatprep.subr.mxu0 0.0
    %1021 = vmatpush2.msra.mxu0 0.0
    %1022 = vmatprep.subr.mxu0 0.0
    %1023 = vmatpush2.msra.mxu0 0.0
    %1024 = vmatprep.subr.mxu0 0.0
    %1025 = vmatpush2.msra.mxu0 0.0
    %1026 = vmatprep.subr.mxu0 0.0
    %1027 = vmatpush2.msra.mxu0 0.0
    %1028 = vmatprep.subr.mxu0 0.0
    %1029 = vmatpush2.msra.mxu0 0.0
    %1030 = vmatprep.subr.mxu0 0.0
    %1031 = vmatpush2.msra.mxu0 0.0
    %1032 = vmatprep.subr.mxu0 0.0
    %1033 = vmatpush2.msra.mxu0 0.0
    %1034 = vmatprep.subr.mxu0 0.0
    %1035 = vmatpush2.msra.mxu0 0.0
    %1036 = vmatprep.subr.mxu0 0.0
    %1037 = vmatpush2.msra.mxu0 0.0
    %1038 = vmatprep.subr.mxu0 0.0
    %1039 = vmatpush2.msra.mxu0 0.0
    %1040 = vmatprep.subr.mxu0 0.0
    %1041 = vmatpush2.msra.mxu0 0.0
    %1042 = vmatprep.subr.mxu0 0.0
    %1043 = vmatpush2.msra.mxu0 0.0
    %1044 = vmatprep.subr.mxu0 0.0
    %1045 = vmatpush2.msra.mxu0 0.0
    %1046 = vmatprep.subr.mxu0 0.0
    %1047 = vmatpush2.msra.mxu0 0.0
    %1048 = vmatprep.subr.mxu0 0.0
    %1049 = vmatpush2.msra.mxu0 0.0
    %1050 = vmatprep.subr.mxu0 0.0
    %1051 = vmatpush2.msra.mxu0 0.0
    %1052 = vmatprep.mubr.f32.mxu0 0.0
    %v1053 = vand.u32 %v759, 4294901760
    %v1054 = vsub.f32 %v759, %v1053
    %v1055 = vand.u32 %v1054, 4294901760
    %1056 = vmatmul.mubr.f32.gmra.mxu0 %v1055
    %v1057 = vpop.f32.mrf.mxu0
    %v1058 = vadd.f32 %v984, %v1057
    %v1059 = vpop.f32.mrf.mxu0
    %1060 = vdwg.mxu0
    %1061 = vmatprep.subr.mxu0 0.0
    %1062 = vmatpush1.msra.mxu0 0.0
    %1063 = vmatprep.subr.mxu0 0.0
    %1064 = vmatpush1.msra.mxu0 0.0
    %1065 = vmatprep.subr.mxu0 0.0
    %1066 = vmatpush1.msra.mxu0 0.0
    %1067 = vmatprep.subr.mxu0 0.0
    %1068 = vmatpush1.msra.mxu0 0.0
    %1069 = vmatprep.subr.mxu0 0.0
    %1070 = vmatpush1.msra.mxu0 0.0
    %1071 = vmatprep.subr.mxu0 0.0
    %1072 = vmatpush1.msra.mxu0 0.0
    %1073 = vmatprep.subr.mxu0 0.0
    %1074 = vmatpush1.msra.mxu0 0.0
    %1075 = vmatprep.subr.mxu0 0.0
    %1076 = vmatpush1.msra.mxu0 0.0
    %1077 = vmatprep.subr.mxu0 0.0
    %1078 = vmatpush1.msra.mxu0 0.0
    %1079 = vmatprep.subr.mxu0 0.0
    %1080 = vmatpush1.msra.mxu0 0.0
    %1081 = vmatprep.subr.mxu0 0.0
    %1082 = vmatpush1.msra.mxu0 0.0
    %1083 = vmatprep.subr.mxu0 0.0
    %1084 = vmatpush1.msra.mxu0 0.0
    %1085 = vmatprep.subr.mxu0 0.0
    %1086 = vmatpush1.msra.mxu0 0.0
    %1087 = vmatprep.subr.mxu0 0.0
    %1088 = vmatpush1.msra.mxu0 0.0
    %1089 = vmatprep.subr.mxu0 0.0
    %1090 = vmatpush1.msra.mxu0 0.0
    %1091 = vmatprep.subr.mxu0 0.0
    %v1092 = vand.u32 %v40, 4294901760
    %v1093 = vsub.f32 %v40, %v1092
    %v1094 = vand.u32 %v1093, 4294901760
    %1095 = vmatpush1.msra.mxu0 %v1094
    %1096 = vmatprep.subr.mxu0 0.0
    %1097 = vmatpush2.msra.mxu0 0.0
    %1098 = vmatprep.subr.mxu0 0.0
    %1099 = vmatpush2.msra.mxu0 0.0
    %1100 = vmatprep.subr.mxu0 0.0
    %1101 = vmatpush2.msra.mxu0 0.0
    %1102 = vmatprep.subr.mxu0 0.0
    %1103 = vmatpush2.msra.mxu0 0.0
    %1104 = vmatprep.subr.mxu0 0.0
    %1105 = vmatpush2.msra.mxu0 0.0
    %1106 = vmatprep.subr.mxu0 0.0
    %1107 = vmatpush2.msra.mxu0 0.0
    %1108 = vmatprep.subr.mxu0 0.0
    %1109 = vmatpush2.msra.mxu0 0.0
    %1110 = vmatprep.subr.mxu0 0.0
    %1111 = vmatpush2.msra.mxu0 0.0
    %1112 = vmatprep.subr.mxu0 0.0
    %1113 = vmatpush2.msra.mxu0 0.0
    %1114 = vmatprep.subr.mxu0 0.0
    %1115 = vmatpush2.msra.mxu0 0.0
    %1116 = vmatprep.subr.mxu0 0.0
    %1117 = vmatpush2.msra.mxu0 0.0
    %1118 = vmatprep.subr.mxu0 0.0
    %1119 = vmatpush2.msra.mxu0 0.0
    %1120 = vmatprep.subr.mxu0 0.0
    %1121 = vmatpush2.msra.mxu0 0.0
    %1122 = vmatprep.subr.mxu0 0.0
    %1123 = vmatpush2.msra.mxu0 0.0
    %1124 = vmatprep.subr.mxu0 0.0
    %1125 = vmatpush2.msra.mxu0 0.0
    %1126 = vmatprep.subr.mxu0 0.0
    %1127 = vmatpush2.msra.mxu0 0.0
    %1128 = vmatprep.mubr.f32.mxu0 0.0
    %v1129 = vand.u32 %v759, 4294901760
    %1130 = vmatmul.mubr.f32.gmra.mxu0 %v1129
    %v1131 = vpop.f32.mrf.mxu0
    %v1132 = vadd.f32 %v1058, %v1131
    %v1133 = vpop.f32.mrf.mxu0
    %1134 = vdwg.mxu0
    %1135 = vmatprep.subr.mxu0 0.0
    %1136 = vmatpush1.msra.mxu0 0.0
    %1137 = vmatprep.subr.mxu0 0.0
    %1138 = vmatpush1.msra.mxu0 0.0
    %1139 = vmatprep.subr.mxu0 0.0
    %1140 = vmatpush1.msra.mxu0 0.0
    %1141 = vmatprep.subr.mxu0 0.0
    %1142 = vmatpush1.msra.mxu0 0.0
    %1143 = vmatprep.subr.mxu0 0.0
    %1144 = vmatpush1.msra.mxu0 0.0
    %1145 = vmatprep.subr.mxu0 0.0
    %1146 = vmatpush1.msra.mxu0 0.0
    %1147 = vmatprep.subr.mxu0 0.0
    %1148 = vmatpush1.msra.mxu0 0.0
    %1149 = vmatprep.subr.mxu0 0.0
    %1150 = vmatpush1.msra.mxu0 0.0
    %1151 = vmatprep.subr.mxu0 0.0
    %1152 = vmatpush1.msra.mxu0 0.0
    %1153 = vmatprep.subr.mxu0 0.0
    %1154 = vmatpush1.msra.mxu0 0.0
    %1155 = vmatprep.subr.mxu0 0.0
    %1156 = vmatpush1.msra.mxu0 0.0
    %1157 = vmatprep.subr.mxu0 0.0
    %1158 = vmatpush1.msra.mxu0 0.0
    %1159 = vmatprep.subr.mxu0 0.0
    %1160 = vmatpush1.msra.mxu0 0.0
    %1161 = vmatprep.subr.mxu0 0.0
    %1162 = vmatpush1.msra.mxu0 0.0
    %1163 = vmatprep.subr.mxu0 0.0
    %1164 = vmatpush1.msra.mxu0 0.0
    %1165 = vmatprep.subr.mxu0 0.0
    %v1166 = vand.u32 %v40, 4294901760
    %1167 = vmatpush1.msra.mxu0 %v1166
    %1168 = vmatprep.subr.mxu0 0.0
    %1169 = vmatpush2.msra.mxu0 0.0
    %1170 = vmatprep.subr.mxu0 0.0
    %1171 = vmatpush2.msra.mxu0 0.0
    %1172 = vmatprep.subr.mxu0 0.0
    %1173 = vmatpush2.msra.mxu0 0.0
    %1174 = vmatprep.subr.mxu0 0.0
    %1175 = vmatpush2.msra.mxu0 0.0
    %1176 = vmatprep.subr.mxu0 0.0
    %1177 = vmatpush2.msra.mxu0 0.0
    %1178 = vmatprep.subr.mxu0 0.0
    %1179 = vmatpush2.msra.mxu0 0.0
    %1180 = vmatprep.subr.mxu0 0.0
    %1181 = vmatpush2.msra.mxu0 0.0
    %1182 = vmatprep.subr.mxu0 0.0
    %1183 = vmatpush2.msra.mxu0 0.0
    %1184 = vmatprep.subr.mxu0 0.0
    %1185 = vmatpush2.msra.mxu0 0.0
    %1186 = vmatprep.subr.mxu0 0.0
    %1187 = vmatpush2.msra.mxu0 0.0
    %1188 = vmatprep.subr.mxu0 0.0
    %1189 = vmatpush2.msra.mxu0 0.0
    %1190 = vmatprep.subr.mxu0 0.0
    %1191 = vmatpush2.msra.mxu0 0.0
    %1192 = vmatprep.subr.mxu0 0.0
    %1193 = vmatpush2.msra.mxu0 0.0
    %1194 = vmatprep.subr.mxu0 0.0
    %1195 = vmatpush2.msra.mxu0 0.0
    %1196 = vmatprep.subr.mxu0 0.0
    %1197 = vmatpush2.msra.mxu0 0.0
    %1198 = vmatprep.subr.mxu0 0.0
    %1199 = vmatpush2.msra.mxu0 0.0
    %1200 = vmatprep.mubr.f32.mxu0 0.0
    %v1201 = vand.u32 %v759, 4294901760
    %1202 = vmatmul.mubr.f32.gmra.mxu0 %v1201
    %v1203 = vpop.f32.mrf.mxu0
    %v1204 = vadd.f32 %v1132, %v1203
    %v1205 = vpop.f32.mrf.mxu0
    %1206 = vdwg.mxu0
    %v1207 = vsel %vm155, %v276, 0
    %1209 = vmatprep.subr.mxu0 0.0
    %1210 = vmatpush1.msra.mxu0 0.0
    %1211 = vmatprep.subr.mxu0 0.0
    %1212 = vmatpush1.msra.mxu0 0.0
    %1213 = vmatprep.subr.mxu0 0.0
    %1214 = vmatpush1.msra.mxu0 0.0
    %1215 = vmatprep.subr.mxu0 0.0
    %1216 = vmatpush1.msra.mxu0 0.0
    %1217 = vmatprep.subr.mxu0 0.0
    %1218 = vmatpush1.msra.mxu0 0.0
    %1219 = vmatprep.subr.mxu0 0.0
    %1220 = vmatpush1.msra.mxu0 0.0
    %1221 = vmatprep.subr.mxu0 0.0
    %1222 = vmatpush1.msra.mxu0 0.0
    %1223 = vmatprep.subr.mxu0 0.0
    %1224 = vmatpush1.msra.mxu0 0.0
    %1225 = vmatprep.subr.mxu0 0.0
    %1226 = vmatpush1.msra.mxu0 0.0
    %1227 = vmatprep.subr.mxu0 0.0
    %1228 = vmatpush1.msra.mxu0 0.0
    %1229 = vmatprep.subr.mxu0 0.0
    %1230 = vmatpush1.msra.mxu0 0.0
    %1231 = vmatprep.subr.mxu0 0.0
    %1232 = vmatpush1.msra.mxu0 0.0
    %1233 = vmatprep.subr.mxu0 0.0
    %1234 = vmatpush1.msra.mxu0 0.0
    %1235 = vmatprep.subr.mxu0 0.0
    %1236 = vmatpush1.msra.mxu0 0.0
    %1237 = vmatprep.subr.mxu0 0.0
    %1238 = vmatpush1.msra.mxu0 0.0
    %1239 = vmatprep.subr.mxu0 0.0
    %v1240 = vand.u32 %v41, 4294901760
    %1241 = vmatpush1.msra.mxu0 %v1240
    %1242 = vmatprep.subr.mxu0 0.0
    %1243 = vmatpush2.msra.mxu0 0.0
    %1244 = vmatprep.subr.mxu0 0.0
    %1245 = vmatpush2.msra.mxu0 0.0
    %1246 = vmatprep.subr.mxu0 0.0
    %1247 = vmatpush2.msra.mxu0 0.0
    %1248 = vmatprep.subr.mxu0 0.0
    %1249 = vmatpush2.msra.mxu0 0.0
    %1250 = vmatprep.subr.mxu0 0.0
    %1251 = vmatpush2.msra.mxu0 0.0
    %1252 = vmatprep.subr.mxu0 0.0
    %1253 = vmatpush2.msra.mxu0 0.0
    %1254 = vmatprep.subr.mxu0 0.0
    %1255 = vmatpush2.msra.mxu0 0.0
    %1256 = vmatprep.subr.mxu0 0.0
    %1257 = vmatpush2.msra.mxu0 0.0
    %1258 = vmatprep.subr.mxu0 0.0
    %1259 = vmatpush2.msra.mxu0 0.0
    %1260 = vmatprep.subr.mxu0 0.0
    %1261 = vmatpush2.msra.mxu0 0.0
    %1262 = vmatprep.subr.mxu0 0.0
    %1263 = vmatpush2.msra.mxu0 0.0
    %1264 = vmatprep.subr.mxu0 0.0
    %1265 = vmatpush2.msra.mxu0 0.0
    %1266 = vmatprep.subr.mxu0 0.0
    %1267 = vmatpush2.msra.mxu0 0.0
    %1268 = vmatprep.subr.mxu0 0.0
    %1269 = vmatpush2.msra.mxu0 0.0
    %1270 = vmatprep.subr.mxu0 0.0
    %1271 = vmatpush2.msra.mxu0 0.0
    %1272 = vmatprep.subr.mxu0 0.0
    %1273 = vmatpush2.msra.mxu0 0.0
    %1274 = vmatprep.mubr.f32.mxu0 0.0
    %v1275 = vand.u32 %v1207, 4294901760
    %v1276 = vsub.f32 %v1207, %v1275
    %v1277 = vand.u32 %v1276, 4294901760
    %v1278 = vsub.f32 %v1276, %v1277
    %v1279 = vand.u32 %v1278, 4294901760
    %1280 = vmatmul.mubr.f32.gmra.mxu0 %v1279
    %v1281 = vpop.f32.mrf.mxu0
    %v1282 = vadd.f32 0.0, %v1281
    %v1283 = vpop.f32.mrf.mxu0
    %1284 = vdwg.mxu0
    %1285 = vmatprep.subr.mxu0 0.0
    %1286 = vmatpush1.msra.mxu0 0.0
    %1287 = vmatprep.subr.mxu0 0.0
    %1288 = vmatpush1.msra.mxu0 0.0
    %1289 = vmatprep.subr.mxu0 0.0
    %1290 = vmatpush1.msra.mxu0 0.0
    %1291 = vmatprep.subr.mxu0 0.0
    %1292 = vmatpush1.msra.mxu0 0.0
    %1293 = vmatprep.subr.mxu0 0.0
    %1294 = vmatpush1.msra.mxu0 0.0
    %1295 = vmatprep.subr.mxu0 0.0
    %1296 = vmatpush1.msra.mxu0 0.0
    %1297 = vmatprep.subr.mxu0 0.0
    %1298 = vmatpush1.msra.mxu0 0.0
    %1299 = vmatprep.subr.mxu0 0.0
    %1300 = vmatpush1.msra.mxu0 0.0
    %1301 = vmatprep.subr.mxu0 0.0
    %1302 = vmatpush1.msra.mxu0 0.0
    %1303 = vmatprep.subr.mxu0 0.0
    %1304 = vmatpush1.msra.mxu0 0.0
    %1305 = vmatprep.subr.mxu0 0.0
    %1306 = vmatpush1.msra.mxu0 0.0
    %1307 = vmatprep.subr.mxu0 0.0
    %1308 = vmatpush1.msra.mxu0 0.0
    %1309 = vmatprep.subr.mxu0 0.0
    %1310 = vmatpush1.msra.mxu0 0.0
    %1311 = vmatprep.subr.mxu0 0.0
    %1312 = vmatpush1.msra.mxu0 0.0
    %1313 = vmatprep.subr.mxu0 0.0
    %1314 = vmatpush1.msra.mxu0 0.0
    %1315 = vmatprep.subr.mxu0 0.0
    %v1316 = vand.u32 %v41, 4294901760
    %v1317 = vsub.f32 %v41, %v1316
    %v1318 = vand.u32 %v1317, 4294901760
    %v1319 = vsub.f32 %v1317, %v1318
    %v1320 = vand.u32 %v1319, 4294901760
    %1321 = vmatpush1.msra.mxu0 %v1320
    %1322 = vmatprep.subr.mxu0 0.0
    %1323 = vmatpush2.msra.mxu0 0.0
    %1324 = vmatprep.subr.mxu0 0.0
    %1325 = vmatpush2.msra.mxu0 0.0
    %1326 = vmatprep.subr.mxu0 0.0
    %1327 = vmatpush2.msra.mxu0 0.0
    %1328 = vmatprep.subr.mxu0 0.0
    %1329 = vmatpush2.msra.mxu0 0.0
    %1330 = vmatprep.subr.mxu0 0.0
    %1331 = vmatpush2.msra.mxu0 0.0
    %1332 = vmatprep.subr.mxu0 0.0
    %1333 = vmatpush2.msra.mxu0 0.0
    %1334 = vmatprep.subr.mxu0 0.0
    %1335 = vmatpush2.msra.mxu0 0.0
    %1336 = vmatprep.subr.mxu0 0.0
    %1337 = vmatpush2.msra.mxu0 0.0
    %1338 = vmatprep.subr.mxu0 0.0
    %1339 = vmatpush2.msra.mxu0 0.0
    %1340 = vmatprep.subr.mxu0 0.0
    %1341 = vmatpush2.msra.mxu0 0.0
    %1342 = vmatprep.subr.mxu0 0.0
    %1343 = vmatpush2.msra.mxu0 0.0
    %1344 = vmatprep.subr.mxu0 0.0
    %1345 = vmatpush2.msra.mxu0 0.0
    %1346 = vmatprep.subr.mxu0 0.0
    %1347 = vmatpush2.msra.mxu0 0.0
    %1348 = vmatprep.subr.mxu0 0.0
    %1349 = vmatpush2.msra.mxu0 0.0
    %1350 = vmatprep.subr.mxu0 0.0
    %1351 = vmatpush2.msra.mxu0 0.0
    %1352 = vmatprep.subr.mxu0 0.0
    %1353 = vmatpush2.msra.mxu0 0.0
    %1354 = vmatprep.mubr.f32.mxu0 0.0
    %v1355 = vand.u32 %v1207, 4294901760
    %1356 = vmatmul.mubr.f32.gmra.mxu0 %v1355
    %v1357 = vpop.f32.mrf.mxu0
    %v1358 = vadd.f32 %v1282, %v1357
    %v1359 = vpop.f32.mrf.mxu0
    %1360 = vdwg.mxu0
    %1361 = vmatprep.subr.mxu0 0.0
    %1362 = vmatpush1.msra.mxu0 0.0
    %1363 = vmatprep.subr.mxu0 0.0
    %1364 = vmatpush1.msra.mxu0 0.0
    %1365 = vmatprep.subr.mxu0 0.0
    %1366 = vmatpush1.msra.mxu0 0.0
    %1367 = vmatprep.subr.mxu0 0.0
    %1368 = vmatpush1.msra.mxu0 0.0
    %1369 = vmatprep.subr.mxu0 0.0
    %1370 = vmatpush1.msra.mxu0 0.0
    %1371 = vmatprep.subr.mxu0 0.0
    %1372 = vmatpush1.msra.mxu0 0.0
    %1373 = vmatprep.subr.mxu0 0.0
    %1374 = vmatpush1.msra.mxu0 0.0
    %1375 = vmatprep.subr.mxu0 0.0
    %1376 = vmatpush1.msra.mxu0 0.0
    %1377 = vmatprep.subr.mxu0 0.0
    %1378 = vmatpush1.msra.mxu0 0.0
    %1379 = vmatprep.subr.mxu0 0.0
    %1380 = vmatpush1.msra.mxu0 0.0
    %1381 = vmatprep.subr.mxu0 0.0
    %1382 = vmatpush1.msra.mxu0 0.0
    %1383 = vmatprep.subr.mxu0 0.0
    %1384 = vmatpush1.msra.mxu0 0.0
    %1385 = vmatprep.subr.mxu0 0.0
    %1386 = vmatpush1.msra.mxu0 0.0
    %1387 = vmatprep.subr.mxu0 0.0
    %1388 = vmatpush1.msra.mxu0 0.0
    %1389 = vmatprep.subr.mxu0 0.0
    %1390 = vmatpush1.msra.mxu0 0.0
    %1391 = vmatprep.subr.mxu0 0.0
    %v1392 = vand.u32 %v41, 4294901760
    %v1393 = vsub.f32 %v41, %v1392
    %1394 = vmatpush1.msra.mxu0 %v1393
    %1395 = vmatprep.subr.mxu0 0.0
    %1396 = vmatpush2.msra.mxu0 0.0
    %1397 = vmatprep.subr.mxu0 0.0
    %1398 = vmatpush2.msra.mxu0 0.0
    %1399 = vmatprep.subr.mxu0 0.0
    %1400 = vmatpush2.msra.mxu0 0.0
    %1401 = vmatprep.subr.mxu0 0.0
    %1402 = vmatpush2.msra.mxu0 0.0
    %1403 = vmatprep.subr.mxu0 0.0
    %1404 = vmatpush2.msra.mxu0 0.0
    %1405 = vmatprep.subr.mxu0 0.0
    %1406 = vmatpush2.msra.mxu0 0.0
    %1407 = vmatprep.subr.mxu0 0.0
    %1408 = vmatpush2.msra.mxu0 0.0
    %1409 = vmatprep.subr.mxu0 0.0
    %1410 = vmatpush2.msra.mxu0 0.0
    %1411 = vmatprep.subr.mxu0 0.0
    %1412 = vmatpush2.msra.mxu0 0.0
    %1413 = vmatprep.subr.mxu0 0.0
    %1414 = vmatpush2.msra.mxu0 0.0
    %1415 = vmatprep.subr.mxu0 0.0
    %1416 = vmatpush2.msra.mxu0 0.0
    %1417 = vmatprep.subr.mxu0 0.0
    %1418 = vmatpush2.msra.mxu0 0.0
    %1419 = vmatprep.subr.mxu0 0.0
    %1420 = vmatpush2.msra.mxu0 0.0
    %1421 = vmatprep.subr.mxu0 0.0
    %1422 = vmatpush2.msra.mxu0 0.0
    %1423 = vmatprep.subr.mxu0 0.0
    %1424 = vmatpush2.msra.mxu0 0.0
    %1425 = vmatprep.subr.mxu0 0.0
    %1426 = vmatpush2.msra.mxu0 0.0
    %1427 = vmatprep.mubr.f32.mxu0 0.0
    %v1428 = vand.u32 %v1207, 4294901760
    %v1429 = vsub.f32 %v1207, %v1428
    %1430 = vmatmul.mubr.f32.gmra.mxu0 %v1429
    %v1431 = vpop.f32.mrf.mxu0
    %v1432 = vadd.f32 %v1358, %v1431
    %v1433 = vpop.f32.mrf.mxu0
    %1434 = vdwg.mxu0
    %1435 = vmatprep.subr.mxu0 0.0
    %1436 = vmatpush1.msra.mxu0 0.0
    %1437 = vmatprep.subr.mxu0 0.0
    %1438 = vmatpush1.msra.mxu0 0.0
    %1439 = vmatprep.subr.mxu0 0.0
    %1440 = vmatpush1.msra.mxu0 0.0
    %1441 = vmatprep.subr.mxu0 0.0
    %1442 = vmatpush1.msra.mxu0 0.0
    %1443 = vmatprep.subr.mxu0 0.0
    %1444 = vmatpush1.msra.mxu0 0.0
    %1445 = vmatprep.subr.mxu0 0.0
    %1446 = vmatpush1.msra.mxu0 0.0
    %1447 = vmatprep.subr.mxu0 0.0
    %1448 = vmatpush1.msra.mxu0 0.0
    %1449 = vmatprep.subr.mxu0 0.0
    %1450 = vmatpush1.msra.mxu0 0.0
    %1451 = vmatprep.subr.mxu0 0.0
    %1452 = vmatpush1.msra.mxu0 0.0
    %1453 = vmatprep.subr.mxu0 0.0
    %1454 = vmatpush1.msra.mxu0 0.0
    %1455 = vmatprep.subr.mxu0 0.0
    %1456 = vmatpush1.msra.mxu0 0.0
    %1457 = vmatprep.subr.mxu0 0.0
    %1458 = vmatpush1.msra.mxu0 0.0
    %1459 = vmatprep.subr.mxu0 0.0
    %1460 = vmatpush1.msra.mxu0 0.0
    %1461 = vmatprep.subr.mxu0 0.0
    %1462 = vmatpush1.msra.mxu0 0.0
    %1463 = vmatprep.subr.mxu0 0.0
    %1464 = vmatpush1.msra.mxu0 0.0
    %1465 = vmatprep.subr.mxu0 0.0
    %v1466 = vand.u32 %v41, 4294901760
    %1467 = vmatpush1.msra.mxu0 %v1466
    %1468 = vmatprep.subr.mxu0 0.0
    %1469 = vmatpush2.msra.mxu0 0.0
    %1470 = vmatprep.subr.mxu0 0.0
    %1471 = vmatpush2.msra.mxu0 0.0
    %1472 = vmatprep.subr.mxu0 0.0
    %1473 = vmatpush2.msra.mxu0 0.0
    %1474 = vmatprep.subr.mxu0 0.0
    %1475 = vmatpush2.msra.mxu0 0.0
    %1476 = vmatprep.subr.mxu0 0.0
    %1477 = vmatpush2.msra.mxu0 0.0
    %1478 = vmatprep.subr.mxu0 0.0
    %1479 = vmatpush2.msra.mxu0 0.0
    %1480 = vmatprep.subr.mxu0 0.0
    %1481 = vmatpush2.msra.mxu0 0.0
    %1482 = vmatprep.subr.mxu0 0.0
    %1483 = vmatpush2.msra.mxu0 0.0
    %1484 = vmatprep.subr.mxu0 0.0
    %1485 = vmatpush2.msra.mxu0 0.0
    %1486 = vmatprep.subr.mxu0 0.0
    %1487 = vmatpush2.msra.mxu0 0.0
    %1488 = vmatprep.subr.mxu0 0.0
    %1489 = vmatpush2.msra.mxu0 0.0
    %1490 = vmatprep.subr.mxu0 0.0
    %1491 = vmatpush2.msra.mxu0 0.0
    %1492 = vmatprep.subr.mxu0 0.0
    %1493 = vmatpush2.msra.mxu0 0.0
    %1494 = vmatprep.subr.mxu0 0.0
    %1495 = vmatpush2.msra.mxu0 0.0
    %1496 = vmatprep.subr.mxu0 0.0
    %1497 = vmatpush2.msra.mxu0 0.0
    %1498 = vmatprep.subr.mxu0 0.0
    %1499 = vmatpush2.msra.mxu0 0.0
    %1500 = vmatprep.mubr.f32.mxu0 0.0
    %v1501 = vand.u32 %v1207, 4294901760
    %v1502 = vsub.f32 %v1207, %v1501
    %v1503 = vand.u32 %v1502, 4294901760
    %1504 = vmatmul.mubr.f32.gmra.mxu0 %v1503
    %v1505 = vpop.f32.mrf.mxu0
    %v1506 = vadd.f32 %v1432, %v1505
    %v1507 = vpop.f32.mrf.mxu0
    %1508 = vdwg.mxu0
    %1509 = vmatprep.subr.mxu0 0.0
    %1510 = vmatpush1.msra.mxu0 0.0
    %1511 = vmatprep.subr.mxu0 0.0
    %1512 = vmatpush1.msra.mxu0 0.0
    %1513 = vmatprep.subr.mxu0 0.0
    %1514 = vmatpush1.msra.mxu0 0.0
    %1515 = vmatprep.subr.mxu0 0.0
    %1516 = vmatpush1.msra.mxu0 0.0
    %1517 = vmatprep.subr.mxu0 0.0
    %1518 = vmatpush1.msra.mxu0 0.0
    %1519 = vmatprep.subr.mxu0 0.0
    %1520 = vmatpush1.msra.mxu0 0.0
    %1521 = vmatprep.subr.mxu0 0.0
    %1522 = vmatpush1.msra.mxu0 0.0
    %1523 = vmatprep.subr.mxu0 0.0
    %1524 = vmatpush1.msra.mxu0 0.0
    %1525 = vmatprep.subr.mxu0 0.0
    %1526 = vmatpush1.msra.mxu0 0.0
    %1527 = vmatprep.subr.mxu0 0.0
    %1528 = vmatpush1.msra.mxu0 0.0
    %1529 = vmatprep.subr.mxu0 0.0
    %1530 = vmatpush1.msra.mxu0 0.0
    %1531 = vmatprep.subr.mxu0 0.0
    %1532 = vmatpush1.msra.mxu0 0.0
    %1533 = vmatprep.subr.mxu0 0.0
    %1534 = vmatpush1.msra.mxu0 0.0
    %1535 = vmatprep.subr.mxu0 0.0
    %1536 = vmatpush1.msra.mxu0 0.0
    %1537 = vmatprep.subr.mxu0 0.0
    %1538 = vmatpush1.msra.mxu0 0.0
    %1539 = vmatprep.subr.mxu0 0.0
    %v1540 = vand.u32 %v41, 4294901760
    %v1541 = vsub.f32 %v41, %v1540
    %v1542 = vand.u32 %v1541, 4294901760
    %1543 = vmatpush1.msra.mxu0 %v1542
    %1544 = vmatprep.subr.mxu0 0.0
    %1545 = vmatpush2.msra.mxu0 0.0
    %1546 = vmatprep.subr.mxu0 0.0
    %1547 = vmatpush2.msra.mxu0 0.0
    %1548 = vmatprep.subr.mxu0 0.0
    %1549 = vmatpush2.msra.mxu0 0.0
    %1550 = vmatprep.subr.mxu0 0.0
    %1551 = vmatpush2.msra.mxu0 0.0
    %1552 = vmatprep.subr.mxu0 0.0
    %1553 = vmatpush2.msra.mxu0 0.0
    %1554 = vmatprep.subr.mxu0 0.0
    %1555 = vmatpush2.msra.mxu0 0.0
    %1556 = vmatprep.subr.mxu0 0.0
    %1557 = vmatpush2.msra.mxu0 0.0
    %1558 = vmatprep.subr.mxu0 0.0
    %1559 = vmatpush2.msra.mxu0 0.0
    %1560 = vmatprep.subr.mxu0 0.0
    %1561 = vmatpush2.msra.mxu0 0.0
    %1562 = vmatprep.subr.mxu0 0.0
    %1563 = vmatpush2.msra.mxu0 0.0
    %1564 = vmatprep.subr.mxu0 0.0
    %1565 = vmatpush2.msra.mxu0 0.0
    %1566 = vmatprep.subr.mxu0 0.0
    %1567 = vmatpush2.msra.mxu0 0.0
    %1568 = vmatprep.subr.mxu0 0.0
    %1569 = vmatpush2.msra.mxu0 0.0
    %1570 = vmatprep.subr.mxu0 0.0
    %1571 = vmatpush2.msra.mxu0 0.0
    %1572 = vmatprep.subr.mxu0 0.0
    %1573 = vmatpush2.msra.mxu0 0.0
    %1574 = vmatprep.subr.mxu0 0.0
    %1575 = vmatpush2.msra.mxu0 0.0
    %1576 = vmatprep.mubr.f32.mxu0 0.0
    %v1577 = vand.u32 %v1207, 4294901760
    %1578 = vmatmul.mubr.f32.gmra.mxu0 %v1577
    %v1579 = vpop.f32.mrf.mxu0
    %v1580 = vadd.f32 %v1506, %v1579
    %v1581 = vpop.f32.mrf.mxu0
    %1582 = vdwg.mxu0
    %1583 = vmatprep.subr.mxu0 0.0
    %1584 = vmatpush1.msra.mxu0 0.0
    %1585 = vmatprep.subr.mxu0 0.0
    %1586 = vmatpush1.msra.mxu0 0.0
    %1587 = vmatprep.subr.mxu0 0.0
    %1588 = vmatpush1.msra.mxu0 0.0
    %1589 = vmatprep.subr.mxu0 0.0
    %1590 = vmatpush1.msra.mxu0 0.0
    %1591 = vmatprep.subr.mxu0 0.0
    %1592 = vmatpush1.msra.mxu0 0.0
    %1593 = vmatprep.subr.mxu0 0.0
    %1594 = vmatpush1.msra.mxu0 0.0
    %1595 = vmatprep.subr.mxu0 0.0
    %1596 = vmatpush1.msra.mxu0 0.0
    %1597 = vmatprep.subr.mxu0 0.0
    %1598 = vmatpush1.msra.mxu0 0.0
    %1599 = vmatprep.subr.mxu0 0.0
    %1600 = vmatpush1.msra.mxu0 0.0
    %1601 = vmatprep.subr.mxu0 0.0
    %1602 = vmatpush1.msra.mxu0 0.0
    %1603 = vmatprep.subr.mxu0 0.0
    %1604 = vmatpush1.msra.mxu0 0.0
    %1605 = vmatprep.subr.mxu0 0.0
    %1606 = vmatpush1.msra.mxu0 0.0
    %1607 = vmatprep.subr.mxu0 0.0
    %1608 = vmatpush1.msra.mxu0 0.0
    %1609 = vmatprep.subr.mxu0 0.0
    %1610 = vmatpush1.msra.mxu0 0.0
    %1611 = vmatprep.subr.mxu0 0.0
    %1612 = vmatpush1.msra.mxu0 0.0
    %1613 = vmatprep.subr.mxu0 0.0
    %v1614 = vand.u32 %v41, 4294901760
    %1615 = vmatpush1.msra.mxu0 %v1614
    %1616 = vmatprep.subr.mxu0 0.0
    %1617 = vmatpush2.msra.mxu0 0.0
    %1618 = vmatprep.subr.mxu0 0.0
    %1619 = vmatpush2.msra.mxu0 0.0
    %1620 = vmatprep.subr.mxu0 0.0
    %1621 = vmatpush2.msra.mxu0 0.0
    %1622 = vmatprep.subr.mxu0 0.0
    %1623 = vmatpush2.msra.mxu0 0.0
    %1624 = vmatprep.subr.mxu0 0.0
    %1625 = vmatpush2.msra.mxu0 0.0
    %1626 = vmatprep.subr.mxu0 0.0
    %1627 = vmatpush2.msra.mxu0 0.0
    %1628 = vmatprep.subr.mxu0 0.0
    %1629 = vmatpush2.msra.mxu0 0.0
    %1630 = vmatprep.subr.mxu0 0.0
    %1631 = vmatpush2.msra.mxu0 0.0
    %1632 = vmatprep.subr.mxu0 0.0
    %1633 = vmatpush2.msra.mxu0 0.0
    %1634 = vmatprep.subr.mxu0 0.0
    %1635 = vmatpush2.msra.mxu0 0.0
    %1636 = vmatprep.subr.mxu0 0.0
    %1637 = vmatpush2.msra.mxu0 0.0
    %1638 = vmatprep.subr.mxu0 0.0
    %1639 = vmatpush2.msra.mxu0 0.0
    %1640 = vmatprep.subr.mxu0 0.0
    %1641 = vmatpush2.msra.mxu0 0.0
    %1642 = vmatprep.subr.mxu0 0.0
    %1643 = vmatpush2.msra.mxu0 0.0
    %1644 = vmatprep.subr.mxu0 0.0
    %1645 = vmatpush2.msra.mxu0 0.0
    %1646 = vmatprep.subr.mxu0 0.0
    %1647 = vmatpush2.msra.mxu0 0.0
    %1648 = vmatprep.mubr.f32.mxu0 0.0
    %v1649 = vand.u32 %v1207, 4294901760
    %1650 = vmatmul.mubr.f32.gmra.mxu0 %v1649
    %v1651 = vpop.f32.mrf.mxu0
    %v1652 = vadd.f32 %v1580, %v1651
    %v1653 = vpop.f32.mrf.mxu0
    %1654 = vdwg.mxu0
    %v1655 = vsel %vm155, %v280, 0
    %1657 = vmatprep.subr.mxu0 0.0
    %1658 = vmatpush1.msra.mxu0 0.0
    %1659 = vmatprep.subr.mxu0 0.0
    %1660 = vmatpush1.msra.mxu0 0.0
    %1661 = vmatprep.subr.mxu0 0.0
    %1662 = vmatpush1.msra.mxu0 0.0
    %1663 = vmatprep.subr.mxu0 0.0
    %1664 = vmatpush1.msra.mxu0 0.0
    %1665 = vmatprep.subr.mxu0 0.0
    %1666 = vmatpush1.msra.mxu0 0.0
    %1667 = vmatprep.subr.mxu0 0.0
    %1668 = vmatpush1.msra.mxu0 0.0
    %1669 = vmatprep.subr.mxu0 0.0
    %1670 = vmatpush1.msra.mxu0 0.0
    %1671 = vmatprep.subr.mxu0 0.0
    %1672 = vmatpush1.msra.mxu0 0.0
    %1673 = vmatprep.subr.mxu0 0.0
    %1674 = vmatpush1.msra.mxu0 0.0
    %1675 = vmatprep.subr.mxu0 0.0
    %1676 = vmatpush1.msra.mxu0 0.0
    %1677 = vmatprep.subr.mxu0 0.0
    %1678 = vmatpush1.msra.mxu0 0.0
    %1679 = vmatprep.subr.mxu0 0.0
    %1680 = vmatpush1.msra.mxu0 0.0
    %1681 = vmatprep.subr.mxu0 0.0
    %1682 = vmatpush1.msra.mxu0 0.0
    %1683 = vmatprep.subr.mxu0 0.0
    %1684 = vmatpush1.msra.mxu0 0.0
    %1685 = vmatprep.subr.mxu0 0.0
    %1686 = vmatpush1.msra.mxu0 0.0
    %1687 = vmatprep.subr.mxu0 0.0
    %v1688 = vand.u32 %v42, 4294901760
    %1689 = vmatpush1.msra.mxu0 %v1688
    %1690 = vmatprep.subr.mxu0 0.0
    %1691 = vmatpush2.msra.mxu0 0.0
    %1692 = vmatprep.subr.mxu0 0.0
    %1693 = vmatpush2.msra.mxu0 0.0
    %1694 = vmatprep.subr.mxu0 0.0
    %1695 = vmatpush2.msra.mxu0 0.0
    %1696 = vmatprep.subr.mxu0 0.0
    %1697 = vmatpush2.msra.mxu0 0.0
    %1698 = vmatprep.subr.mxu0 0.0
    %1699 = vmatpush2.msra.mxu0 0.0
    %1700 = vmatprep.subr.mxu0 0.0
    %1701 = vmatpush2.msra.mxu0 0.0
    %1702 = vmatprep.subr.mxu0 0.0
    %1703 = vmatpush2.msra.mxu0 0.0
    %1704 = vmatprep.subr.mxu0 0.0
    %1705 = vmatpush2.msra.mxu0 0.0
    %1706 = vmatprep.subr.mxu0 0.0
    %1707 = vmatpush2.msra.mxu0 0.0
    %1708 = vmatprep.subr.mxu0 0.0
    %1709 = vmatpush2.msra.mxu0 0.0
    %1710 = vmatprep.subr.mxu0 0.0
    %1711 = vmatpush2.msra.mxu0 0.0
    %1712 = vmatprep.subr.mxu0 0.0
    %1713 = vmatpush2.msra.mxu0 0.0
    %1714 = vmatprep.subr.mxu0 0.0
    %1715 = vmatpush2.msra.mxu0 0.0
    %1716 = vmatprep.subr.mxu0 0.0
    %1717 = vmatpush2.msra.mxu0 0.0
    %1718 = vmatprep.subr.mxu0 0.0
    %1719 = vmatpush2.msra.mxu0 0.0
    %1720 = vmatprep.subr.mxu0 0.0
    %1721 = vmatpush2.msra.mxu0 0.0
    %1722 = vmatprep.mubr.f32.mxu0 0.0
    %v1723 = vand.u32 %v1655, 4294901760
    %v1724 = vsub.f32 %v1655, %v1723
    %v1725 = vand.u32 %v1724, 4294901760
    %v1726 = vsub.f32 %v1724, %v1725
    %v1727 = vand.u32 %v1726, 4294901760
    %1728 = vmatmul.mubr.f32.gmra.mxu0 %v1727
    %v1729 = vpop.f32.mrf.mxu0
    %v1730 = vadd.f32 0.0, %v1729
    %v1731 = vpop.f32.mrf.mxu0
    %1732 = vdwg.mxu0
    %1733 = vmatprep.subr.mxu0 0.0
    %1734 = vmatpush1.msra.mxu0 0.0
    %1735 = vmatprep.subr.mxu0 0.0
    %1736 = vmatpush1.msra.mxu0 0.0
    %1737 = vmatprep.subr.mxu0 0.0
    %1738 = vmatpush1.msra.mxu0 0.0
    %1739 = vmatprep.subr.mxu0 0.0
    %1740 = vmatpush1.msra.mxu0 0.0
    %1741 = vmatprep.subr.mxu0 0.0
    %1742 = vmatpush1.msra.mxu0 0.0
    %1743 = vmatprep.subr.mxu0 0.0
    %1744 = vmatpush1.msra.mxu0 0.0
    %1745 = vmatprep.subr.mxu0 0.0
    %1746 = vmatpush1.msra.mxu0 0.0
    %1747 = vmatprep.subr.mxu0 0.0
    %1748 = vmatpush1.msra.mxu0 0.0
    %1749 = vmatprep.subr.mxu0 0.0
    %1750 = vmatpush1.msra.mxu0 0.0
    %1751 = vmatprep.subr.mxu0 0.0
    %1752 = vmatpush1.msra.mxu0 0.0
    %1753 = vmatprep.subr.mxu0 0.0
    %1754 = vmatpush1.msra.mxu0 0.0
    %1755 = vmatprep.subr.mxu0 0.0
    %1756 = vmatpush1.msra.mxu0 0.0
    %1757 = vmatprep.subr.mxu0 0.0
    %1758 = vmatpush1.msra.mxu0 0.0
    %1759 = vmatprep.subr.mxu0 0.0
    %1760 = vmatpush1.msra.mxu0 0.0
    %1761 = vmatprep.subr.mxu0 0.0
    %1762 = vmatpush1.msra.mxu0 0.0
    %1763 = vmatprep.subr.mxu0 0.0
    %v1764 = vand.u32 %v42, 4294901760
    %v1765 = vsub.f32 %v42, %v1764
    %v1766 = vand.u32 %v1765, 4294901760
    %v1767 = vsub.f32 %v1765, %v1766
    %v1768 = vand.u32 %v1767, 4294901760
    %1769 = vmatpush1.msra.mxu0 %v1768
    %1770 = vmatprep.subr.mxu0 0.0
    %1771 = vmatpush2.msra.mxu0 0.0
    %1772 = vmatprep.subr.mxu0 0.0
    %1773 = vmatpush2.msra.mxu0 0.0
    %1774 = vmatprep.subr.mxu0 0.0
    %1775 = vmatpush2.msra.mxu0 0.0
    %1776 = vmatprep.subr.mxu0 0.0
    %1777 = vmatpush2.msra.mxu0 0.0
    %1778 = vmatprep.subr.mxu0 0.0
    %1779 = vmatpush2.msra.mxu0 0.0
    %1780 = vmatprep.subr.mxu0 0.0
    %1781 = vmatpush2.msra.mxu0 0.0
    %1782 = vmatprep.subr.mxu0 0.0
    %1783 = vmatpush2.msra.mxu0 0.0
    %1784 = vmatprep.subr.mxu0 0.0
    %1785 = vmatpush2.msra.mxu0 0.0
    %1786 = vmatprep.subr.mxu0 0.0
    %1787 = vmatpush2.msra.mxu0 0.0
    %1788 = vmatprep.subr.mxu0 0.0
    %1789 = vmatpush2.msra.mxu0 0.0
    %1790 = vmatprep.subr.mxu0 0.0
    %1791 = vmatpush2.msra.mxu0 0.0
    %1792 = vmatprep.subr.mxu0 0.0
    %1793 = vmatpush2.msra.mxu0 0.0
    %1794 = vmatprep.subr.mxu0 0.0
    %1795 = vmatpush2.msra.mxu0 0.0
    %1796 = vmatprep.subr.mxu0 0.0
    %1797 = vmatpush2.msra.mxu0 0.0
    %1798 = vmatprep.subr.mxu0 0.0
    %1799 = vmatpush2.msra.mxu0 0.0
    %1800 = vmatprep.subr.mxu0 0.0
    %1801 = vmatpush2.msra.mxu0 0.0
    %1802 = vmatprep.mubr.f32.mxu0 0.0
    %v1803 = vand.u32 %v1655, 4294901760
    %1804 = vmatmul.mubr.f32.gmra.mxu0 %v1803
    %v1805 = vpop.f32.mrf.mxu0
    %v1806 = vadd.f32 %v1730, %v1805
    %v1807 = vpop.f32.mrf.mxu0
    %1808 = vdwg.mxu0
    %1809 = vmatprep.subr.mxu0 0.0
    %1810 = vmatpush1.msra.mxu0 0.0
    %1811 = vmatprep.subr.mxu0 0.0
    %1812 = vmatpush1.msra.mxu0 0.0
    %1813 = vmatprep.subr.mxu0 0.0
    %1814 = vmatpush1.msra.mxu0 0.0
    %1815 = vmatprep.subr.mxu0 0.0
    %1816 = vmatpush1.msra.mxu0 0.0
    %1817 = vmatprep.subr.mxu0 0.0
    %1818 = vmatpush1.msra.mxu0 0.0
    %1819 = vmatprep.subr.mxu0 0.0
    %1820 = vmatpush1.msra.mxu0 0.0
    %1821 = vmatprep.subr.mxu0 0.0
    %1822 = vmatpush1.msra.mxu0 0.0
    %1823 = vmatprep.subr.mxu0 0.0
    %1824 = vmatpush1.msra.mxu0 0.0
    %1825 = vmatprep.subr.mxu0 0.0
    %1826 = vmatpush1.msra.mxu0 0.0
    %1827 = vmatprep.subr.mxu0 0.0
    %1828 = vmatpush1.msra.mxu0 0.0
    %1829 = vmatprep.subr.mxu0 0.0
    %1830 = vmatpush1.msra.mxu0 0.0
    %1831 = vmatprep.subr.mxu0 0.0
    %1832 = vmatpush1.msra.mxu0 0.0
    %1833 = vmatprep.subr.mxu0 0.0
    %1834 = vmatpush1.msra.mxu0 0.0
    %1835 = vmatprep.subr.mxu0 0.0
    %1836 = vmatpush1.msra.mxu0 0.0
    %1837 = vmatprep.subr.mxu0 0.0
    %1838 = vmatpush1.msra.mxu0 0.0
    %1839 = vmatprep.subr.mxu0 0.0
    %v1840 = vand.u32 %v42, 4294901760
    %v1841 = vsub.f32 %v42, %v1840
    %1842 = vmatpush1.msra.mxu0 %v1841
    %1843 = vmatprep.subr.mxu0 0.0
    %1844 = vmatpush2.msra.mxu0 0.0
    %1845 = vmatprep.subr.mxu0 0.0
    %1846 = vmatpush2.msra.mxu0 0.0
    %1847 = vmatprep.subr.mxu0 0.0
    %1848 = vmatpush2.msra.mxu0 0.0
    %1849 = vmatprep.subr.mxu0 0.0
    %1850 = vmatpush2.msra.mxu0 0.0
    %1851 = vmatprep.subr.mxu0 0.0
    %1852 = vmatpush2.msra.mxu0 0.0
    %1853 = vmatprep.subr.mxu0 0.0
    %1854 = vmatpush2.msra.mxu0 0.0
    %1855 = vmatprep.subr.mxu0 0.0
    %1856 = vmatpush2.msra.mxu0 0.0
    %1857 = vmatprep.subr.mxu0 0.0
    %1858 = vmatpush2.msra.mxu0 0.0
    %1859 = vmatprep.subr.mxu0 0.0
    %1860 = vmatpush2.msra.mxu0 0.0
    %1861 = vmatprep.subr.mxu0 0.0
    %1862 = vmatpush2.msra.mxu0 0.0
    %1863 = vmatprep.subr.mxu0 0.0
    %1864 = vmatpush2.msra.mxu0 0.0
    %1865 = vmatprep.subr.mxu0 0.0
    %1866 = vmatpush2.msra.mxu0 0.0
    %1867 = vmatprep.subr.mxu0 0.0
    %1868 = vmatpush2.msra.mxu0 0.0
    %1869 = vmatprep.subr.mxu0 0.0
    %1870 = vmatpush2.msra.mxu0 0.0
    %1871 = vmatprep.subr.mxu0 0.0
    %1872 = vmatpush2.msra.mxu0 0.0
    %1873 = vmatprep.subr.mxu0 0.0
    %1874 = vmatpush2.msra.mxu0 0.0
    %1875 = vmatprep.mubr.f32.mxu0 0.0
    %v1876 = vand.u32 %v1655, 4294901760
    %v1877 = vsub.f32 %v1655, %v1876
    %1878 = vmatmul.mubr.f32.gmra.mxu0 %v1877
    %v1879 = vpop.f32.mrf.mxu0
    %v1880 = vadd.f32 %v1806, %v1879
    %v1881 = vpop.f32.mrf.mxu0
    %1882 = vdwg.mxu0
    %1883 = vmatprep.subr.mxu0 0.0
    %1884 = vmatpush1.msra.mxu0 0.0
    %1885 = vmatprep.subr.mxu0 0.0
    %1886 = vmatpush1.msra.mxu0 0.0
    %1887 = vmatprep.subr.mxu0 0.0
    %1888 = vmatpush1.msra.mxu0 0.0
    %1889 = vmatprep.subr.mxu0 0.0
    %1890 = vmatpush1.msra.mxu0 0.0
    %1891 = vmatprep.subr.mxu0 0.0
    %1892 = vmatpush1.msra.mxu0 0.0
    %1893 = vmatprep.subr.mxu0 0.0
    %1894 = vmatpush1.msra.mxu0 0.0
    %1895 = vmatprep.subr.mxu0 0.0
    %1896 = vmatpush1.msra.mxu0 0.0
    %1897 = vmatprep.subr.mxu0 0.0
    %1898 = vmatpush1.msra.mxu0 0.0
    %1899 = vmatprep.subr.mxu0 0.0
    %1900 = vmatpush1.msra.mxu0 0.0
    %1901 = vmatprep.subr.mxu0 0.0
    %1902 = vmatpush1.msra.mxu0 0.0
    %1903 = vmatprep.subr.mxu0 0.0
    %1904 = vmatpush1.msra.mxu0 0.0
    %1905 = vmatprep.subr.mxu0 0.0
    %1906 = vmatpush1.msra.mxu0 0.0
    %1907 = vmatprep.subr.mxu0 0.0
    %1908 = vmatpush1.msra.mxu0 0.0
    %1909 = vmatprep.subr.mxu0 0.0
    %1910 = vmatpush1.msra.mxu0 0.0
    %1911 = vmatprep.subr.mxu0 0.0
    %1912 = vmatpush1.msra.mxu0 0.0
    %1913 = vmatprep.subr.mxu0 0.0
    %v1914 = vand.u32 %v42, 4294901760
    %1915 = vmatpush1.msra.mxu0 %v1914
    %1916 = vmatprep.subr.mxu0 0.0
    %1917 = vmatpush2.msra.mxu0 0.0
    %1918 = vmatprep.subr.mxu0 0.0
    %1919 = vmatpush2.msra.mxu0 0.0
    %1920 = vmatprep.subr.mxu0 0.0
    %1921 = vmatpush2.msra.mxu0 0.0
    %1922 = vmatprep.subr.mxu0 0.0
    %1923 = vmatpush2.msra.mxu0 0.0
    %1924 = vmatprep.subr.mxu0 0.0
    %1925 = vmatpush2.msra.mxu0 0.0
    %1926 = vmatprep.subr.mxu0 0.0
    %1927 = vmatpush2.msra.mxu0 0.0
    %1928 = vmatprep.subr.mxu0 0.0
    %1929 = vmatpush2.msra.mxu0 0.0
    %1930 = vmatprep.subr.mxu0 0.0
    %1931 = vmatpush2.msra.mxu0 0.0
    %1932 = vmatprep.subr.mxu0 0.0
    %1933 = vmatpush2.msra.mxu0 0.0
    %1934 = vmatprep.subr.mxu0 0.0
    %1935 = vmatpush2.msra.mxu0 0.0
    %1936 = vmatprep.subr.mxu0 0.0
    %1937 = vmatpush2.msra.mxu0 0.0
    %1938 = vmatprep.subr.mxu0 0.0
    %1939 = vmatpush2.msra.mxu0 0.0
    %1940 = vmatprep.subr.mxu0 0.0
    %1941 = vmatpush2.msra.mxu0 0.0
    %1942 = vmatprep.subr.mxu0 0.0
    %1943 = vmatpush2.msra.mxu0 0.0
    %1944 = vmatprep.subr.mxu0 0.0
    %1945 = vmatpush2.msra.mxu0 0.0
    %1946 = vmatprep.subr.mxu0 0.0
    %1947 = vmatpush2.msra.mxu0 0.0
    %1948 = vmatprep.mubr.f32.mxu0 0.0
    %v1949 = vand.u32 %v1655, 4294901760
    %v1950 = vsub.f32 %v1655, %v1949
    %v1951 = vand.u32 %v1950, 4294901760
    %1952 = vmatmul.mubr.f32.gmra.mxu0 %v1951
    %v1953 = vpop.f32.mrf.mxu0
    %v1954 = vadd.f32 %v1880, %v1953
    %v1955 = vpop.f32.mrf.mxu0
    %1956 = vdwg.mxu0
    %1957 = vmatprep.subr.mxu0 0.0
    %1958 = vmatpush1.msra.mxu0 0.0
    %1959 = vmatprep.subr.mxu0 0.0
    %1960 = vmatpush1.msra.mxu0 0.0
    %1961 = vmatprep.subr.mxu0 0.0
    %1962 = vmatpush1.msra.mxu0 0.0
    %1963 = vmatprep.subr.mxu0 0.0
    %1964 = vmatpush1.msra.mxu0 0.0
    %1965 = vmatprep.subr.mxu0 0.0
    %1966 = vmatpush1.msra.mxu0 0.0
    %1967 = vmatprep.subr.mxu0 0.0
    %1968 = vmatpush1.msra.mxu0 0.0
    %1969 = vmatprep.subr.mxu0 0.0
    %1970 = vmatpush1.msra.mxu0 0.0
    %1971 = vmatprep.subr.mxu0 0.0
    %1972 = vmatpush1.msra.mxu0 0.0
    %1973 = vmatprep.subr.mxu0 0.0
    %1974 = vmatpush1.msra.mxu0 0.0
    %1975 = vmatprep.subr.mxu0 0.0
    %1976 = vmatpush1.msra.mxu0 0.0
    %1977 = vmatprep.subr.mxu0 0.0
    %1978 = vmatpush1.msra.mxu0 0.0
    %1979 = vmatprep.subr.mxu0 0.0
    %1980 = vmatpush1.msra.mxu0 0.0
    %1981 = vmatprep.subr.mxu0 0.0
    %1982 = vmatpush1.msra.mxu0 0.0
    %1983 = vmatprep.subr.mxu0 0.0
    %1984 = vmatpush1.msra.mxu0 0.0
    %1985 = vmatprep.subr.mxu0 0.0
    %1986 = vmatpush1.msra.mxu0 0.0
    %1987 = vmatprep.subr.mxu0 0.0
    %v1988 = vand.u32 %v42, 4294901760
    %v1989 = vsub.f32 %v42, %v1988
    %v1990 = vand.u32 %v1989, 4294901760
    %1991 = vmatpush1.msra.mxu0 %v1990
    %1992 = vmatprep.subr.mxu0 0.0
    %1993 = vmatpush2.msra.mxu0 0.0
    %1994 = vmatprep.subr.mxu0 0.0
    %1995 = vmatpush2.msra.mxu0 0.0
    %1996 = vmatprep.subr.mxu0 0.0
    %1997 = vmatpush2.msra.mxu0 0.0
    %1998 = vmatprep.subr.mxu0 0.0
    %1999 = vmatpush2.msra.mxu0 0.0
    %2000 = vmatprep.subr.mxu0 0.0
    %2001 = vmatpush2.msra.mxu0 0.0
    %2002 = vmatprep.subr.mxu0 0.0
    %2003 = vmatpush2.msra.mxu0 0.0
    %2004 = vmatprep.subr.mxu0 0.0
    %2005 = vmatpush2.msra.mxu0 0.0
    %2006 = vmatprep.subr.mxu0 0.0
    %2007 = vmatpush2.msra.mxu0 0.0
    %2008 = vmatprep.subr.mxu0 0.0
    %2009 = vmatpush2.msra.mxu0 0.0
    %2010 = vmatprep.subr.mxu0 0.0
    %2011 = vmatpush2.msra.mxu0 0.0
    %2012 = vmatprep.subr.mxu0 0.0
    %2013 = vmatpush2.msra.mxu0 0.0
    %2014 = vmatprep.subr.mxu0 0.0
    %2015 = vmatpush2.msra.mxu0 0.0
    %2016 = vmatprep.subr.mxu0 0.0
    %2017 = vmatpush2.msra.mxu0 0.0
    %2018 = vmatprep.subr.mxu0 0.0
    %2019 = vmatpush2.msra.mxu0 0.0
    %2020 = vmatprep.subr.mxu0 0.0
    %2021 = vmatpush2.msra.mxu0 0.0
    %2022 = vmatprep.subr.mxu0 0.0
    %2023 = vmatpush2.msra.mxu0 0.0
    %2024 = vmatprep.mubr.f32.mxu0 0.0
    %v2025 = vand.u32 %v1655, 4294901760
    %2026 = vmatmul.mubr.f32.gmra.mxu0 %v2025
    %v2027 = vpop.f32.mrf.mxu0
    %v2028 = vadd.f32 %v1954, %v2027
    %v2029 = vpop.f32.mrf.mxu0
    %2030 = vdwg.mxu0
    %2031 = vmatprep.subr.mxu0 0.0
    %2032 = vmatpush1.msra.mxu0 0.0
    %2033 = vmatprep.subr.mxu0 0.0
    %2034 = vmatpush1.msra.mxu0 0.0
    %2035 = vmatprep.subr.mxu0 0.0
    %2036 = vmatpush1.msra.mxu0 0.0
    %2037 = vmatprep.subr.mxu0 0.0
    %2038 = vmatpush1.msra.mxu0 0.0
    %2039 = vmatprep.subr.mxu0 0.0
    %2040 = vmatpush1.msra.mxu0 0.0
    %2041 = vmatprep.subr.mxu0 0.0
    %2042 = vmatpush1.msra.mxu0 0.0
    %2043 = vmatprep.subr.mxu0 0.0
    %2044 = vmatpush1.msra.mxu0 0.0
    %2045 = vmatprep.subr.mxu0 0.0
    %2046 = vmatpush1.msra.mxu0 0.0
    %2047 = vmatprep.subr.mxu0 0.0
    %2048 = vmatpush1.msra.mxu0 0.0
    %2049 = vmatprep.subr.mxu0 0.0
    %2050 = vmatpush1.msra.mxu0 0.0
    %2051 = vmatprep.subr.mxu0 0.0
    %2052 = vmatpush1.msra.mxu0 0.0
    %2053 = vmatprep.subr.mxu0 0.0
    %2054 = vmatpush1.msra.mxu0 0.0
    %2055 = vmatprep.subr.mxu0 0.0
    %2056 = vmatpush1.msra.mxu0 0.0
    %2057 = vmatprep.subr.mxu0 0.0
    %2058 = vmatpush1.msra.mxu0 0.0
    %2059 = vmatprep.subr.mxu0 0.0
    %2060 = vmatpush1.msra.mxu0 0.0
    %2061 = vmatprep.subr.mxu0 0.0
    %v2062 = vand.u32 %v42, 4294901760
    %2063 = vmatpush1.msra.mxu0 %v2062
    %2064 = vmatprep.subr.mxu0 0.0
    %2065 = vmatpush2.msra.mxu0 0.0
    %2066 = vmatprep.subr.mxu0 0.0
    %2067 = vmatpush2.msra.mxu0 0.0
    %2068 = vmatprep.subr.mxu0 0.0
    %2069 = vmatpush2.msra.mxu0 0.0
    %2070 = vmatprep.subr.mxu0 0.0
    %2071 = vmatpush2.msra.mxu0 0.0
    %2072 = vmatprep.subr.mxu0 0.0
    %2073 = vmatpush2.msra.mxu0 0.0
    %2074 = vmatprep.subr.mxu0 0.0
    %2075 = vmatpush2.msra.mxu0 0.0
    %2076 = vmatprep.subr.mxu0 0.0
    %2077 = vmatpush2.msra.mxu0 0.0
    %2078 = vmatprep.subr.mxu0 0.0
    %2079 = vmatpush2.msra.mxu0 0.0
    %2080 = vmatprep.subr.mxu0 0.0
    %2081 = vmatpush2.msra.mxu0 0.0
    %2082 = vmatprep.subr.mxu0 0.0
    %2083 = vmatpush2.msra.mxu0 0.0
    %2084 = vmatprep.subr.mxu0 0.0
    %2085 = vmatpush2.msra.mxu0 0.0
    %2086 = vmatprep.subr.mxu0 0.0
    %2087 = vmatpush2.msra.mxu0 0.0
    %2088 = vmatprep.subr.mxu0 0.0
    %2089 = vmatpush2.msra.mxu0 0.0
    %2090 = vmatprep.subr.mxu0 0.0
    %2091 = vmatpush2.msra.mxu0 0.0
    %2092 = vmatprep.subr.mxu0 0.0
    %2093 = vmatpush2.msra.mxu0 0.0
    %2094 = vmatprep.subr.mxu0 0.0
    %2095 = vmatpush2.msra.mxu0 0.0
    %2096 = vmatprep.mubr.f32.mxu0 0.0
    %v2097 = vand.u32 %v1655, 4294901760
    %2098 = vmatmul.mubr.f32.gmra.mxu0 %v2097
    %v2099 = vpop.f32.mrf.mxu0
    %v2100 = vadd.f32 %v2028, %v2099
    %v2101 = vpop.f32.mrf.mxu0
    %2102 = vdwg.mxu0
    %v2103 = vsel %vm155, %v284, 0
    %2105 = vmatprep.subr.mxu0 0.0
    %2106 = vmatpush1.msra.mxu0 0.0
    %2107 = vmatprep.subr.mxu0 0.0
    %2108 = vmatpush1.msra.mxu0 0.0
    %2109 = vmatprep.subr.mxu0 0.0
    %2110 = vmatpush1.msra.mxu0 0.0
    %2111 = vmatprep.subr.mxu0 0.0
    %2112 = vmatpush1.msra.mxu0 0.0
    %2113 = vmatprep.subr.mxu0 0.0
    %2114 = vmatpush1.msra.mxu0 0.0
    %2115 = vmatprep.subr.mxu0 0.0
    %2116 = vmatpush1.msra.mxu0 0.0
    %2117 = vmatprep.subr.mxu0 0.0
    %2118 = vmatpush1.msra.mxu0 0.0
    %2119 = vmatprep.subr.mxu0 0.0
    %2120 = vmatpush1.msra.mxu0 0.0
    %2121 = vmatprep.subr.mxu0 0.0
    %2122 = vmatpush1.msra.mxu0 0.0
    %2123 = vmatprep.subr.mxu0 0.0
    %2124 = vmatpush1.msra.mxu0 0.0
    %2125 = vmatprep.subr.mxu0 0.0
    %2126 = vmatpush1.msra.mxu0 0.0
    %2127 = vmatprep.subr.mxu0 0.0
    %2128 = vmatpush1.msra.mxu0 0.0
    %2129 = vmatprep.subr.mxu0 0.0
    %2130 = vmatpush1.msra.mxu0 0.0
    %2131 = vmatprep.subr.mxu0 0.0
    %2132 = vmatpush1.msra.mxu0 0.0
    %2133 = vmatprep.subr.mxu0 0.0
    %2134 = vmatpush1.msra.mxu0 0.0
    %2135 = vmatprep.subr.mxu0 0.0
    %v2136 = vand.u32 %v43, 4294901760
    %2137 = vmatpush1.msra.mxu0 %v2136
    %2138 = vmatprep.subr.mxu0 0.0
    %2139 = vmatpush2.msra.mxu0 0.0
    %2140 = vmatprep.subr.mxu0 0.0
    %2141 = vmatpush2.msra.mxu0 0.0
    %2142 = vmatprep.subr.mxu0 0.0
    %2143 = vmatpush2.msra.mxu0 0.0
    %2144 = vmatprep.subr.mxu0 0.0
    %2145 = vmatpush2.msra.mxu0 0.0
    %2146 = vmatprep.subr.mxu0 0.0
    %2147 = vmatpush2.msra.mxu0 0.0
    %2148 = vmatprep.subr.mxu0 0.0
    %2149 = vmatpush2.msra.mxu0 0.0
    %2150 = vmatprep.subr.mxu0 0.0
    %2151 = vmatpush2.msra.mxu0 0.0
    %2152 = vmatprep.subr.mxu0 0.0
    %2153 = vmatpush2.msra.mxu0 0.0
    %2154 = vmatprep.subr.mxu0 0.0
    %2155 = vmatpush2.msra.mxu0 0.0
    %2156 = vmatprep.subr.mxu0 0.0
    %2157 = vmatpush2.msra.mxu0 0.0
    %2158 = vmatprep.subr.mxu0 0.0
    %2159 = vmatpush2.msra.mxu0 0.0
    %2160 = vmatprep.subr.mxu0 0.0
    %2161 = vmatpush2.msra.mxu0 0.0
    %2162 = vmatprep.subr.mxu0 0.0
    %2163 = vmatpush2.msra.mxu0 0.0
    %2164 = vmatprep.subr.mxu0 0.0
    %2165 = vmatpush2.msra.mxu0 0.0
    %2166 = vmatprep.subr.mxu0 0.0
    %2167 = vmatpush2.msra.mxu0 0.0
    %2168 = vmatprep.subr.mxu0 0.0
    %2169 = vmatpush2.msra.mxu0 0.0
    %2170 = vmatprep.mubr.f32.mxu0 0.0
    %v2171 = vand.u32 %v2103, 4294901760
    %v2172 = vsub.f32 %v2103, %v2171
    %v2173 = vand.u32 %v2172, 4294901760
    %v2174 = vsub.f32 %v2172, %v2173
    %v2175 = vand.u32 %v2174, 4294901760
    %2176 = vmatmul.mubr.f32.gmra.mxu0 %v2175
    %v2177 = vpop.f32.mrf.mxu0
    %v2178 = vadd.f32 0.0, %v2177
    %v2179 = vpop.f32.mrf.mxu0
    %2180 = vdwg.mxu0
    %2181 = vmatprep.subr.mxu0 0.0
    %2182 = vmatpush1.msra.mxu0 0.0
    %2183 = vmatprep.subr.mxu0 0.0
    %2184 = vmatpush1.msra.mxu0 0.0
    %2185 = vmatprep.subr.mxu0 0.0
    %2186 = vmatpush1.msra.mxu0 0.0
    %2187 = vmatprep.subr.mxu0 0.0
    %2188 = vmatpush1.msra.mxu0 0.0
    %2189 = vmatprep.subr.mxu0 0.0
    %2190 = vmatpush1.msra.mxu0 0.0
    %2191 = vmatprep.subr.mxu0 0.0
    %2192 = vmatpush1.msra.mxu0 0.0
    %2193 = vmatprep.subr.mxu0 0.0
    %2194 = vmatpush1.msra.mxu0 0.0
    %2195 = vmatprep.subr.mxu0 0.0
    %2196 = vmatpush1.msra.mxu0 0.0
    %2197 = vmatprep.subr.mxu0 0.0
    %2198 = vmatpush1.msra.mxu0 0.0
    %2199 = vmatprep.subr.mxu0 0.0
    %2200 = vmatpush1.msra.mxu0 0.0
    %2201 = vmatprep.subr.mxu0 0.0
    %2202 = vmatpush1.msra.mxu0 0.0
    %2203 = vmatprep.subr.mxu0 0.0
    %2204 = vmatpush1.msra.mxu0 0.0
    %2205 = vmatprep.subr.mxu0 0.0
    %2206 = vmatpush1.msra.mxu0 0.0
    %2207 = vmatprep.subr.mxu0 0.0
    %2208 = vmatpush1.msra.mxu0 0.0
    %2209 = vmatprep.subr.mxu0 0.0
    %2210 = vmatpush1.msra.mxu0 0.0
    %2211 = vmatprep.subr.mxu0 0.0
    %v2212 = vand.u32 %v43, 4294901760
    %v2213 = vsub.f32 %v43, %v2212
    %v2214 = vand.u32 %v2213, 4294901760
    %v2215 = vsub.f32 %v2213, %v2214
    %v2216 = vand.u32 %v2215, 4294901760
    %2217 = vmatpush1.msra.mxu0 %v2216
    %2218 = vmatprep.subr.mxu0 0.0
    %2219 = vmatpush2.msra.mxu0 0.0
    %2220 = vmatprep.subr.mxu0 0.0
    %2221 = vmatpush2.msra.mxu0 0.0
    %2222 = vmatprep.subr.mxu0 0.0
    %2223 = vmatpush2.msra.mxu0 0.0
    %2224 = vmatprep.subr.mxu0 0.0
    %2225 = vmatpush2.msra.mxu0 0.0
    %2226 = vmatprep.subr.mxu0 0.0
    %2227 = vmatpush2.msra.mxu0 0.0
    %2228 = vmatprep.subr.mxu0 0.0
    %2229 = vmatpush2.msra.mxu0 0.0
    %2230 = vmatprep.subr.mxu0 0.0
    %2231 = vmatpush2.msra.mxu0 0.0
    %2232 = vmatprep.subr.mxu0 0.0
    %2233 = vmatpush2.msra.mxu0 0.0
    %2234 = vmatprep.subr.mxu0 0.0
    %2235 = vmatpush2.msra.mxu0 0.0
    %2236 = vmatprep.subr.mxu0 0.0
    %2237 = vmatpush2.msra.mxu0 0.0
    %2238 = vmatprep.subr.mxu0 0.0
    %2239 = vmatpush2.msra.mxu0 0.0
    %2240 = vmatprep.subr.mxu0 0.0
    %2241 = vmatpush2.msra.mxu0 0.0
    %2242 = vmatprep.subr.mxu0 0.0
    %2243 = vmatpush2.msra.mxu0 0.0
    %2244 = vmatprep.subr.mxu0 0.0
    %2245 = vmatpush2.msra.mxu0 0.0
    %2246 = vmatprep.subr.mxu0 0.0
    %2247 = vmatpush2.msra.mxu0 0.0
    %2248 = vmatprep.subr.mxu0 0.0
    %2249 = vmatpush2.msra.mxu0 0.0
    %2250 = vmatprep.mubr.f32.mxu0 0.0
    %v2251 = vand.u32 %v2103, 4294901760
    %2252 = vmatmul.mubr.f32.gmra.mxu0 %v2251
    %v2253 = vpop.f32.mrf.mxu0
    %v2254 = vadd.f32 %v2178, %v2253
    %v2255 = vpop.f32.mrf.mxu0
    %2256 = vdwg.mxu0
    %2257 = vmatprep.subr.mxu0 0.0
    %2258 = vmatpush1.msra.mxu0 0.0
    %2259 = vmatprep.subr.mxu0 0.0
    %2260 = vmatpush1.msra.mxu0 0.0
    %2261 = vmatprep.subr.mxu0 0.0
    %2262 = vmatpush1.msra.mxu0 0.0
    %2263 = vmatprep.subr.mxu0 0.0
    %2264 = vmatpush1.msra.mxu0 0.0
    %2265 = vmatprep.subr.mxu0 0.0
    %2266 = vmatpush1.msra.mxu0 0.0
    %2267 = vmatprep.subr.mxu0 0.0
    %2268 = vmatpush1.msra.mxu0 0.0
    %2269 = vmatprep.subr.mxu0 0.0
    %2270 = vmatpush1.msra.mxu0 0.0
    %2271 = vmatprep.subr.mxu0 0.0
    %2272 = vmatpush1.msra.mxu0 0.0
    %2273 = vmatprep.subr.mxu0 0.0
    %2274 = vmatpush1.msra.mxu0 0.0
    %2275 = vmatprep.subr.mxu0 0.0
    %2276 = vmatpush1.msra.mxu0 0.0
    %2277 = vmatprep.subr.mxu0 0.0
    %2278 = vmatpush1.msra.mxu0 0.0
    %2279 = vmatprep.subr.mxu0 0.0
    %2280 = vmatpush1.msra.mxu0 0.0
    %2281 = vmatprep.subr.mxu0 0.0
    %2282 = vmatpush1.msra.mxu0 0.0
    %2283 = vmatprep.subr.mxu0 0.0
    %2284 = vmatpush1.msra.mxu0 0.0
    %2285 = vmatprep.subr.mxu0 0.0
    %2286 = vmatpush1.msra.mxu0 0.0
    %2287 = vmatprep.subr.mxu0 0.0
    %v2288 = vand.u32 %v43, 4294901760
    %v2289 = vsub.f32 %v43, %v2288
    %2290 = vmatpush1.msra.mxu0 %v2289
    %2291 = vmatprep.subr.mxu0 0.0
    %2292 = vmatpush2.msra.mxu0 0.0
    %2293 = vmatprep.subr.mxu0 0.0
    %2294 = vmatpush2.msra.mxu0 0.0
    %2295 = vmatprep.subr.mxu0 0.0
    %2296 = vmatpush2.msra.mxu0 0.0
    %2297 = vmatprep.subr.mxu0 0.0
    %2298 = vmatpush2.msra.mxu0 0.0
    %2299 = vmatprep.subr.mxu0 0.0
    %2300 = vmatpush2.msra.mxu0 0.0
    %2301 = vmatprep.subr.mxu0 0.0
    %2302 = vmatpush2.msra.mxu0 0.0
    %2303 = vmatprep.subr.mxu0 0.0
    %2304 = vmatpush2.msra.mxu0 0.0
    %2305 = vmatprep.subr.mxu0 0.0
    %2306 = vmatpush2.msra.mxu0 0.0
    %2307 = vmatprep.subr.mxu0 0.0
    %2308 = vmatpush2.msra.mxu0 0.0
    %2309 = vmatprep.subr.mxu0 0.0
    %2310 = vmatpush2.msra.mxu0 0.0
    %2311 = vmatprep.subr.mxu0 0.0
    %2312 = vmatpush2.msra.mxu0 0.0
    %2313 = vmatprep.subr.mxu0 0.0
    %2314 = vmatpush2.msra.mxu0 0.0
    %2315 = vmatprep.subr.mxu0 0.0
    %2316 = vmatpush2.msra.mxu0 0.0
    %2317 = vmatprep.subr.mxu0 0.0
    %2318 = vmatpush2.msra.mxu0 0.0
    %2319 = vmatprep.subr.mxu0 0.0
    %2320 = vmatpush2.msra.mxu0 0.0
    %2321 = vmatprep.subr.mxu0 0.0
    %2322 = vmatpush2.msra.mxu0 0.0
    %2323 = vmatprep.mubr.f32.mxu0 0.0
    %v2324 = vand.u32 %v2103, 4294901760
    %v2325 = vsub.f32 %v2103, %v2324
    %2326 = vmatmul.mubr.f32.gmra.mxu0 %v2325
    %v2327 = vpop.f32.mrf.mxu0
    %v2328 = vadd.f32 %v2254, %v2327
    %v2329 = vpop.f32.mrf.mxu0
    %2330 = vdwg.mxu0
    %2331 = vmatprep.subr.mxu0 0.0
    %2332 = vmatpush1.msra.mxu0 0.0
    %2333 = vmatprep.subr.mxu0 0.0
    %2334 = vmatpush1.msra.mxu0 0.0
    %2335 = vmatprep.subr.mxu0 0.0
    %2336 = vmatpush1.msra.mxu0 0.0
    %2337 = vmatprep.subr.mxu0 0.0
    %2338 = vmatpush1.msra.mxu0 0.0
    %2339 = vmatprep.subr.mxu0 0.0
    %2340 = vmatpush1.msra.mxu0 0.0
    %2341 = vmatprep.subr.mxu0 0.0
    %2342 = vmatpush1.msra.mxu0 0.0
    %2343 = vmatprep.subr.mxu0 0.0
    %2344 = vmatpush1.msra.mxu0 0.0
    %2345 = vmatprep.subr.mxu0 0.0
    %2346 = vmatpush1.msra.mxu0 0.0
    %2347 = vmatprep.subr.mxu0 0.0
    %2348 = vmatpush1.msra.mxu0 0.0
    %2349 = vmatprep.subr.mxu0 0.0
    %2350 = vmatpush1.msra.mxu0 0.0
    %2351 = vmatprep.subr.mxu0 0.0
    %2352 = vmatpush1.msra.mxu0 0.0
    %2353 = vmatprep.subr.mxu0 0.0
    %2354 = vmatpush1.msra.mxu0 0.0
    %2355 = vmatprep.subr.mxu0 0.0
    %2356 = vmatpush1.msra.mxu0 0.0
    %2357 = vmatprep.subr.mxu0 0.0
    %2358 = vmatpush1.msra.mxu0 0.0
    %2359 = vmatprep.subr.mxu0 0.0
    %2360 = vmatpush1.msra.mxu0 0.0
    %2361 = vmatprep.subr.mxu0 0.0
    %v2362 = vand.u32 %v43, 4294901760
    %2363 = vmatpush1.msra.mxu0 %v2362
    %2364 = vmatprep.subr.mxu0 0.0
    %2365 = vmatpush2.msra.mxu0 0.0
    %2366 = vmatprep.subr.mxu0 0.0
    %2367 = vmatpush2.msra.mxu0 0.0
    %2368 = vmatprep.subr.mxu0 0.0
    %2369 = vmatpush2.msra.mxu0 0.0
    %2370 = vmatprep.subr.mxu0 0.0
    %2371 = vmatpush2.msra.mxu0 0.0
    %2372 = vmatprep.subr.mxu0 0.0
    %2373 = vmatpush2.msra.mxu0 0.0
    %2374 = vmatprep.subr.mxu0 0.0
    %2375 = vmatpush2.msra.mxu0 0.0
    %2376 = vmatprep.subr.mxu0 0.0
    %2377 = vmatpush2.msra.mxu0 0.0
    %2378 = vmatprep.subr.mxu0 0.0
    %2379 = vmatpush2.msra.mxu0 0.0
    %2380 = vmatprep.subr.mxu0 0.0
    %2381 = vmatpush2.msra.mxu0 0.0
    %2382 = vmatprep.subr.mxu0 0.0
    %2383 = vmatpush2.msra.mxu0 0.0
    %2384 = vmatprep.subr.mxu0 0.0
    %2385 = vmatpush2.msra.mxu0 0.0
    %2386 = vmatprep.subr.mxu0 0.0
    %2387 = vmatpush2.msra.mxu0 0.0
    %2388 = vmatprep.subr.mxu0 0.0
    %2389 = vmatpush2.msra.mxu0 0.0
    %2390 = vmatprep.subr.mxu0 0.0
    %2391 = vmatpush2.msra.mxu0 0.0
    %2392 = vmatprep.subr.mxu0 0.0
    %2393 = vmatpush2.msra.mxu0 0.0
    %2394 = vmatprep.subr.mxu0 0.0
    %2395 = vmatpush2.msra.mxu0 0.0
    %2396 = vmatprep.mubr.f32.mxu0 0.0
    %v2397 = vand.u32 %v2103, 4294901760
    %v2398 = vsub.f32 %v2103, %v2397
    %v2399 = vand.u32 %v2398, 4294901760
    %2400 = vmatmul.mubr.f32.gmra.mxu0 %v2399
    %v2401 = vpop.f32.mrf.mxu0
    %v2402 = vadd.f32 %v2328, %v2401
    %v2403 = vpop.f32.mrf.mxu0
    %2404 = vdwg.mxu0
    %2405 = vmatprep.subr.mxu0 0.0
    %2406 = vmatpush1.msra.mxu0 0.0
    %2407 = vmatprep.subr.mxu0 0.0
    %2408 = vmatpush1.msra.mxu0 0.0
    %2409 = vmatprep.subr.mxu0 0.0
    %2410 = vmatpush1.msra.mxu0 0.0
    %2411 = vmatprep.subr.mxu0 0.0
    %2412 = vmatpush1.msra.mxu0 0.0
    %2413 = vmatprep.subr.mxu0 0.0
    %2414 = vmatpush1.msra.mxu0 0.0
    %2415 = vmatprep.subr.mxu0 0.0
    %2416 = vmatpush1.msra.mxu0 0.0
    %2417 = vmatprep.subr.mxu0 0.0
    %2418 = vmatpush1.msra.mxu0 0.0
    %2419 = vmatprep.subr.mxu0 0.0
    %2420 = vmatpush1.msra.mxu0 0.0
    %2421 = vmatprep.subr.mxu0 0.0
    %2422 = vmatpush1.msra.mxu0 0.0
    %2423 = vmatprep.subr.mxu0 0.0
    %2424 = vmatpush1.msra.mxu0 0.0
    %2425 = vmatprep.subr.mxu0 0.0
    %2426 = vmatpush1.msra.mxu0 0.0
    %2427 = vmatprep.subr.mxu0 0.0
    %2428 = vmatpush1.msra.mxu0 0.0
    %2429 = vmatprep.subr.mxu0 0.0
    %2430 = vmatpush1.msra.mxu0 0.0
    %2431 = vmatprep.subr.mxu0 0.0
    %2432 = vmatpush1.msra.mxu0 0.0
    %2433 = vmatprep.subr.mxu0 0.0
    %2434 = vmatpush1.msra.mxu0 0.0
    %2435 = vmatprep.subr.mxu0 0.0
    %v2436 = vand.u32 %v43, 4294901760
    %v2437 = vsub.f32 %v43, %v2436
    %v2438 = vand.u32 %v2437, 4294901760
    %2439 = vmatpush1.msra.mxu0 %v2438
    %2440 = vmatprep.subr.mxu0 0.0
    %2441 = vmatpush2.msra.mxu0 0.0
    %2442 = vmatprep.subr.mxu0 0.0
    %2443 = vmatpush2.msra.mxu0 0.0
    %2444 = vmatprep.subr.mxu0 0.0
    %2445 = vmatpush2.msra.mxu0 0.0
    %2446 = vmatprep.subr.mxu0 0.0
    %2447 = vmatpush2.msra.mxu0 0.0
    %2448 = vmatprep.subr.mxu0 0.0
    %2449 = vmatpush2.msra.mxu0 0.0
    %2450 = vmatprep.subr.mxu0 0.0
    %2451 = vmatpush2.msra.mxu0 0.0
    %2452 = vmatprep.subr.mxu0 0.0
    %2453 = vmatpush2.msra.mxu0 0.0
    %2454 = vmatprep.subr.mxu0 0.0
    %2455 = vmatpush2.msra.mxu0 0.0
    %2456 = vmatprep.subr.mxu0 0.0
    %2457 = vmatpush2.msra.mxu0 0.0
    %2458 = vmatprep.subr.mxu0 0.0
    %2459 = vmatpush2.msra.mxu0 0.0
    %2460 = vmatprep.subr.mxu0 0.0
    %2461 = vmatpush2.msra.mxu0 0.0
    %2462 = vmatprep.subr.mxu0 0.0
    %2463 = vmatpush2.msra.mxu0 0.0
    %2464 = vmatprep.subr.mxu0 0.0
    %2465 = vmatpush2.msra.mxu0 0.0
    %2466 = vmatprep.subr.mxu0 0.0
    %2467 = vmatpush2.msra.mxu0 0.0
    %2468 = vmatprep.subr.mxu0 0.0
    %2469 = vmatpush2.msra.mxu0 0.0
    %2470 = vmatprep.subr.mxu0 0.0
    %2471 = vmatpush2.msra.mxu0 0.0
    %2472 = vmatprep.mubr.f32.mxu0 0.0
    %v2473 = vand.u32 %v2103, 4294901760
    %2474 = vmatmul.mubr.f32.gmra.mxu0 %v2473
    %v2475 = vpop.f32.mrf.mxu0
    %v2476 = vadd.f32 %v2402, %v2475
    %v2477 = vpop.f32.mrf.mxu0
    %2478 = vdwg.mxu0
    %2479 = vmatprep.subr.mxu0 0.0
    %2480 = vmatpush1.msra.mxu0 0.0
    %2481 = vmatprep.subr.mxu0 0.0
    %2482 = vmatpush1.msra.mxu0 0.0
    %2483 = vmatprep.subr.mxu0 0.0
    %2484 = vmatpush1.msra.mxu0 0.0
    %2485 = vmatprep.subr.mxu0 0.0
    %2486 = vmatpush1.msra.mxu0 0.0
    %2487 = vmatprep.subr.mxu0 0.0
    %2488 = vmatpush1.msra.mxu0 0.0
    %2489 = vmatprep.subr.mxu0 0.0
    %2490 = vmatpush1.msra.mxu0 0.0
    %2491 = vmatprep.subr.mxu0 0.0
    %2492 = vmatpush1.msra.mxu0 0.0
    %2493 = vmatprep.subr.mxu0 0.0
    %2494 = vmatpush1.msra.mxu0 0.0
    %2495 = vmatprep.subr.mxu0 0.0
    %2496 = vmatpush1.msra.mxu0 0.0
    %2497 = vmatprep.subr.mxu0 0.0
    %2498 = vmatpush1.msra.mxu0 0.0
    %2499 = vmatprep.subr.mxu0 0.0
    %2500 = vmatpush1.msra.mxu0 0.0
    %2501 = vmatprep.subr.mxu0 0.0
    %2502 = vmatpush1.msra.mxu0 0.0
    %2503 = vmatprep.subr.mxu0 0.0
    %2504 = vmatpush1.msra.mxu0 0.0
    %2505 = vmatprep.subr.mxu0 0.0
    %2506 = vmatpush1.msra.mxu0 0.0
    %2507 = vmatprep.subr.mxu0 0.0
    %2508 = vmatpush1.msra.mxu0 0.0
    %2509 = vmatprep.subr.mxu0 0.0
    %v2510 = vand.u32 %v43, 4294901760
    %2511 = vmatpush1.msra.mxu0 %v2510
    %2512 = vmatprep.subr.mxu0 0.0
    %2513 = vmatpush2.msra.mxu0 0.0
    %2514 = vmatprep.subr.mxu0 0.0
    %2515 = vmatpush2.msra.mxu0 0.0
    %2516 = vmatprep.subr.mxu0 0.0
    %2517 = vmatpush2.msra.mxu0 0.0
    %2518 = vmatprep.subr.mxu0 0.0
    %2519 = vmatpush2.msra.mxu0 0.0
    %2520 = vmatprep.subr.mxu0 0.0
    %2521 = vmatpush2.msra.mxu0 0.0
    %2522 = vmatprep.subr.mxu0 0.0
    %2523 = vmatpush2.msra.mxu0 0.0
    %2524 = vmatprep.subr.mxu0 0.0
    %2525 = vmatpush2.msra.mxu0 0.0
    %2526 = vmatprep.subr.mxu0 0.0
    %2527 = vmatpush2.msra.mxu0 0.0
    %2528 = vmatprep.subr.mxu0 0.0
    %2529 = vmatpush2.msra.mxu0 0.0
    %2530 = vmatprep.subr.mxu0 0.0
    %2531 = vmatpush2.msra.mxu0 0.0
    %2532 = vmatprep.subr.mxu0 0.0
    %2533 = vmatpush2.msra.mxu0 0.0
    %2534 = vmatprep.subr.mxu0 0.0
    %2535 = vmatpush2.msra.mxu0 0.0
    %2536 = vmatprep.subr.mxu0 0.0
    %2537 = vmatpush2.msra.mxu0 0.0
    %2538 = vmatprep.subr.mxu0 0.0
    %2539 = vmatpush2.msra.mxu0 0.0
    %2540 = vmatprep.subr.mxu0 0.0
    %2541 = vmatpush2.msra.mxu0 0.0
    %2542 = vmatprep.subr.mxu0 0.0
    %2543 = vmatpush2.msra.mxu0 0.0
    %2544 = vmatprep.mubr.f32.mxu0 0.0
    %v2545 = vand.u32 %v2103, 4294901760
    %2546 = vmatmul.mubr.f32.gmra.mxu0 %v2545
    %v2547 = vpop.f32.mrf.mxu0
    %v2548 = vadd.f32 %v2476, %v2547
    %v2549 = vpop.f32.mrf.mxu0
    %2550 = vdwg.mxu0
    %v2551 = vsel %vm155, %v288, 0
    %2553 = vmatprep.subr.mxu0 0.0
    %2554 = vmatpush1.msra.mxu0 0.0
    %2555 = vmatprep.subr.mxu0 0.0
    %2556 = vmatpush1.msra.mxu0 0.0
    %2557 = vmatprep.subr.mxu0 0.0
    %2558 = vmatpush1.msra.mxu0 0.0
    %2559 = vmatprep.subr.mxu0 0.0
    %2560 = vmatpush1.msra.mxu0 0.0
    %2561 = vmatprep.subr.mxu0 0.0
    %2562 = vmatpush1.msra.mxu0 0.0
    %2563 = vmatprep.subr.mxu0 0.0
    %2564 = vmatpush1.msra.mxu0 0.0
    %2565 = vmatprep.subr.mxu0 0.0
    %2566 = vmatpush1.msra.mxu0 0.0
    %2567 = vmatprep.subr.mxu0 0.0
    %2568 = vmatpush1.msra.mxu0 0.0
    %2569 = vmatprep.subr.mxu0 0.0
    %2570 = vmatpush1.msra.mxu0 0.0
    %2571 = vmatprep.subr.mxu0 0.0
    %2572 = vmatpush1.msra.mxu0 0.0
    %2573 = vmatprep.subr.mxu0 0.0
    %2574 = vmatpush1.msra.mxu0 0.0
    %2575 = vmatprep.subr.mxu0 0.0
    %2576 = vmatpush1.msra.mxu0 0.0
    %2577 = vmatprep.subr.mxu0 0.0
    %2578 = vmatpush1.msra.mxu0 0.0
    %2579 = vmatprep.subr.mxu0 0.0
    %2580 = vmatpush1.msra.mxu0 0.0
    %2581 = vmatprep.subr.mxu0 0.0
    %2582 = vmatpush1.msra.mxu0 0.0
    %2583 = vmatprep.subr.mxu0 0.0
    %v2584 = vand.u32 %v44, 4294901760
    %2585 = vmatpush1.msra.mxu0 %v2584
    %2586 = vmatprep.subr.mxu0 0.0
    %2587 = vmatpush2.msra.mxu0 0.0
    %2588 = vmatprep.subr.mxu0 0.0
    %2589 = vmatpush2.msra.mxu0 0.0
    %2590 = vmatprep.subr.mxu0 0.0
    %2591 = vmatpush2.msra.mxu0 0.0
    %2592 = vmatprep.subr.mxu0 0.0
    %2593 = vmatpush2.msra.mxu0 0.0
    %2594 = vmatprep.subr.mxu0 0.0
    %2595 = vmatpush2.msra.mxu0 0.0
    %2596 = vmatprep.subr.mxu0 0.0
    %2597 = vmatpush2.msra.mxu0 0.0
    %2598 = vmatprep.subr.mxu0 0.0
    %2599 = vmatpush2.msra.mxu0 0.0
    %2600 = vmatprep.subr.mxu0 0.0
    %2601 = vmatpush2.msra.mxu0 0.0
    %2602 = vmatprep.subr.mxu0 0.0
    %2603 = vmatpush2.msra.mxu0 0.0
    %2604 = vmatprep.subr.mxu0 0.0
    %2605 = vmatpush2.msra.mxu0 0.0
    %2606 = vmatprep.subr.mxu0 0.0
    %2607 = vmatpush2.msra.mxu0 0.0
    %2608 = vmatprep.subr.mxu0 0.0
    %2609 = vmatpush2.msra.mxu0 0.0
    %2610 = vmatprep.subr.mxu0 0.0
    %2611 = vmatpush2.msra.mxu0 0.0
    %2612 = vmatprep.subr.mxu0 0.0
    %2613 = vmatpush2.msra.mxu0 0.0
    %2614 = vmatprep.subr.mxu0 0.0
    %2615 = vmatpush2.msra.mxu0 0.0
    %2616 = vmatprep.subr.mxu0 0.0
    %2617 = vmatpush2.msra.mxu0 0.0
    %2618 = vmatprep.mubr.f32.mxu0 0.0
    %v2619 = vand.u32 %v2551, 4294901760
    %v2620 = vsub.f32 %v2551, %v2619
    %v2621 = vand.u32 %v2620, 4294901760
    %v2622 = vsub.f32 %v2620, %v2621
    %v2623 = vand.u32 %v2622, 4294901760
    %2624 = vmatmul.mubr.f32.gmra.mxu0 %v2623
    %v2625 = vpop.f32.mrf.mxu0
    %v2626 = vadd.f32 0.0, %v2625
    %v2627 = vpop.f32.mrf.mxu0
    %2628 = vdwg.mxu0
    %2629 = vmatprep.subr.mxu0 0.0
    %2630 = vmatpush1.msra.mxu0 0.0
    %2631 = vmatprep.subr.mxu0 0.0
    %2632 = vmatpush1.msra.mxu0 0.0
    %2633 = vmatprep.subr.mxu0 0.0
    %2634 = vmatpush1.msra.mxu0 0.0
    %2635 = vmatprep.subr.mxu0 0.0
    %2636 = vmatpush1.msra.mxu0 0.0
    %2637 = vmatprep.subr.mxu0 0.0
    %2638 = vmatpush1.msra.mxu0 0.0
    %2639 = vmatprep.subr.mxu0 0.0
    %2640 = vmatpush1.msra.mxu0 0.0
    %2641 = vmatprep.subr.mxu0 0.0
    %2642 = vmatpush1.msra.mxu0 0.0
    %2643 = vmatprep.subr.mxu0 0.0
    %2644 = vmatpush1.msra.mxu0 0.0
    %2645 = vmatprep.subr.mxu0 0.0
    %2646 = vmatpush1.msra.mxu0 0.0
    %2647 = vmatprep.subr.mxu0 0.0
    %2648 = vmatpush1.msra.mxu0 0.0
    %2649 = vmatprep.subr.mxu0 0.0
    %2650 = vmatpush1.msra.mxu0 0.0
    %2651 = vmatprep.subr.mxu0 0.0
    %2652 = vmatpush1.msra.mxu0 0.0
    %2653 = vmatprep.subr.mxu0 0.0
    %2654 = vmatpush1.msra.mxu0 0.0
    %2655 = vmatprep.subr.mxu0 0.0
    %2656 = vmatpush1.msra.mxu0 0.0
    %2657 = vmatprep.subr.mxu0 0.0
    %2658 = vmatpush1.msra.mxu0 0.0
    %2659 = vmatprep.subr.mxu0 0.0
    %v2660 = vand.u32 %v44, 4294901760
    %v2661 = vsub.f32 %v44, %v2660
    %v2662 = vand.u32 %v2661, 4294901760
    %v2663 = vsub.f32 %v2661, %v2662
    %v2664 = vand.u32 %v2663, 4294901760
    %2665 = vmatpush1.msra.mxu0 %v2664
    %2666 = vmatprep.subr.mxu0 0.0
    %2667 = vmatpush2.msra.mxu0 0.0
    %2668 = vmatprep.subr.mxu0 0.0
    %2669 = vmatpush2.msra.mxu0 0.0
    %2670 = vmatprep.subr.mxu0 0.0
    %2671 = vmatpush2.msra.mxu0 0.0
    %2672 = vmatprep.subr.mxu0 0.0
    %2673 = vmatpush2.msra.mxu0 0.0
    %2674 = vmatprep.subr.mxu0 0.0
    %2675 = vmatpush2.msra.mxu0 0.0
    %2676 = vmatprep.subr.mxu0 0.0
    %2677 = vmatpush2.msra.mxu0 0.0
    %2678 = vmatprep.subr.mxu0 0.0
    %2679 = vmatpush2.msra.mxu0 0.0
    %2680 = vmatprep.subr.mxu0 0.0
    %2681 = vmatpush2.msra.mxu0 0.0
    %2682 = vmatprep.subr.mxu0 0.0
    %2683 = vmatpush2.msra.mxu0 0.0
    %2684 = vmatprep.subr.mxu0 0.0
    %2685 = vmatpush2.msra.mxu0 0.0
    %2686 = vmatprep.subr.mxu0 0.0
    %2687 = vmatpush2.msra.mxu0 0.0
    %2688 = vmatprep.subr.mxu0 0.0
    %2689 = vmatpush2.msra.mxu0 0.0
    %2690 = vmatprep.subr.mxu0 0.0
    %2691 = vmatpush2.msra.mxu0 0.0
    %2692 = vmatprep.subr.mxu0 0.0
    %2693 = vmatpush2.msra.mxu0 0.0
    %2694 = vmatprep.subr.mxu0 0.0
    %2695 = vmatpush2.msra.mxu0 0.0
    %2696 = vmatprep.subr.mxu0 0.0
    %2697 = vmatpush2.msra.mxu0 0.0
    %2698 = vmatprep.mubr.f32.mxu0 0.0
    %v2699 = vand.u32 %v2551, 4294901760
    %2700 = vmatmul.mubr.f32.gmra.mxu0 %v2699
    %v2701 = vpop.f32.mrf.mxu0
    %v2702 = vadd.f32 %v2626, %v2701
    %v2703 = vpop.f32.mrf.mxu0
    %2704 = vdwg.mxu0
    %2705 = vmatprep.subr.mxu0 0.0
    %2706 = vmatpush1.msra.mxu0 0.0
    %2707 = vmatprep.subr.mxu0 0.0
    %2708 = vmatpush1.msra.mxu0 0.0
    %2709 = vmatprep.subr.mxu0 0.0
    %2710 = vmatpush1.msra.mxu0 0.0
    %2711 = vmatprep.subr.mxu0 0.0
    %2712 = vmatpush1.msra.mxu0 0.0
    %2713 = vmatprep.subr.mxu0 0.0
    %2714 = vmatpush1.msra.mxu0 0.0
    %2715 = vmatprep.subr.mxu0 0.0
    %2716 = vmatpush1.msra.mxu0 0.0
    %2717 = vmatprep.subr.mxu0 0.0
    %2718 = vmatpush1.msra.mxu0 0.0
    %2719 = vmatprep.subr.mxu0 0.0
    %2720 = vmatpush1.msra.mxu0 0.0
    %2721 = vmatprep.subr.mxu0 0.0
    %2722 = vmatpush1.msra.mxu0 0.0
    %2723 = vmatprep.subr.mxu0 0.0
    %2724 = vmatpush1.msra.mxu0 0.0
    %2725 = vmatprep.subr.mxu0 0.0
    %2726 = vmatpush1.msra.mxu0 0.0
    %2727 = vmatprep.subr.mxu0 0.0
    %2728 = vmatpush1.msra.mxu0 0.0
    %2729 = vmatprep.subr.mxu0 0.0
    %2730 = vmatpush1.msra.mxu0 0.0
    %2731 = vmatprep.subr.mxu0 0.0
    %2732 = vmatpush1.msra.mxu0 0.0
    %2733 = vmatprep.subr.mxu0 0.0
    %2734 = vmatpush1.msra.mxu0 0.0
    %2735 = vmatprep.subr.mxu0 0.0
    %v2736 = vand.u32 %v44, 4294901760
    %v2737 = vsub.f32 %v44, %v2736
    %2738 = vmatpush1.msra.mxu0 %v2737
    %2739 = vmatprep.subr.mxu0 0.0
    %2740 = vmatpush2.msra.mxu0 0.0
    %2741 = vmatprep.subr.mxu0 0.0
    %2742 = vmatpush2.msra.mxu0 0.0
    %2743 = vmatprep.subr.mxu0 0.0
    %2744 = vmatpush2.msra.mxu0 0.0
    %2745 = vmatprep.subr.mxu0 0.0
    %2746 = vmatpush2.msra.mxu0 0.0
    %2747 = vmatprep.subr.mxu0 0.0
    %2748 = vmatpush2.msra.mxu0 0.0
    %2749 = vmatprep.subr.mxu0 0.0
    %2750 = vmatpush2.msra.mxu0 0.0
    %2751 = vmatprep.subr.mxu0 0.0
    %2752 = vmatpush2.msra.mxu0 0.0
    %2753 = vmatprep.subr.mxu0 0.0
    %2754 = vmatpush2.msra.mxu0 0.0
    %2755 = vmatprep.subr.mxu0 0.0
    %2756 = vmatpush2.msra.mxu0 0.0
    %2757 = vmatprep.subr.mxu0 0.0
    %2758 = vmatpush2.msra.mxu0 0.0
    %2759 = vmatprep.subr.mxu0 0.0
    %2760 = vmatpush2.msra.mxu0 0.0
    %2761 = vmatprep.subr.mxu0 0.0
    %2762 = vmatpush2.msra.mxu0 0.0
    %2763 = vmatprep.subr.mxu0 0.0
    %2764 = vmatpush2.msra.mxu0 0.0
    %2765 = vmatprep.subr.mxu0 0.0
    %2766 = vmatpush2.msra.mxu0 0.0
    %2767 = vmatprep.subr.mxu0 0.0
    %2768 = vmatpush2.msra.mxu0 0.0
    %2769 = vmatprep.subr.mxu0 0.0
    %2770 = vmatpush2.msra.mxu0 0.0
    %2771 = vmatprep.mubr.f32.mxu0 0.0
    %v2772 = vand.u32 %v2551, 4294901760
    %v2773 = vsub.f32 %v2551, %v2772
    %2774 = vmatmul.mubr.f32.gmra.mxu0 %v2773
    %v2775 = vpop.f32.mrf.mxu0
    %v2776 = vadd.f32 %v2702, %v2775
    %v2777 = vpop.f32.mrf.mxu0
    %2778 = vdwg.mxu0
    %2779 = vmatprep.subr.mxu0 0.0
    %2780 = vmatpush1.msra.mxu0 0.0
    %2781 = vmatprep.subr.mxu0 0.0
    %2782 = vmatpush1.msra.mxu0 0.0
    %2783 = vmatprep.subr.mxu0 0.0
    %2784 = vmatpush1.msra.mxu0 0.0
    %2785 = vmatprep.subr.mxu0 0.0
    %2786 = vmatpush1.msra.mxu0 0.0
    %2787 = vmatprep.subr.mxu0 0.0
    %2788 = vmatpush1.msra.mxu0 0.0
    %2789 = vmatprep.subr.mxu0 0.0
    %2790 = vmatpush1.msra.mxu0 0.0
    %2791 = vmatprep.subr.mxu0 0.0
    %2792 = vmatpush1.msra.mxu0 0.0
    %2793 = vmatprep.subr.mxu0 0.0
    %2794 = vmatpush1.msra.mxu0 0.0
    %2795 = vmatprep.subr.mxu0 0.0
    %2796 = vmatpush1.msra.mxu0 0.0
    %2797 = vmatprep.subr.mxu0 0.0
    %2798 = vmatpush1.msra.mxu0 0.0
    %2799 = vmatprep.subr.mxu0 0.0
    %2800 = vmatpush1.msra.mxu0 0.0
    %2801 = vmatprep.subr.mxu0 0.0
    %2802 = vmatpush1.msra.mxu0 0.0
    %2803 = vmatprep.subr.mxu0 0.0
    %2804 = vmatpush1.msra.mxu0 0.0
    %2805 = vmatprep.subr.mxu0 0.0
    %2806 = vmatpush1.msra.mxu0 0.0
    %2807 = vmatprep.subr.mxu0 0.0
    %2808 = vmatpush1.msra.mxu0 0.0
    %2809 = vmatprep.subr.mxu0 0.0
    %v2810 = vand.u32 %v44, 4294901760
    %2811 = vmatpush1.msra.mxu0 %v2810
    %2812 = vmatprep.subr.mxu0 0.0
    %2813 = vmatpush2.msra.mxu0 0.0
    %2814 = vmatprep.subr.mxu0 0.0
    %2815 = vmatpush2.msra.mxu0 0.0
    %2816 = vmatprep.subr.mxu0 0.0
    %2817 = vmatpush2.msra.mxu0 0.0
    %2818 = vmatprep.subr.mxu0 0.0
    %2819 = vmatpush2.msra.mxu0 0.0
    %2820 = vmatprep.subr.mxu0 0.0
    %2821 = vmatpush2.msra.mxu0 0.0
    %2822 = vmatprep.subr.mxu0 0.0
    %2823 = vmatpush2.msra.mxu0 0.0
    %2824 = vmatprep.subr.mxu0 0.0
    %2825 = vmatpush2.msra.mxu0 0.0
    %2826 = vmatprep.subr.mxu0 0.0
    %2827 = vmatpush2.msra.mxu0 0.0
    %2828 = vmatprep.subr.mxu0 0.0
    %2829 = vmatpush2.msra.mxu0 0.0
    %2830 = vmatprep.subr.mxu0 0.0
    %2831 = vmatpush2.msra.mxu0 0.0
    %2832 = vmatprep.subr.mxu0 0.0
    %2833 = vmatpush2.msra.mxu0 0.0
    %2834 = vmatprep.subr.mxu0 0.0
    %2835 = vmatpush2.msra.mxu0 0.0
    %2836 = vmatprep.subr.mxu0 0.0
    %2837 = vmatpush2.msra.mxu0 0.0
    %2838 = vmatprep.subr.mxu0 0.0
    %2839 = vmatpush2.msra.mxu0 0.0
    %2840 = vmatprep.subr.mxu0 0.0
    %2841 = vmatpush2.msra.mxu0 0.0
    %2842 = vmatprep.subr.mxu0 0.0
    %2843 = vmatpush2.msra.mxu0 0.0
    %2844 = vmatprep.mubr.f32.mxu0 0.0
    %v2845 = vand.u32 %v2551, 4294901760
    %v2846 = vsub.f32 %v2551, %v2845
    %v2847 = vand.u32 %v2846, 4294901760
    %2848 = vmatmul.mubr.f32.gmra.mxu0 %v2847
    %v2849 = vpop.f32.mrf.mxu0
    %v2850 = vadd.f32 %v2776, %v2849
    %v2851 = vpop.f32.mrf.mxu0
    %2852 = vdwg.mxu0
    %2853 = vmatprep.subr.mxu0 0.0
    %2854 = vmatpush1.msra.mxu0 0.0
    %2855 = vmatprep.subr.mxu0 0.0
    %2856 = vmatpush1.msra.mxu0 0.0
    %2857 = vmatprep.subr.mxu0 0.0
    %2858 = vmatpush1.msra.mxu0 0.0
    %2859 = vmatprep.subr.mxu0 0.0
    %2860 = vmatpush1.msra.mxu0 0.0
    %2861 = vmatprep.subr.mxu0 0.0
    %2862 = vmatpush1.msra.mxu0 0.0
    %2863 = vmatprep.subr.mxu0 0.0
    %2864 = vmatpush1.msra.mxu0 0.0
    %2865 = vmatprep.subr.mxu0 0.0
    %2866 = vmatpush1.msra.mxu0 0.0
    %2867 = vmatprep.subr.mxu0 0.0
    %2868 = vmatpush1.msra.mxu0 0.0
    %2869 = vmatprep.subr.mxu0 0.0
    %2870 = vmatpush1.msra.mxu0 0.0
    %2871 = vmatprep.subr.mxu0 0.0
    %2872 = vmatpush1.msra.mxu0 0.0
    %2873 = vmatprep.subr.mxu0 0.0
    %2874 = vmatpush1.msra.mxu0 0.0
    %2875 = vmatprep.subr.mxu0 0.0
    %2876 = vmatpush1.msra.mxu0 0.0
    %2877 = vmatprep.subr.mxu0 0.0
    %2878 = vmatpush1.msra.mxu0 0.0
    %2879 = vmatprep.subr.mxu0 0.0
    %2880 = vmatpush1.msra.mxu0 0.0
    %2881 = vmatprep.subr.mxu0 0.0
    %2882 = vmatpush1.msra.mxu0 0.0
    %2883 = vmatprep.subr.mxu0 0.0
    %v2884 = vand.u32 %v44, 4294901760
    %v2885 = vsub.f32 %v44, %v2884
    %v2886 = vand.u32 %v2885, 4294901760
    %2887 = vmatpush1.msra.mxu0 %v2886
    %2888 = vmatprep.subr.mxu0 0.0
    %2889 = vmatpush2.msra.mxu0 0.0
    %2890 = vmatprep.subr.mxu0 0.0
    %2891 = vmatpush2.msra.mxu0 0.0
    %2892 = vmatprep.subr.mxu0 0.0
    %2893 = vmatpush2.msra.mxu0 0.0
    %2894 = vmatprep.subr.mxu0 0.0
    %2895 = vmatpush2.msra.mxu0 0.0
    %2896 = vmatprep.subr.mxu0 0.0
    %2897 = vmatpush2.msra.mxu0 0.0
    %2898 = vmatprep.subr.mxu0 0.0
    %2899 = vmatpush2.msra.mxu0 0.0
    %2900 = vmatprep.subr.mxu0 0.0
    %2901 = vmatpush2.msra.mxu0 0.0
    %2902 = vmatprep.subr.mxu0 0.0
    %2903 = vmatpush2.msra.mxu0 0.0
    %2904 = vmatprep.subr.mxu0 0.0
    %2905 = vmatpush2.msra.mxu0 0.0
    %2906 = vmatprep.subr.mxu0 0.0
    %2907 = vmatpush2.msra.mxu0 0.0
    %2908 = vmatprep.subr.mxu0 0.0
    %2909 = vmatpush2.msra.mxu0 0.0
    %2910 = vmatprep.subr.mxu0 0.0
    %2911 = vmatpush2.msra.mxu0 0.0
    %2912 = vmatprep.subr.mxu0 0.0
    %2913 = vmatpush2.msra.mxu0 0.0
    %2914 = vmatprep.subr.mxu0 0.0
    %2915 = vmatpush2.msra.mxu0 0.0
    %2916 = vmatprep.subr.mxu0 0.0
    %2917 = vmatpush2.msra.mxu0 0.0
    %2918 = vmatprep.subr.mxu0 0.0
    %2919 = vmatpush2.msra.mxu0 0.0
    %2920 = vmatprep.mubr.f32.mxu0 0.0
    %v2921 = vand.u32 %v2551, 4294901760
    %2922 = vmatmul.mubr.f32.gmra.mxu0 %v2921
    %v2923 = vpop.f32.mrf.mxu0
    %v2924 = vadd.f32 %v2850, %v2923
    %v2925 = vpop.f32.mrf.mxu0
    %2926 = vdwg.mxu0
    %2927 = vmatprep.subr.mxu0 0.0
    %2928 = vmatpush1.msra.mxu0 0.0
    %2929 = vmatprep.subr.mxu0 0.0
    %2930 = vmatpush1.msra.mxu0 0.0
    %2931 = vmatprep.subr.mxu0 0.0
    %2932 = vmatpush1.msra.mxu0 0.0
    %2933 = vmatprep.subr.mxu0 0.0
    %2934 = vmatpush1.msra.mxu0 0.0
    %2935 = vmatprep.subr.mxu0 0.0
    %2936 = vmatpush1.msra.mxu0 0.0
    %2937 = vmatprep.subr.mxu0 0.0
    %2938 = vmatpush1.msra.mxu0 0.0
    %2939 = vmatprep.subr.mxu0 0.0
    %2940 = vmatpush1.msra.mxu0 0.0
    %2941 = vmatprep.subr.mxu0 0.0
    %2942 = vmatpush1.msra.mxu0 0.0
    %2943 = vmatprep.subr.mxu0 0.0
    %2944 = vmatpush1.msra.mxu0 0.0
    %2945 = vmatprep.subr.mxu0 0.0
    %2946 = vmatpush1.msra.mxu0 0.0
    %2947 = vmatprep.subr.mxu0 0.0
    %2948 = vmatpush1.msra.mxu0 0.0
    %2949 = vmatprep.subr.mxu0 0.0
    %2950 = vmatpush1.msra.mxu0 0.0
    %2951 = vmatprep.subr.mxu0 0.0
    %2952 = vmatpush1.msra.mxu0 0.0
    %2953 = vmatprep.subr.mxu0 0.0
    %2954 = vmatpush1.msra.mxu0 0.0
    %2955 = vmatprep.subr.mxu0 0.0
    %2956 = vmatpush1.msra.mxu0 0.0
    %2957 = vmatprep.subr.mxu0 0.0
    %v2958 = vand.u32 %v44, 4294901760
    %2959 = vmatpush1.msra.mxu0 %v2958
    %2960 = vmatprep.subr.mxu0 0.0
    %2961 = vmatpush2.msra.mxu0 0.0
    %2962 = vmatprep.subr.mxu0 0.0
    %2963 = vmatpush2.msra.mxu0 0.0
    %2964 = vmatprep.subr.mxu0 0.0
    %2965 = vmatpush2.msra.mxu0 0.0
    %2966 = vmatprep.subr.mxu0 0.0
    %2967 = vmatpush2.msra.mxu0 0.0
    %2968 = vmatprep.subr.mxu0 0.0
    %2969 = vmatpush2.msra.mxu0 0.0
    %2970 = vmatprep.subr.mxu0 0.0
    %2971 = vmatpush2.msra.mxu0 0.0
    %2972 = vmatprep.subr.mxu0 0.0
    %2973 = vmatpush2.msra.mxu0 0.0
    %2974 = vmatprep.subr.mxu0 0.0
    %2975 = vmatpush2.msra.mxu0 0.0
    %2976 = vmatprep.subr.mxu0 0.0
    %2977 = vmatpush2.msra.mxu0 0.0
    %2978 = vmatprep.subr.mxu0 0.0
    %2979 = vmatpush2.msra.mxu0 0.0
    %2980 = vmatprep.subr.mxu0 0.0
    %2981 = vmatpush2.msra.mxu0 0.0
    %2982 = vmatprep.subr.mxu0 0.0
    %2983 = vmatpush2.msra.mxu0 0.0
    %2984 = vmatprep.subr.mxu0 0.0
    %2985 = vmatpush2.msra.mxu0 0.0
    %2986 = vmatprep.subr.mxu0 0.0
    %2987 = vmatpush2.msra.mxu0 0.0
    %2988 = vmatprep.subr.mxu0 0.0
    %2989 = vmatpush2.msra.mxu0 0.0
    %2990 = vmatprep.subr.mxu0 0.0
    %2991 = vmatpush2.msra.mxu0 0.0
    %2992 = vmatprep.mubr.f32.mxu0 0.0
    %v2993 = vand.u32 %v2551, 4294901760
    %2994 = vmatmul.mubr.f32.gmra.mxu0 %v2993
    %v2995 = vpop.f32.mrf.mxu0
    %v2996 = vadd.f32 %v2924, %v2995
    %v2997 = vpop.f32.mrf.mxu0
    %2998 = vdwg.mxu0
    %v2999 = vsel %vm155, %v292, 0
    %3001 = vmatprep.subr.mxu0 0.0
    %3002 = vmatpush1.msra.mxu0 0.0
    %3003 = vmatprep.subr.mxu0 0.0
    %3004 = vmatpush1.msra.mxu0 0.0
    %3005 = vmatprep.subr.mxu0 0.0
    %3006 = vmatpush1.msra.mxu0 0.0
    %3007 = vmatprep.subr.mxu0 0.0
    %3008 = vmatpush1.msra.mxu0 0.0
    %3009 = vmatprep.subr.mxu0 0.0
    %3010 = vmatpush1.msra.mxu0 0.0
    %3011 = vmatprep.subr.mxu0 0.0
    %3012 = vmatpush1.msra.mxu0 0.0
    %3013 = vmatprep.subr.mxu0 0.0
    %3014 = vmatpush1.msra.mxu0 0.0
    %3015 = vmatprep.subr.mxu0 0.0
    %3016 = vmatpush1.msra.mxu0 0.0
    %3017 = vmatprep.subr.mxu0 0.0
    %3018 = vmatpush1.msra.mxu0 0.0
    %3019 = vmatprep.subr.mxu0 0.0
    %3020 = vmatpush1.msra.mxu0 0.0
    %3021 = vmatprep.subr.mxu0 0.0
    %3022 = vmatpush1.msra.mxu0 0.0
    %3023 = vmatprep.subr.mxu0 0.0
    %3024 = vmatpush1.msra.mxu0 0.0
    %3025 = vmatprep.subr.mxu0 0.0
    %3026 = vmatpush1.msra.mxu0 0.0
    %3027 = vmatprep.subr.mxu0 0.0
    %3028 = vmatpush1.msra.mxu0 0.0
    %3029 = vmatprep.subr.mxu0 0.0
    %3030 = vmatpush1.msra.mxu0 0.0
    %3031 = vmatprep.subr.mxu0 0.0
    %v3032 = vand.u32 %v45, 4294901760
    %3033 = vmatpush1.msra.mxu0 %v3032
    %3034 = vmatprep.subr.mxu0 0.0
    %3035 = vmatpush2.msra.mxu0 0.0
    %3036 = vmatprep.subr.mxu0 0.0
    %3037 = vmatpush2.msra.mxu0 0.0
    %3038 = vmatprep.subr.mxu0 0.0
    %3039 = vmatpush2.msra.mxu0 0.0
    %3040 = vmatprep.subr.mxu0 0.0
    %3041 = vmatpush2.msra.mxu0 0.0
    %3042 = vmatprep.subr.mxu0 0.0
    %3043 = vmatpush2.msra.mxu0 0.0
    %3044 = vmatprep.subr.mxu0 0.0
    %3045 = vmatpush2.msra.mxu0 0.0
    %3046 = vmatprep.subr.mxu0 0.0
    %3047 = vmatpush2.msra.mxu0 0.0
    %3048 = vmatprep.subr.mxu0 0.0
    %3049 = vmatpush2.msra.mxu0 0.0
    %3050 = vmatprep.subr.mxu0 0.0
    %3051 = vmatpush2.msra.mxu0 0.0
    %3052 = vmatprep.subr.mxu0 0.0
    %3053 = vmatpush2.msra.mxu0 0.0
    %3054 = vmatprep.subr.mxu0 0.0
    %3055 = vmatpush2.msra.mxu0 0.0
    %3056 = vmatprep.subr.mxu0 0.0
    %3057 = vmatpush2.msra.mxu0 0.0
    %3058 = vmatprep.subr.mxu0 0.0
    %3059 = vmatpush2.msra.mxu0 0.0
    %3060 = vmatprep.subr.mxu0 0.0
    %3061 = vmatpush2.msra.mxu0 0.0
    %3062 = vmatprep.subr.mxu0 0.0
    %3063 = vmatpush2.msra.mxu0 0.0
    %3064 = vmatprep.subr.mxu0 0.0
    %3065 = vmatpush2.msra.mxu0 0.0
    %3066 = vmatprep.mubr.f32.mxu0 0.0
    %v3067 = vand.u32 %v2999, 4294901760
    %v3068 = vsub.f32 %v2999, %v3067
    %v3069 = vand.u32 %v3068, 4294901760
    %v3070 = vsub.f32 %v3068, %v3069
    %v3071 = vand.u32 %v3070, 4294901760
    %3072 = vmatmul.mubr.f32.gmra.mxu0 %v3071
    %v3073 = vpop.f32.mrf.mxu0
    %v3074 = vadd.f32 0.0, %v3073
    %v3075 = vpop.f32.mrf.mxu0
    %3076 = vdwg.mxu0
    %3077 = vmatprep.subr.mxu0 0.0
    %3078 = vmatpush1.msra.mxu0 0.0
    %3079 = vmatprep.subr.mxu0 0.0
    %3080 = vmatpush1.msra.mxu0 0.0
    %3081 = vmatprep.subr.mxu0 0.0
    %3082 = vmatpush1.msra.mxu0 0.0
    %3083 = vmatprep.subr.mxu0 0.0
    %3084 = vmatpush1.msra.mxu0 0.0
    %3085 = vmatprep.subr.mxu0 0.0
    %3086 = vmatpush1.msra.mxu0 0.0
    %3087 = vmatprep.subr.mxu0 0.0
    %3088 = vmatpush1.msra.mxu0 0.0
    %3089 = vmatprep.subr.mxu0 0.0
    %3090 = vmatpush1.msra.mxu0 0.0
    %3091 = vmatprep.subr.mxu0 0.0
    %3092 = vmatpush1.msra.mxu0 0.0
    %3093 = vmatprep.subr.mxu0 0.0
    %3094 = vmatpush1.msra.mxu0 0.0
    %3095 = vmatprep.subr.mxu0 0.0
    %3096 = vmatpush1.msra.mxu0 0.0
    %3097 = vmatprep.subr.mxu0 0.0
    %3098 = vmatpush1.msra.mxu0 0.0
    %3099 = vmatprep.subr.mxu0 0.0
    %3100 = vmatpush1.msra.mxu0 0.0
    %3101 = vmatprep.subr.mxu0 0.0
    %3102 = vmatpush1.msra.mxu0 0.0
    %3103 = vmatprep.subr.mxu0 0.0
    %3104 = vmatpush1.msra.mxu0 0.0
    %3105 = vmatprep.subr.mxu0 0.0
    %3106 = vmatpush1.msra.mxu0 0.0
    %3107 = vmatprep.subr.mxu0 0.0
    %v3108 = vand.u32 %v45, 4294901760
    %v3109 = vsub.f32 %v45, %v3108
    %v3110 = vand.u32 %v3109, 4294901760
    %v3111 = vsub.f32 %v3109, %v3110
    %v3112 = vand.u32 %v3111, 4294901760
    %3113 = vmatpush1.msra.mxu0 %v3112
    %3114 = vmatprep.subr.mxu0 0.0
    %3115 = vmatpush2.msra.mxu0 0.0
    %3116 = vmatprep.subr.mxu0 0.0
    %3117 = vmatpush2.msra.mxu0 0.0
    %3118 = vmatprep.subr.mxu0 0.0
    %3119 = vmatpush2.msra.mxu0 0.0
    %3120 = vmatprep.subr.mxu0 0.0
    %3121 = vmatpush2.msra.mxu0 0.0
    %3122 = vmatprep.subr.mxu0 0.0
    %3123 = vmatpush2.msra.mxu0 0.0
    %3124 = vmatprep.subr.mxu0 0.0
    %3125 = vmatpush2.msra.mxu0 0.0
    %3126 = vmatprep.subr.mxu0 0.0
    %3127 = vmatpush2.msra.mxu0 0.0
    %3128 = vmatprep.subr.mxu0 0.0
    %3129 = vmatpush2.msra.mxu0 0.0
    %3130 = vmatprep.subr.mxu0 0.0
    %3131 = vmatpush2.msra.mxu0 0.0
    %3132 = vmatprep.subr.mxu0 0.0
    %3133 = vmatpush2.msra.mxu0 0.0
    %3134 = vmatprep.subr.mxu0 0.0
    %3135 = vmatpush2.msra.mxu0 0.0
    %3136 = vmatprep.subr.mxu0 0.0
    %3137 = vmatpush2.msra.mxu0 0.0
    %3138 = vmatprep.subr.mxu0 0.0
    %3139 = vmatpush2.msra.mxu0 0.0
    %3140 = vmatprep.subr.mxu0 0.0
    %3141 = vmatpush2.msra.mxu0 0.0
    %3142 = vmatprep.subr.mxu0 0.0
    %3143 = vmatpush2.msra.mxu0 0.0
    %3144 = vmatprep.subr.mxu0 0.0
    %3145 = vmatpush2.msra.mxu0 0.0
    %3146 = vmatprep.mubr.f32.mxu0 0.0
    %v3147 = vand.u32 %v2999, 4294901760
    %3148 = vmatmul.mubr.f32.gmra.mxu0 %v3147
    %v3149 = vpop.f32.mrf.mxu0
    %v3150 = vadd.f32 %v3074, %v3149
    %v3151 = vpop.f32.mrf.mxu0
    %3152 = vdwg.mxu0
    %3153 = vmatprep.subr.mxu0 0.0
    %3154 = vmatpush1.msra.mxu0 0.0
    %3155 = vmatprep.subr.mxu0 0.0
    %3156 = vmatpush1.msra.mxu0 0.0
    %3157 = vmatprep.subr.mxu0 0.0
    %3158 = vmatpush1.msra.mxu0 0.0
    %3159 = vmatprep.subr.mxu0 0.0
    %3160 = vmatpush1.msra.mxu0 0.0
    %3161 = vmatprep.subr.mxu0 0.0
    %3162 = vmatpush1.msra.mxu0 0.0
    %3163 = vmatprep.subr.mxu0 0.0
    %3164 = vmatpush1.msra.mxu0 0.0
    %3165 = vmatprep.subr.mxu0 0.0
    %3166 = vmatpush1.msra.mxu0 0.0
    %3167 = vmatprep.subr.mxu0 0.0
    %3168 = vmatpush1.msra.mxu0 0.0
    %3169 = vmatprep.subr.mxu0 0.0
    %3170 = vmatpush1.msra.mxu0 0.0
    %3171 = vmatprep.subr.mxu0 0.0
    %3172 = vmatpush1.msra.mxu0 0.0
    %3173 = vmatprep.subr.mxu0 0.0
    %3174 = vmatpush1.msra.mxu0 0.0
    %3175 = vmatprep.subr.mxu0 0.0
    %3176 = vmatpush1.msra.mxu0 0.0
    %3177 = vmatprep.subr.mxu0 0.0
    %3178 = vmatpush1.msra.mxu0 0.0
    %3179 = vmatprep.subr.mxu0 0.0
    %3180 = vmatpush1.msra.mxu0 0.0
    %3181 = vmatprep.subr.mxu0 0.0
    %3182 = vmatpush1.msra.mxu0 0.0
    %3183 = vmatprep.subr.mxu0 0.0
    %v3184 = vand.u32 %v45, 4294901760
    %v3185 = vsub.f32 %v45, %v3184
    %3186 = vmatpush1.msra.mxu0 %v3185
    %3187 = vmatprep.subr.mxu0 0.0
    %3188 = vmatpush2.msra.mxu0 0.0
    %3189 = vmatprep.subr.mxu0 0.0
    %3190 = vmatpush2.msra.mxu0 0.0
    %3191 = vmatprep.subr.mxu0 0.0
    %3192 = vmatpush2.msra.mxu0 0.0
    %3193 = vmatprep.subr.mxu0 0.0
    %3194 = vmatpush2.msra.mxu0 0.0
    %3195 = vmatprep.subr.mxu0 0.0
    %3196 = vmatpush2.msra.mxu0 0.0
    %3197 = vmatprep.subr.mxu0 0.0
    %3198 = vmatpush2.msra.mxu0 0.0
    %3199 = vmatprep.subr.mxu0 0.0
    %3200 = vmatpush2.msra.mxu0 0.0
    %3201 = vmatprep.subr.mxu0 0.0
    %3202 = vmatpush2.msra.mxu0 0.0
    %3203 = vmatprep.subr.mxu0 0.0
    %3204 = vmatpush2.msra.mxu0 0.0
    %3205 = vmatprep.subr.mxu0 0.0
    %3206 = vmatpush2.msra.mxu0 0.0
    %3207 = vmatprep.subr.mxu0 0.0
    %3208 = vmatpush2.msra.mxu0 0.0
    %3209 = vmatprep.subr.mxu0 0.0
    %3210 = vmatpush2.msra.mxu0 0.0
    %3211 = vmatprep.subr.mxu0 0.0
    %3212 = vmatpush2.msra.mxu0 0.0
    %3213 = vmatprep.subr.mxu0 0.0
    %3214 = vmatpush2.msra.mxu0 0.0
    %3215 = vmatprep.subr.mxu0 0.0
    %3216 = vmatpush2.msra.mxu0 0.0
    %3217 = vmatprep.subr.mxu0 0.0
    %3218 = vmatpush2.msra.mxu0 0.0
    %3219 = vmatprep.mubr.f32.mxu0 0.0
    %v3220 = vand.u32 %v2999, 4294901760
    %v3221 = vsub.f32 %v2999, %v3220
    %3222 = vmatmul.mubr.f32.gmra.mxu0 %v3221
    %v3223 = vpop.f32.mrf.mxu0
    %v3224 = vadd.f32 %v3150, %v3223
    %v3225 = vpop.f32.mrf.mxu0
    %3226 = vdwg.mxu0
    %3227 = vmatprep.subr.mxu0 0.0
    %3228 = vmatpush1.msra.mxu0 0.0
    %3229 = vmatprep.subr.mxu0 0.0
    %3230 = vmatpush1.msra.mxu0 0.0
    %3231 = vmatprep.subr.mxu0 0.0
    %3232 = vmatpush1.msra.mxu0 0.0
    %3233 = vmatprep.subr.mxu0 0.0
    %3234 = vmatpush1.msra.mxu0 0.0
    %3235 = vmatprep.subr.mxu0 0.0
    %3236 = vmatpush1.msra.mxu0 0.0
    %3237 = vmatprep.subr.mxu0 0.0
    %3238 = vmatpush1.msra.mxu0 0.0
    %3239 = vmatprep.subr.mxu0 0.0
    %3240 = vmatpush1.msra.mxu0 0.0
    %3241 = vmatprep.subr.mxu0 0.0
    %3242 = vmatpush1.msra.mxu0 0.0
    %3243 = vmatprep.subr.mxu0 0.0
    %3244 = vmatpush1.msra.mxu0 0.0
    %3245 = vmatprep.subr.mxu0 0.0
    %3246 = vmatpush1.msra.mxu0 0.0
    %3247 = vmatprep.subr.mxu0 0.0
    %3248 = vmatpush1.msra.mxu0 0.0
    %3249 = vmatprep.subr.mxu0 0.0
    %3250 = vmatpush1.msra.mxu0 0.0
    %3251 = vmatprep.subr.mxu0 0.0
    %3252 = vmatpush1.msra.mxu0 0.0
    %3253 = vmatprep.subr.mxu0 0.0
    %3254 = vmatpush1.msra.mxu0 0.0
    %3255 = vmatprep.subr.mxu0 0.0
    %3256 = vmatpush1.msra.mxu0 0.0
    %3257 = vmatprep.subr.mxu0 0.0
    %v3258 = vand.u32 %v45, 4294901760
    %3259 = vmatpush1.msra.mxu0 %v3258
    %3260 = vmatprep.subr.mxu0 0.0
    %3261 = vmatpush2.msra.mxu0 0.0
    %3262 = vmatprep.subr.mxu0 0.0
    %3263 = vmatpush2.msra.mxu0 0.0
    %3264 = vmatprep.subr.mxu0 0.0
    %3265 = vmatpush2.msra.mxu0 0.0
    %3266 = vmatprep.subr.mxu0 0.0
    %3267 = vmatpush2.msra.mxu0 0.0
    %3268 = vmatprep.subr.mxu0 0.0
    %3269 = vmatpush2.msra.mxu0 0.0
    %3270 = vmatprep.subr.mxu0 0.0
    %3271 = vmatpush2.msra.mxu0 0.0
    %3272 = vmatprep.subr.mxu0 0.0
    %3273 = vmatpush2.msra.mxu0 0.0
    %3274 = vmatprep.subr.mxu0 0.0
    %3275 = vmatpush2.msra.mxu0 0.0
    %3276 = vmatprep.subr.mxu0 0.0
    %3277 = vmatpush2.msra.mxu0 0.0
    %3278 = vmatprep.subr.mxu0 0.0
    %3279 = vmatpush2.msra.mxu0 0.0
    %3280 = vmatprep.subr.mxu0 0.0
    %3281 = vmatpush2.msra.mxu0 0.0
    %3282 = vmatprep.subr.mxu0 0.0
    %3283 = vmatpush2.msra.mxu0 0.0
    %3284 = vmatprep.subr.mxu0 0.0
    %3285 = vmatpush2.msra.mxu0 0.0
    %3286 = vmatprep.subr.mxu0 0.0
    %3287 = vmatpush2.msra.mxu0 0.0
    %3288 = vmatprep.subr.mxu0 0.0
    %3289 = vmatpush2.msra.mxu0 0.0
    %3290 = vmatprep.subr.mxu0 0.0
    %3291 = vmatpush2.msra.mxu0 0.0
    %3292 = vmatprep.mubr.f32.mxu0 0.0
    %v3293 = vand.u32 %v2999, 4294901760
    %v3294 = vsub.f32 %v2999, %v3293
    %v3295 = vand.u32 %v3294, 4294901760
    %3296 = vmatmul.mubr.f32.gmra.mxu0 %v3295
    %v3297 = vpop.f32.mrf.mxu0
    %v3298 = vadd.f32 %v3224, %v3297
    %v3299 = vpop.f32.mrf.mxu0
    %3300 = vdwg.mxu0
    %3301 = vmatprep.subr.mxu0 0.0
    %3302 = vmatpush1.msra.mxu0 0.0
    %3303 = vmatprep.subr.mxu0 0.0
    %3304 = vmatpush1.msra.mxu0 0.0
    %3305 = vmatprep.subr.mxu0 0.0
    %3306 = vmatpush1.msra.mxu0 0.0
    %3307 = vmatprep.subr.mxu0 0.0
    %3308 = vmatpush1.msra.mxu0 0.0
    %3309 = vmatprep.subr.mxu0 0.0
    %3310 = vmatpush1.msra.mxu0 0.0
    %3311 = vmatprep.subr.mxu0 0.0
    %3312 = vmatpush1.msra.mxu0 0.0
    %3313 = vmatprep.subr.mxu0 0.0
    %3314 = vmatpush1.msra.mxu0 0.0
    %3315 = vmatprep.subr.mxu0 0.0
    %3316 = vmatpush1.msra.mxu0 0.0
    %3317 = vmatprep.subr.mxu0 0.0
    %3318 = vmatpush1.msra.mxu0 0.0
    %3319 = vmatprep.subr.mxu0 0.0
    %3320 = vmatpush1.msra.mxu0 0.0
    %3321 = vmatprep.subr.mxu0 0.0
    %3322 = vmatpush1.msra.mxu0 0.0
    %3323 = vmatprep.subr.mxu0 0.0
    %3324 = vmatpush1.msra.mxu0 0.0
    %3325 = vmatprep.subr.mxu0 0.0
    %3326 = vmatpush1.msra.mxu0 0.0
    %3327 = vmatprep.subr.mxu0 0.0
    %3328 = vmatpush1.msra.mxu0 0.0
    %3329 = vmatprep.subr.mxu0 0.0
    %3330 = vmatpush1.msra.mxu0 0.0
    %3331 = vmatprep.subr.mxu0 0.0
    %v3332 = vand.u32 %v45, 4294901760
    %v3333 = vsub.f32 %v45, %v3332
    %v3334 = vand.u32 %v3333, 4294901760
    %3335 = vmatpush1.msra.mxu0 %v3334
    %3336 = vmatprep.subr.mxu0 0.0
    %3337 = vmatpush2.msra.mxu0 0.0
    %3338 = vmatprep.subr.mxu0 0.0
    %3339 = vmatpush2.msra.mxu0 0.0
    %3340 = vmatprep.subr.mxu0 0.0
    %3341 = vmatpush2.msra.mxu0 0.0
    %3342 = vmatprep.subr.mxu0 0.0
    %3343 = vmatpush2.msra.mxu0 0.0
    %3344 = vmatprep.subr.mxu0 0.0
    %3345 = vmatpush2.msra.mxu0 0.0
    %3346 = vmatprep.subr.mxu0 0.0
    %3347 = vmatpush2.msra.mxu0 0.0
    %3348 = vmatprep.subr.mxu0 0.0
    %3349 = vmatpush2.msra.mxu0 0.0
    %3350 = vmatprep.subr.mxu0 0.0
    %3351 = vmatpush2.msra.mxu0 0.0
    %3352 = vmatprep.subr.mxu0 0.0
    %3353 = vmatpush2.msra.mxu0 0.0
    %3354 = vmatprep.subr.mxu0 0.0
    %3355 = vmatpush2.msra.mxu0 0.0
    %3356 = vmatprep.subr.mxu0 0.0
    %3357 = vmatpush2.msra.mxu0 0.0
    %3358 = vmatprep.subr.mxu0 0.0
    %3359 = vmatpush2.msra.mxu0 0.0
    %3360 = vmatprep.subr.mxu0 0.0
    %3361 = vmatpush2.msra.mxu0 0.0
    %3362 = vmatprep.subr.mxu0 0.0
    %3363 = vmatpush2.msra.mxu0 0.0
    %3364 = vmatprep.subr.mxu0 0.0
    %3365 = vmatpush2.msra.mxu0 0.0
    %3366 = vmatprep.subr.mxu0 0.0
    %3367 = vmatpush2.msra.mxu0 0.0
    %3368 = vmatprep.mubr.f32.mxu0 0.0
    %v3369 = vand.u32 %v2999, 4294901760
    %3370 = vmatmul.mubr.f32.gmra.mxu0 %v3369
    %v3371 = vpop.f32.mrf.mxu0
    %v3372 = vadd.f32 %v3298, %v3371
    %v3373 = vpop.f32.mrf.mxu0
    %3374 = vdwg.mxu0
    %3375 = vmatprep.subr.mxu0 0.0
    %3376 = vmatpush1.msra.mxu0 0.0
    %3377 = vmatprep.subr.mxu0 0.0
    %3378 = vmatpush1.msra.mxu0 0.0
    %3379 = vmatprep.subr.mxu0 0.0
    %3380 = vmatpush1.msra.mxu0 0.0
    %3381 = vmatprep.subr.mxu0 0.0
    %3382 = vmatpush1.msra.mxu0 0.0
    %3383 = vmatprep.subr.mxu0 0.0
    %3384 = vmatpush1.msra.mxu0 0.0
    %3385 = vmatprep.subr.mxu0 0.0
    %3386 = vmatpush1.msra.mxu0 0.0
    %3387 = vmatprep.subr.mxu0 0.0
    %3388 = vmatpush1.msra.mxu0 0.0
    %3389 = vmatprep.subr.mxu0 0.0
    %3390 = vmatpush1.msra.mxu0 0.0
    %3391 = vmatprep.subr.mxu0 0.0
    %3392 = vmatpush1.msra.mxu0 0.0
    %3393 = vmatprep.subr.mxu0 0.0
    %3394 = vmatpush1.msra.mxu0 0.0
    %3395 = vmatprep.subr.mxu0 0.0
    %3396 = vmatpush1.msra.mxu0 0.0
    %3397 = vmatprep.subr.mxu0 0.0
    %3398 = vmatpush1.msra.mxu0 0.0
    %3399 = vmatprep.subr.mxu0 0.0
    %3400 = vmatpush1.msra.mxu0 0.0
    %3401 = vmatprep.subr.mxu0 0.0
    %3402 = vmatpush1.msra.mxu0 0.0
    %3403 = vmatprep.subr.mxu0 0.0
    %3404 = vmatpush1.msra.mxu0 0.0
    %3405 = vmatprep.subr.mxu0 0.0
    %v3406 = vand.u32 %v45, 4294901760
    %3407 = vmatpush1.msra.mxu0 %v3406
    %3408 = vmatprep.subr.mxu0 0.0
    %3409 = vmatpush2.msra.mxu0 0.0
    %3410 = vmatprep.subr.mxu0 0.0
    %3411 = vmatpush2.msra.mxu0 0.0
    %3412 = vmatprep.subr.mxu0 0.0
    %3413 = vmatpush2.msra.mxu0 0.0
    %3414 = vmatprep.subr.mxu0 0.0
    %3415 = vmatpush2.msra.mxu0 0.0
    %3416 = vmatprep.subr.mxu0 0.0
    %3417 = vmatpush2.msra.mxu0 0.0
    %3418 = vmatprep.subr.mxu0 0.0
    %3419 = vmatpush2.msra.mxu0 0.0
    %3420 = vmatprep.subr.mxu0 0.0
    %3421 = vmatpush2.msra.mxu0 0.0
    %3422 = vmatprep.subr.mxu0 0.0
    %3423 = vmatpush2.msra.mxu0 0.0
    %3424 = vmatprep.subr.mxu0 0.0
    %3425 = vmatpush2.msra.mxu0 0.0
    %3426 = vmatprep.subr.mxu0 0.0
    %3427 = vmatpush2.msra.mxu0 0.0
    %3428 = vmatprep.subr.mxu0 0.0
    %3429 = vmatpush2.msra.mxu0 0.0
    %3430 = vmatprep.subr.mxu0 0.0
    %3431 = vmatpush2.msra.mxu0 0.0
    %3432 = vmatprep.subr.mxu0 0.0
    %3433 = vmatpush2.msra.mxu0 0.0
    %3434 = vmatprep.subr.mxu0 0.0
    %3435 = vmatpush2.msra.mxu0 0.0
    %3436 = vmatprep.subr.mxu0 0.0
    %3437 = vmatpush2.msra.mxu0 0.0
    %3438 = vmatprep.subr.mxu0 0.0
    %3439 = vmatpush2.msra.mxu0 0.0
    %3440 = vmatprep.mubr.f32.mxu0 0.0
    %v3441 = vand.u32 %v2999, 4294901760
    %3442 = vmatmul.mubr.f32.gmra.mxu0 %v3441
    %v3443 = vpop.f32.mrf.mxu0
    %v3444 = vadd.f32 %v3372, %v3443
    %v3445 = vpop.f32.mrf.mxu0
    %3446 = vdwg.mxu0
    %v3447 = vsel %vm155, %v296, 0
    %3449 = vmatprep.subr.mxu0 0.0
    %3450 = vmatpush1.msra.mxu0 0.0
    %3451 = vmatprep.subr.mxu0 0.0
    %3452 = vmatpush1.msra.mxu0 0.0
    %3453 = vmatprep.subr.mxu0 0.0
    %3454 = vmatpush1.msra.mxu0 0.0
    %3455 = vmatprep.subr.mxu0 0.0
    %3456 = vmatpush1.msra.mxu0 0.0
    %3457 = vmatprep.subr.mxu0 0.0
    %3458 = vmatpush1.msra.mxu0 0.0
    %3459 = vmatprep.subr.mxu0 0.0
    %3460 = vmatpush1.msra.mxu0 0.0
    %3461 = vmatprep.subr.mxu0 0.0
    %3462 = vmatpush1.msra.mxu0 0.0
    %3463 = vmatprep.subr.mxu0 0.0
    %3464 = vmatpush1.msra.mxu0 0.0
    %3465 = vmatprep.subr.mxu0 0.0
    %3466 = vmatpush1.msra.mxu0 0.0
    %3467 = vmatprep.subr.mxu0 0.0
    %3468 = vmatpush1.msra.mxu0 0.0
    %3469 = vmatprep.subr.mxu0 0.0
    %3470 = vmatpush1.msra.mxu0 0.0
    %3471 = vmatprep.subr.mxu0 0.0
    %3472 = vmatpush1.msra.mxu0 0.0
    %3473 = vmatprep.subr.mxu0 0.0
    %3474 = vmatpush1.msra.mxu0 0.0
    %3475 = vmatprep.subr.mxu0 0.0
    %3476 = vmatpush1.msra.mxu0 0.0
    %3477 = vmatprep.subr.mxu0 0.0
    %3478 = vmatpush1.msra.mxu0 0.0
    %3479 = vmatprep.subr.mxu0 0.0
    %v3480 = vand.u32 %v46, 4294901760
    %3481 = vmatpush1.msra.mxu0 %v3480
    %3482 = vmatprep.subr.mxu0 0.0
    %3483 = vmatpush2.msra.mxu0 0.0
    %3484 = vmatprep.subr.mxu0 0.0
    %3485 = vmatpush2.msra.mxu0 0.0
    %3486 = vmatprep.subr.mxu0 0.0
    %3487 = vmatpush2.msra.mxu0 0.0
    %3488 = vmatprep.subr.mxu0 0.0
    %3489 = vmatpush2.msra.mxu0 0.0
    %3490 = vmatprep.subr.mxu0 0.0
    %3491 = vmatpush2.msra.mxu0 0.0
    %3492 = vmatprep.subr.mxu0 0.0
    %3493 = vmatpush2.msra.mxu0 0.0
    %3494 = vmatprep.subr.mxu0 0.0
    %3495 = vmatpush2.msra.mxu0 0.0
    %3496 = vmatprep.subr.mxu0 0.0
    %3497 = vmatpush2.msra.mxu0 0.0
    %3498 = vmatprep.subr.mxu0 0.0
    %3499 = vmatpush2.msra.mxu0 0.0
    %3500 = vmatprep.subr.mxu0 0.0
    %3501 = vmatpush2.msra.mxu0 0.0
    %3502 = vmatprep.subr.mxu0 0.0
    %3503 = vmatpush2.msra.mxu0 0.0
    %3504 = vmatprep.subr.mxu0 0.0
    %3505 = vmatpush2.msra.mxu0 0.0
    %3506 = vmatprep.subr.mxu0 0.0
    %3507 = vmatpush2.msra.mxu0 0.0
    %3508 = vmatprep.subr.mxu0 0.0
    %3509 = vmatpush2.msra.mxu0 0.0
    %3510 = vmatprep.subr.mxu0 0.0
    %3511 = vmatpush2.msra.mxu0 0.0
    %3512 = vmatprep.subr.mxu0 0.0
    %3513 = vmatpush2.msra.mxu0 0.0
    %3514 = vmatprep.mubr.f32.mxu0 0.0
    %v3515 = vand.u32 %v3447, 4294901760
    %v3516 = vsub.f32 %v3447, %v3515
    %v3517 = vand.u32 %v3516, 4294901760
    %v3518 = vsub.f32 %v3516, %v3517
    %v3519 = vand.u32 %v3518, 4294901760
    %3520 = vmatmul.mubr.f32.gmra.mxu0 %v3519
    %v3521 = vpop.f32.mrf.mxu0
    %v3522 = vadd.f32 0.0, %v3521
    %v3523 = vpop.f32.mrf.mxu0
    %3524 = vdwg.mxu0
    %3525 = vmatprep.subr.mxu0 0.0
    %3526 = vmatpush1.msra.mxu0 0.0
    %3527 = vmatprep.subr.mxu0 0.0
    %3528 = vmatpush1.msra.mxu0 0.0
    %3529 = vmatprep.subr.mxu0 0.0
    %3530 = vmatpush1.msra.mxu0 0.0
    %3531 = vmatprep.subr.mxu0 0.0
    %3532 = vmatpush1.msra.mxu0 0.0
    %3533 = vmatprep.subr.mxu0 0.0
    %3534 = vmatpush1.msra.mxu0 0.0
    %3535 = vmatprep.subr.mxu0 0.0
    %3536 = vmatpush1.msra.mxu0 0.0
    %3537 = vmatprep.subr.mxu0 0.0
    %3538 = vmatpush1.msra.mxu0 0.0
    %3539 = vmatprep.subr.mxu0 0.0
    %3540 = vmatpush1.msra.mxu0 0.0
    %3541 = vmatprep.subr.mxu0 0.0
    %3542 = vmatpush1.msra.mxu0 0.0
    %3543 = vmatprep.subr.mxu0 0.0
    %3544 = vmatpush1.msra.mxu0 0.0
    %3545 = vmatprep.subr.mxu0 0.0
    %3546 = vmatpush1.msra.mxu0 0.0
    %3547 = vmatprep.subr.mxu0 0.0
    %3548 = vmatpush1.msra.mxu0 0.0
    %3549 = vmatprep.subr.mxu0 0.0
    %3550 = vmatpush1.msra.mxu0 0.0
    %3551 = vmatprep.subr.mxu0 0.0
    %3552 = vmatpush1.msra.mxu0 0.0
    %3553 = vmatprep.subr.mxu0 0.0
    %3554 = vmatpush1.msra.mxu0 0.0
    %3555 = vmatprep.subr.mxu0 0.0
    %v3556 = vand.u32 %v46, 4294901760
    %v3557 = vsub.f32 %v46, %v3556
    %v3558 = vand.u32 %v3557, 4294901760
    %v3559 = vsub.f32 %v3557, %v3558
    %v3560 = vand.u32 %v3559, 4294901760
    %3561 = vmatpush1.msra.mxu0 %v3560
    %3562 = vmatprep.subr.mxu0 0.0
    %3563 = vmatpush2.msra.mxu0 0.0
    %3564 = vmatprep.subr.mxu0 0.0
    %3565 = vmatpush2.msra.mxu0 0.0
    %3566 = vmatprep.subr.mxu0 0.0
    %3567 = vmatpush2.msra.mxu0 0.0
    %3568 = vmatprep.subr.mxu0 0.0
    %3569 = vmatpush2.msra.mxu0 0.0
    %3570 = vmatprep.subr.mxu0 0.0
    %3571 = vmatpush2.msra.mxu0 0.0
    %3572 = vmatprep.subr.mxu0 0.0
    %3573 = vmatpush2.msra.mxu0 0.0
    %3574 = vmatprep.subr.mxu0 0.0
    %3575 = vmatpush2.msra.mxu0 0.0
    %3576 = vmatprep.subr.mxu0 0.0
    %3577 = vmatpush2.msra.mxu0 0.0
    %3578 = vmatprep.subr.mxu0 0.0
    %3579 = vmatpush2.msra.mxu0 0.0
    %3580 = vmatprep.subr.mxu0 0.0
    %3581 = vmatpush2.msra.mxu0 0.0
    %3582 = vmatprep.subr.mxu0 0.0
    %3583 = vmatpush2.msra.mxu0 0.0
    %3584 = vmatprep.subr.mxu0 0.0
    %3585 = vmatpush2.msra.mxu0 0.0
    %3586 = vmatprep.subr.mxu0 0.0
    %3587 = vmatpush2.msra.mxu0 0.0
    %3588 = vmatprep.subr.mxu0 0.0
    %3589 = vmatpush2.msra.mxu0 0.0
    %3590 = vmatprep.subr.mxu0 0.0
    %3591 = vmatpush2.msra.mxu0 0.0
    %3592 = vmatprep.subr.mxu0 0.0
    %3593 = vmatpush2.msra.mxu0 0.0
    %3594 = vmatprep.mubr.f32.mxu0 0.0
    %v3595 = vand.u32 %v3447, 4294901760
    %3596 = vmatmul.mubr.f32.gmra.mxu0 %v3595
    %v3597 = vpop.f32.mrf.mxu0
    %v3598 = vadd.f32 %v3522, %v3597
    %v3599 = vpop.f32.mrf.mxu0
    %3600 = vdwg.mxu0
    %3601 = vmatprep.subr.mxu0 0.0
    %3602 = vmatpush1.msra.mxu0 0.0
    %3603 = vmatprep.subr.mxu0 0.0
    %3604 = vmatpush1.msra.mxu0 0.0
    %3605 = vmatprep.subr.mxu0 0.0
    %3606 = vmatpush1.msra.mxu0 0.0
    %3607 = vmatprep.subr.mxu0 0.0
    %3608 = vmatpush1.msra.mxu0 0.0
    %3609 = vmatprep.subr.mxu0 0.0
    %3610 = vmatpush1.msra.mxu0 0.0
    %3611 = vmatprep.subr.mxu0 0.0
    %3612 = vmatpush1.msra.mxu0 0.0
    %3613 = vmatprep.subr.mxu0 0.0
    %3614 = vmatpush1.msra.mxu0 0.0
    %3615 = vmatprep.subr.mxu0 0.0
    %3616 = vmatpush1.msra.mxu0 0.0
    %3617 = vmatprep.subr.mxu0 0.0
    %3618 = vmatpush1.msra.mxu0 0.0
    %3619 = vmatprep.subr.mxu0 0.0
    %3620 = vmatpush1.msra.mxu0 0.0
    %3621 = vmatprep.subr.mxu0 0.0
    %3622 = vmatpush1.msra.mxu0 0.0
    %3623 = vmatprep.subr.mxu0 0.0
    %3624 = vmatpush1.msra.mxu0 0.0
    %3625 = vmatprep.subr.mxu0 0.0
    %3626 = vmatpush1.msra.mxu0 0.0
    %3627 = vmatprep.subr.mxu0 0.0
    %3628 = vmatpush1.msra.mxu0 0.0
    %3629 = vmatprep.subr.mxu0 0.0
    %3630 = vmatpush1.msra.mxu0 0.0
    %3631 = vmatprep.subr.mxu0 0.0
    %v3632 = vand.u32 %v46, 4294901760
    %v3633 = vsub.f32 %v46, %v3632
    %3634 = vmatpush1.msra.mxu0 %v3633
    %3635 = vmatprep.subr.mxu0 0.0
    %3636 = vmatpush2.msra.mxu0 0.0
    %3637 = vmatprep.subr.mxu0 0.0
    %3638 = vmatpush2.msra.mxu0 0.0
    %3639 = vmatprep.subr.mxu0 0.0
    %3640 = vmatpush2.msra.mxu0 0.0
    %3641 = vmatprep.subr.mxu0 0.0
    %3642 = vmatpush2.msra.mxu0 0.0
    %3643 = vmatprep.subr.mxu0 0.0
    %3644 = vmatpush2.msra.mxu0 0.0
    %3645 = vmatprep.subr.mxu0 0.0
    %3646 = vmatpush2.msra.mxu0 0.0
    %3647 = vmatprep.subr.mxu0 0.0
    %3648 = vmatpush2.msra.mxu0 0.0
    %3649 = vmatprep.subr.mxu0 0.0
    %3650 = vmatpush2.msra.mxu0 0.0
    %3651 = vmatprep.subr.mxu0 0.0
    %3652 = vmatpush2.msra.mxu0 0.0
    %3653 = vmatprep.subr.mxu0 0.0
    %3654 = vmatpush2.msra.mxu0 0.0
    %3655 = vmatprep.subr.mxu0 0.0
    %3656 = vmatpush2.msra.mxu0 0.0
    %3657 = vmatprep.subr.mxu0 0.0
    %3658 = vmatpush2.msra.mxu0 0.0
    %3659 = vmatprep.subr.mxu0 0.0
    %3660 = vmatpush2.msra.mxu0 0.0
    %3661 = vmatprep.subr.mxu0 0.0
    %3662 = vmatpush2.msra.mxu0 0.0
    %3663 = vmatprep.subr.mxu0 0.0
    %3664 = vmatpush2.msra.mxu0 0.0
    %3665 = vmatprep.subr.mxu0 0.0
    %3666 = vmatpush2.msra.mxu0 0.0
    %3667 = vmatprep.mubr.f32.mxu0 0.0
    %v3668 = vand.u32 %v3447, 4294901760
    %v3669 = vsub.f32 %v3447, %v3668
    %3670 = vmatmul.mubr.f32.gmra.mxu0 %v3669
    %v3671 = vpop.f32.mrf.mxu0
    %v3672 = vadd.f32 %v3598, %v3671
    %v3673 = vpop.f32.mrf.mxu0
    %3674 = vdwg.mxu0
    %3675 = vmatprep.subr.mxu0 0.0
    %3676 = vmatpush1.msra.mxu0 0.0
    %3677 = vmatprep.subr.mxu0 0.0
    %3678 = vmatpush1.msra.mxu0 0.0
    %3679 = vmatprep.subr.mxu0 0.0
    %3680 = vmatpush1.msra.mxu0 0.0
    %3681 = vmatprep.subr.mxu0 0.0
    %3682 = vmatpush1.msra.mxu0 0.0
    %3683 = vmatprep.subr.mxu0 0.0
    %3684 = vmatpush1.msra.mxu0 0.0
    %3685 = vmatprep.subr.mxu0 0.0
    %3686 = vmatpush1.msra.mxu0 0.0
    %3687 = vmatprep.subr.mxu0 0.0
    %3688 = vmatpush1.msra.mxu0 0.0
    %3689 = vmatprep.subr.mxu0 0.0
    %3690 = vmatpush1.msra.mxu0 0.0
    %3691 = vmatprep.subr.mxu0 0.0
    %3692 = vmatpush1.msra.mxu0 0.0
    %3693 = vmatprep.subr.mxu0 0.0
    %3694 = vmatpush1.msra.mxu0 0.0
    %3695 = vmatprep.subr.mxu0 0.0
    %3696 = vmatpush1.msra.mxu0 0.0
    %3697 = vmatprep.subr.mxu0 0.0
    %3698 = vmatpush1.msra.mxu0 0.0
    %3699 = vmatprep.subr.mxu0 0.0
    %3700 = vmatpush1.msra.mxu0 0.0
    %3701 = vmatprep.subr.mxu0 0.0
    %3702 = vmatpush1.msra.mxu0 0.0
    %3703 = vmatprep.subr.mxu0 0.0
    %3704 = vmatpush1.msra.mxu0 0.0
    %3705 = vmatprep.subr.mxu0 0.0
    %v3706 = vand.u32 %v46, 4294901760
    %3707 = vmatpush1.msra.mxu0 %v3706
    %3708 = vmatprep.subr.mxu0 0.0
    %3709 = vmatpush2.msra.mxu0 0.0
    %3710 = vmatprep.subr.mxu0 0.0
    %3711 = vmatpush2.msra.mxu0 0.0
    %3712 = vmatprep.subr.mxu0 0.0
    %3713 = vmatpush2.msra.mxu0 0.0
    %3714 = vmatprep.subr.mxu0 0.0
    %3715 = vmatpush2.msra.mxu0 0.0
    %3716 = vmatprep.subr.mxu0 0.0
    %3717 = vmatpush2.msra.mxu0 0.0
    %3718 = vmatprep.subr.mxu0 0.0
    %3719 = vmatpush2.msra.mxu0 0.0
    %3720 = vmatprep.subr.mxu0 0.0
    %3721 = vmatpush2.msra.mxu0 0.0
    %3722 = vmatprep.subr.mxu0 0.0
    %3723 = vmatpush2.msra.mxu0 0.0
    %3724 = vmatprep.subr.mxu0 0.0
    %3725 = vmatpush2.msra.mxu0 0.0
    %3726 = vmatprep.subr.mxu0 0.0
    %3727 = vmatpush2.msra.mxu0 0.0
    %3728 = vmatprep.subr.mxu0 0.0
    %3729 = vmatpush2.msra.mxu0 0.0
    %3730 = vmatprep.subr.mxu0 0.0
    %3731 = vmatpush2.msra.mxu0 0.0
    %3732 = vmatprep.subr.mxu0 0.0
    %3733 = vmatpush2.msra.mxu0 0.0
    %3734 = vmatprep.subr.mxu0 0.0
    %3735 = vmatpush2.msra.mxu0 0.0
    %3736 = vmatprep.subr.mxu0 0.0
    %3737 = vmatpush2.msra.mxu0 0.0
    %3738 = vmatprep.subr.mxu0 0.0
    %3739 = vmatpush2.msra.mxu0 0.0
    %3740 = vmatprep.mubr.f32.mxu0 0.0
    %v3741 = vand.u32 %v3447, 4294901760
    %v3742 = vsub.f32 %v3447, %v3741
    %v3743 = vand.u32 %v3742, 4294901760
    %3744 = vmatmul.mubr.f32.gmra.mxu0 %v3743
    %v3745 = vpop.f32.mrf.mxu0
    %v3746 = vadd.f32 %v3672, %v3745
    %v3747 = vpop.f32.mrf.mxu0
    %3748 = vdwg.mxu0
    %3749 = vmatprep.subr.mxu0 0.0
    %3750 = vmatpush1.msra.mxu0 0.0
    %3751 = vmatprep.subr.mxu0 0.0
    %3752 = vmatpush1.msra.mxu0 0.0
    %3753 = vmatprep.subr.mxu0 0.0
    %3754 = vmatpush1.msra.mxu0 0.0
    %3755 = vmatprep.subr.mxu0 0.0
    %3756 = vmatpush1.msra.mxu0 0.0
    %3757 = vmatprep.subr.mxu0 0.0
    %3758 = vmatpush1.msra.mxu0 0.0
    %3759 = vmatprep.subr.mxu0 0.0
    %3760 = vmatpush1.msra.mxu0 0.0
    %3761 = vmatprep.subr.mxu0 0.0
    %3762 = vmatpush1.msra.mxu0 0.0
    %3763 = vmatprep.subr.mxu0 0.0
    %3764 = vmatpush1.msra.mxu0 0.0
    %3765 = vmatprep.subr.mxu0 0.0
    %3766 = vmatpush1.msra.mxu0 0.0
    %3767 = vmatprep.subr.mxu0 0.0
    %3768 = vmatpush1.msra.mxu0 0.0
    %3769 = vmatprep.subr.mxu0 0.0
    %3770 = vmatpush1.msra.mxu0 0.0
    %3771 = vmatprep.subr.mxu0 0.0
    %3772 = vmatpush1.msra.mxu0 0.0
    %3773 = vmatprep.subr.mxu0 0.0
    %3774 = vmatpush1.msra.mxu0 0.0
    %3775 = vmatprep.subr.mxu0 0.0
    %3776 = vmatpush1.msra.mxu0 0.0
    %3777 = vmatprep.subr.mxu0 0.0
    %3778 = vmatpush1.msra.mxu0 0.0
    %3779 = vmatprep.subr.mxu0 0.0
    %v3780 = vand.u32 %v46, 4294901760
    %v3781 = vsub.f32 %v46, %v3780
    %v3782 = vand.u32 %v3781, 4294901760
    %3783 = vmatpush1.msra.mxu0 %v3782
    %3784 = vmatprep.subr.mxu0 0.0
    %3785 = vmatpush2.msra.mxu0 0.0
    %3786 = vmatprep.subr.mxu0 0.0
    %3787 = vmatpush2.msra.mxu0 0.0
    %3788 = vmatprep.subr.mxu0 0.0
    %3789 = vmatpush2.msra.mxu0 0.0
    %3790 = vmatprep.subr.mxu0 0.0
    %3791 = vmatpush2.msra.mxu0 0.0
    %3792 = vmatprep.subr.mxu0 0.0
    %3793 = vmatpush2.msra.mxu0 0.0
    %3794 = vmatprep.subr.mxu0 0.0
    %3795 = vmatpush2.msra.mxu0 0.0
    %3796 = vmatprep.subr.mxu0 0.0
    %3797 = vmatpush2.msra.mxu0 0.0
    %3798 = vmatprep.subr.mxu0 0.0
    %3799 = vmatpush2.msra.mxu0 0.0
    %3800 = vmatprep.subr.mxu0 0.0
    %3801 = vmatpush2.msra.mxu0 0.0
    %3802 = vmatprep.subr.mxu0 0.0
    %3803 = vmatpush2.msra.mxu0 0.0
    %3804 = vmatprep.subr.mxu0 0.0
    %3805 = vmatpush2.msra.mxu0 0.0
    %3806 = vmatprep.subr.mxu0 0.0
    %3807 = vmatpush2.msra.mxu0 0.0
    %3808 = vmatprep.subr.mxu0 0.0
    %3809 = vmatpush2.msra.mxu0 0.0
    %3810 = vmatprep.subr.mxu0 0.0
    %3811 = vmatpush2.msra.mxu0 0.0
    %3812 = vmatprep.subr.mxu0 0.0
    %3813 = vmatpush2.msra.mxu0 0.0
    %3814 = vmatprep.subr.mxu0 0.0
    %3815 = vmatpush2.msra.mxu0 0.0
    %3816 = vmatprep.mubr.f32.mxu0 0.0
    %v3817 = vand.u32 %v3447, 4294901760
    %3818 = vmatmul.mubr.f32.gmra.mxu0 %v3817
    %v3819 = vpop.f32.mrf.mxu0
    %v3820 = vadd.f32 %v3746, %v3819
    %v3821 = vpop.f32.mrf.mxu0
    %3822 = vdwg.mxu0
    %3823 = vmatprep.subr.mxu0 0.0
    %3824 = vmatpush1.msra.mxu0 0.0
    %3825 = vmatprep.subr.mxu0 0.0
    %3826 = vmatpush1.msra.mxu0 0.0
    %3827 = vmatprep.subr.mxu0 0.0
    %3828 = vmatpush1.msra.mxu0 0.0
    %3829 = vmatprep.subr.mxu0 0.0
    %3830 = vmatpush1.msra.mxu0 0.0
    %3831 = vmatprep.subr.mxu0 0.0
    %3832 = vmatpush1.msra.mxu0 0.0
    %3833 = vmatprep.subr.mxu0 0.0
    %3834 = vmatpush1.msra.mxu0 0.0
    %3835 = vmatprep.subr.mxu0 0.0
    %3836 = vmatpush1.msra.mxu0 0.0
    %3837 = vmatprep.subr.mxu0 0.0
    %3838 = vmatpush1.msra.mxu0 0.0
    %3839 = vmatprep.subr.mxu0 0.0
    %3840 = vmatpush1.msra.mxu0 0.0
    %3841 = vmatprep.subr.mxu0 0.0
    %3842 = vmatpush1.msra.mxu0 0.0
    %3843 = vmatprep.subr.mxu0 0.0
    %3844 = vmatpush1.msra.mxu0 0.0
    %3845 = vmatprep.subr.mxu0 0.0
    %3846 = vmatpush1.msra.mxu0 0.0
    %3847 = vmatprep.subr.mxu0 0.0
    %3848 = vmatpush1.msra.mxu0 0.0
    %3849 = vmatprep.subr.mxu0 0.0
    %3850 = vmatpush1.msra.mxu0 0.0
    %3851 = vmatprep.subr.mxu0 0.0
    %3852 = vmatpush1.msra.mxu0 0.0
    %3853 = vmatprep.subr.mxu0 0.0
    %v3854 = vand.u32 %v46, 4294901760
    %3855 = vmatpush1.msra.mxu0 %v3854
    %3856 = vmatprep.subr.mxu0 0.0
    %3857 = vmatpush2.msra.mxu0 0.0
    %3858 = vmatprep.subr.mxu0 0.0
    %3859 = vmatpush2.msra.mxu0 0.0
    %3860 = vmatprep.subr.mxu0 0.0
    %3861 = vmatpush2.msra.mxu0 0.0
    %3862 = vmatprep.subr.mxu0 0.0
    %3863 = vmatpush2.msra.mxu0 0.0
    %3864 = vmatprep.subr.mxu0 0.0
    %3865 = vmatpush2.msra.mxu0 0.0
    %3866 = vmatprep.subr.mxu0 0.0
    %3867 = vmatpush2.msra.mxu0 0.0
    %3868 = vmatprep.subr.mxu0 0.0
    %3869 = vmatpush2.msra.mxu0 0.0
    %3870 = vmatprep.subr.mxu0 0.0
    %3871 = vmatpush2.msra.mxu0 0.0
    %3872 = vmatprep.subr.mxu0 0.0
    %3873 = vmatpush2.msra.mxu0 0.0
    %3874 = vmatprep.subr.mxu0 0.0
    %3875 = vmatpush2.msra.mxu0 0.0
    %3876 = vmatprep.subr.mxu0 0.0
    %3877 = vmatpush2.msra.mxu0 0.0
    %3878 = vmatprep.subr.mxu0 0.0
    %3879 = vmatpush2.msra.mxu0 0.0
    %3880 = vmatprep.subr.mxu0 0.0
    %3881 = vmatpush2.msra.mxu0 0.0
    %3882 = vmatprep.subr.mxu0 0.0
    %3883 = vmatpush2.msra.mxu0 0.0
    %3884 = vmatprep.subr.mxu0 0.0
    %3885 = vmatpush2.msra.mxu0 0.0
    %3886 = vmatprep.subr.mxu0 0.0
    %3887 = vmatpush2.msra.mxu0 0.0
    %3888 = vmatprep.mubr.f32.mxu0 0.0
    %v3889 = vand.u32 %v3447, 4294901760
    %3890 = vmatmul.mubr.f32.gmra.mxu0 %v3889
    %v3891 = vpop.f32.mrf.mxu0
    %v3892 = vadd.f32 %v3820, %v3891
    %v3893 = vpop.f32.mrf.mxu0
    %3894 = vdwg.mxu0
    %v3895 = vld [vmem:[#allocation4] sm:$0xff]
    %3897 = vset.pattern.permute.xlu0 0
    %3898 = vperm.xlu0 %3897, %v162
    %v3899 = vpop.permute.xlu0 %3898
    %v3901 = vmul.f32 %v3899, %v3895
    %v3910 = vrot.slane %v1204, 7
    %v3911 = vsel %vm140, %v3910, %v756
    %v3912 = vrot.slane %v1652, 6
    %v3913 = vsel %vm142, %v3912, %v3911
    %v3914 = vrot.slane %v2100, 5
    %v3915 = vsel %vm144, %v3914, %v3913
    %v3916 = vrot.slane %v2548, 4
    %v3917 = vsel %vm146, %v3916, %v3915
    %v3918 = vrot.slane %v2996, 3
    %v3919 = vsel %vm148, %v3918, %v3917
    %v3920 = vrot.slane %v3444, 2
    %v3921 = vsel %vm150, %v3920, %v3919
    %v3922 = vrot.slane %v3892, 1
    %v3923 = vsel %vm152, %v3922, %v3921
    %v3925 = vadd.f32 %v3901, %v3923
    %3926 = vst.msk [vmem:[#allocation4] sm:$0xff] %vm63, %v3925
    %3927 = vst.msk [vmem:[#allocation2] sm:$0xff] %vm309, %v159
    // Predicated region
    $region22: #{tpu_custom_call.1} parent=1 // pred_check
      %p3928 = pneg %p30
    $region23: #{tpu_custom_call.1} parent=1 // pred_check_branch
      %3930 = sbr.rel (%p3928) target = $region25
    $region24: #{tpu_custom_call.1} parent=1 // pred_region
      %v3931 = vld [vmem:[#allocation3] sm:$0xff]
      %v3932 = vrcp.pop %v3931
      %v3933 = vld [vmem:[#allocation4] sm:$0xff]
      %3935 = vset.pattern.permute.xlu0 0
      %3936 = vperm.xlu0 %3935, %v3932
      %v3937 = vpop.permute.xlu0 %3936
      %v3939 = vmul.f32 %v3933, %v3937
      %3940 = vst.msk [vmem:[#allocation9] sm:$0xff] %vm63, %v3939
    $region25: #{tpu_custom_call.1} parent=1 // pred_fallthru
      _
    // Predicated region
    $region26: #{tpu_custom_call.1} parent=1 // pred_check
      _
    $region27: #{tpu_custom_call.1} parent=1 // pred_check_branch
      %3942 = sbr.rel (0) target = $region29
    $region28: #{tpu_custom_call.1} parent=1 // pred_region
      %s3944 = ssub.s32 128, 128
      %3945 = vsyncadd [#allocation8], %s3944
      %s3947 = sshll.u32 [#allocation9], 4
      %s3948 = int_to_ptr.vmem [resolvable:$true] %s3947
      %3950 = dma.vmem_to_hbm [thread:$0]  %s3948, 128, %s3, [#allocation8]
    $region29: #{tpu_custom_call.1} parent=1 // pred_fallthru
      _
    // Predicated region
    $region30: #{tpu_custom_call.1} parent=1 // pred_check
      _
    $region31: #{tpu_custom_call.1} parent=1 // pred_check_branch
      %3952 = sbr.rel (0) target = $region33
    $region32: #{tpu_custom_call.1} parent=1 // pred_region
      %3953 = dma.done [#allocation8], 128
    $region33: #{tpu_custom_call.1} parent=1 // pred_fallthru
      _
    %3954 = vsyncpa [#allocation7], 1
    %3955 = vsyncpa [#allocation8], 1

</llo_original>
